<compile_context>
chip_gen: v7x
topology: tpu7x:2x2x1
jax: 0.10.0
libtpu: 0.0.40
codegen_flags: <defaults>
</compile_context>

<pallas_src>
import math

import jax
import jax.numpy as jnp
from jax.experimental import pallas as pl
from jax.experimental.pallas import tpu as pltpu


def _round_up(v, m):
    return (v + m - 1) // m * m


def _pick_time_chunk(T):
    for c in (4, 8, 2, 1):
        if c <= T and T % c == 0:
            return c
    return 1


# ----------------------------- Pallas kernel -------------------------------


def _make_kernel(K, E, F, H, N, Tc, Fp):
    KH = K * H                 # hidden rows per edge (dense: H % 16 == 0)
    KH1 = (K - 1) * H
    KFp = K * Fp               # x rows per edge (per-tap pad F -> Fp, off path)
    KFp1 = (K - 1) * Fp
    N2 = 2 * N                 # two batch elements side by side along lanes

    def kernel(s_ref, x_ref, z0_ref, a_ref, wfull_ref, wh0_ref, whi_ref,
               bias_ref, out_ref, xslab, zslab, ax_ref, zprev_ref):
        tc = pl.program_id(1)

        # ---- chunk 0: fresh recurrence state for this batch pair ----------
        @pl.when(tc == 0)
        def _():
            xslab[...] = jnp.zeros_like(xslab)
            zslab[...] = jnp.zeros_like(zslab)
            zprev_ref[pl.ds(0, H), pl.ds(0, N)] = z0_ref[0]
            zprev_ref[pl.ds(0, H), pl.ds(N, N)] = z0_ref[1]

        # ---- hoisted weight loads / bias broadcast (once per chunk) -------
        a_fused = a_ref[...]                                   # (H, E*K*Fp) bf16
        w_full = wfull_ref[...]                                # (H, E*K*H)  bf16
        w_h0 = wh0_ref[...]                                    # (H, H)      bf16
        w_hi = whi_ref[...]                                    # (H, E*(K-1)*H) bf16
        bias2 = jnp.broadcast_to(bias_ref[...], (H, N2))       # (H, 2N) f32

        # =========== pre-pass: x taps (independent of the z chain) =========
        # TODO(synk): for very long Tc switch to lax.fori_loop(..., unroll=k).
        for t in range(Tc):
            if K > 1:
                def x_shift(t=t):
                    for e in range(E):
                        base = e * KFp
                        for b, col in ((0, 0), (1, N)):
                            src = xslab[pl.ds(base, KFp1), pl.ds(col, N)]
                            sh = jnp.dot(src, s_ref[b, t, e],
                                         preferred_element_type=jnp.float32)
                            xslab[pl.ds(base + Fp, KFp1), pl.ds(col, N)] = (
                                sh.astype(xslab.dtype))
                if t == 0:
                    pl.when(tc > 0)(x_shift)     # x^{(k)}(0) = 0 for k >= 1
                else:
                    x_shift()

            # tap 0 <- x(t)  (pad rows of the tap-0 group stay zero)
            x0 = x_ref[0, t]
            x1 = x_ref[1, t]
            for e in range(E):
                xslab[pl.ds(e * KFp, F), pl.ds(0, N)] = x0
                xslab[pl.ds(e * KFp, F), pl.ds(N, N)] = x1

            # fused a-tap accumulation + bias, stored off the critical path
            ax_ref[t] = (jnp.dot(a_fused, xslab[...],
                                 preferred_element_type=jnp.float32) + bias2)

        # ================= serial hidden-state recurrence ===================
        z_prev = zprev_ref[...]                                # (H, 2N) f32
        for t in range(Tc):
            zp_bf = z_prev.astype(zslab.dtype)

            if t == 0:
                # First local step: conventional slab path so the "no shift at
                # global t == 0" case stays a simple, value-free pl.when.
                if K > 1:
                    @pl.when(tc > 0)
                    def _(t=t):
                        for e in range(E):
                            base = e * KH
                            for b, col in ((0, 0), (1, N)):
                                src = zslab[pl.ds(base, KH1), pl.ds(col, N)]
                                sh = jnp.dot(src, s_ref[b, t, e],
                                             preferred_element_type=jnp.float32)
                                zslab[pl.ds(base + H, KH1), pl.ds(col, N)] = (
                                    sh.astype(zslab.dtype))
                for e in range(E):
                    zslab[pl.ds(e * KH, H), :] = zp_bf
                taps = jnp.dot(w_full, zslab[...],
                               preferred_element_type=jnp.float32)
            else:
                # Shift, feeding the k>=1 tap contribution straight from the
                # in-register shift result; tap 0 comes from the z(t-1) regs.
                if K > 1:
                    sh_parts = []
                    for e in range(E):
                        base = e * KH
                        sh0 = jnp.dot(zslab[pl.ds(base, KH1), pl.ds(0, N)],
                                      s_ref[0, t, e],
                                      preferred_element_type=jnp.float32)
                        sh1 = jnp.dot(zslab[pl.ds(base, KH1), pl.ds(N, N)],
                                      s_ref[1, t, e],
                                      preferred_element_type=jnp.float32)
                        sh_bf = jnp.concatenate([sh0, sh1],
                                                axis=1).astype(zslab.dtype)
                        zslab[pl.ds(base + H, KH1), :] = sh_bf
                        sh_parts.append(sh_bf)
                    sh_all = (sh_parts[0] if E == 1
                              else jnp.concatenate(sh_parts, axis=0))
                    taps = (jnp.dot(w_h0, zp_bf,
                                    preferred_element_type=jnp.float32)
                            + jnp.dot(w_hi, sh_all,
                                      preferred_element_type=jnp.float32))
                else:
                    taps = jnp.dot(w_h0, zp_bf,
                                   preferred_element_type=jnp.float32)
                # keep tap 0 in the slab only as next step's shift source
                for e in range(E):
                    zslab[pl.ds(e * KH, H), :] = zp_bf

            zt = jnp.tanh(taps + ax_ref[t])                    # (H, 2N) f32
            out_ref[0, t] = zt[:, :N].astype(out_ref.dtype)
            out_ref[1, t] = zt[:, N:].astype(out_ref.dtype)
            z_prev = zt

        zprev_ref[...] = z_prev                                # carry to next chunk

    return kernel


# ------------------------------ wrapper -------------------------------------


def hidden_state_db_forward(x, z0, S, aWeights, bWeights, xBias=None, zBias=None):
    """Pallas equivalent of HiddenState_DB.forward (after addGSO(S))."""
    B, T, F, N = x.shape
    H, E, K, Fa = aWeights.shape
    assert Fa == F
    assert bWeights.shape == (H, E, K, H)
    assert S.shape == (B, T, E, N, N)
    assert z0.shape == (B, H, N)
    assert N % 128 == 0, "N must be a multiple of 128 (lane width)"
    # TODO(synk): pad hidden rows for H not a multiple of 16 (bf16 slab tiles).
    assert H % 16 == 0, "H must be a multiple of 16 for the packed bf16 slab"

    Fp = _round_up(F, 16)      # x tap rows padded (off the critical path)
    Tc = _pick_time_chunk(T)

    # bf16-at-source is best; only cast if the caller handed us f32.
    S_bf = S if S.dtype == jnp.bfloat16 else S.astype(jnp.bfloat16)
    x_bf = x if x.dtype == jnp.bfloat16 else x.astype(jnp.bfloat16)
    z0_f = z0.astype(jnp.float32)

    # Pad the batch to an even size (two batch elements per grid step).
    Bp = _round_up(B, 2)
    if Bp != B:
        S_bf = jnp.concatenate([S_bf, jnp.zeros_like(S_bf[:1])], axis=0)
        x_bf = jnp.concatenate([x_bf, jnp.zeros_like(x_bf[:1])], axis=0)
        z0_f = jnp.concatenate([z0_f, jnp.zeros_like(z0_f[:1])], axis=0)

    # ---- host-side fused weights (tiny, one-time) ---------------------------
    a_blocks = []
    for e in range(E):
        for k in range(K):
            blk = aWeights[:, e, k, :]
            if Fp > F:
                blk = jnp.concatenate(
                    [blk, jnp.zeros((H, Fp - F), blk.dtype)], axis=-1)
            a_blocks.append(blk)
    a_fused = jnp.concatenate(a_blocks, axis=-1).astype(jnp.bfloat16)   # (H, E*K*Fp)

    w_full = jnp.concatenate(
        [bWeights[:, e, k, :] for e in range(E) for k in range(K)],
        axis=-1).astype(jnp.bfloat16)                                   # (H, E*K*H)
    w_h0 = jnp.sum(bWeights[:, :, 0, :], axis=1).astype(jnp.bfloat16)   # (H, H)
    if K > 1:
        w_hi = jnp.concatenate(
            [bWeights[:, e, k, :] for e in range(E) for k in range(1, K)],
            axis=-1).astype(jnp.bfloat16)                               # (H, E*(K-1)*H)
    else:
        w_hi = jnp.zeros((H, H), jnp.bfloat16)                          # unused

    if xBias is None:
        xBias = jnp.zeros((H, 1), jnp.float32)
    if zBias is None:
        zBias = jnp.zeros((H, 1), jnp.float32)
    bias = (xBias.astype(jnp.float32) + zBias.astype(jnp.float32)).reshape(H, 1)

    kernel = _make_kernel(K, E, F, H, N, Tc, Fp)

    grid_spec = pltpu.PrefetchScalarGridSpec(
        num_scalar_prefetch=0,
        grid=(Bp // 2, T // Tc),
        in_specs=[
            pl.BlockSpec((2, Tc, E, N, N), lambda b, tc: (b, tc, 0, 0, 0)),  # S  (bf16)
            pl.BlockSpec((2, Tc, F, N), lambda b, tc: (b, tc, 0, 0)),        # x  (bf16)
            pl.BlockSpec((2, H, N), lambda b, tc: (b, 0, 0)),                # z0 (f32)
            pl.BlockSpec((H, E * K * Fp), lambda b, tc: (0, 0)),             # a taps
            pl.BlockSpec((H, E * K * H), lambda b, tc: (0, 0)),              # b taps (all)
            pl.BlockSpec((H, H), lambda b, tc: (0, 0)),                      # b tap 0
            pl.BlockSpec(w_hi.shape, lambda b, tc: (0, 0)),                  # b taps k>=1
            pl.BlockSpec((H, 1), lambda b, tc: (0, 0)),                      # fused bias
        ],
        out_specs=pl.BlockSpec((2, Tc, H, N), lambda b, tc: (b, tc, 0, 0)),
        scratch_shapes=[
            pltpu.VMEM((E * K * Fp, 2 * N), jnp.bfloat16),   # delayed x slab
            pltpu.VMEM((E * K * H, 2 * N), jnp.bfloat16),    # delayed z slab
            pltpu.VMEM((Tc, H, 2 * N), jnp.float32),         # per-chunk Ax + bias
            pltpu.VMEM((H, 2 * N), jnp.float32),             # z(t-1) carry
        ],
    )

    z = pl.pallas_call(
        kernel,
        out_shape=jax.ShapeDtypeStruct((Bp, T, H, N), jnp.float32),
        grid_spec=grid_spec,
        compiler_params=pltpu.CompilerParams(
            dimension_semantics=("parallel", "arbitrary"),
            vmem_limit_bytes=32 * 1024 * 1024),
    )(S_bf, x_bf, z0_f, a_fused, w_full, w_h0, w_hi, bias)

    z = z[:B]
    zT = z[:, T - 1:T][:, None]        # (B, 1, 1, H, N) == zT.unsqueeze(1)
    return z, zT


# --------------------- pure-JAX reference (literal port) -------------------


def lsigf_db_ref(h, S, x, b=None):
    Fo, E, K, G = h.shape
    B, T, _, N, _ = S.shape
    xk = jnp.broadcast_to(x[:, :, None, :, :], (B, T, E, G, N))
    z = xk[:, :, None]
    for _k in range(1, K):
        xk = xk[:, :T - 1]
        xk = jnp.concatenate(
            [jnp.zeros((B, 1, E, G, N), xk.dtype), xk], axis=1)
        xk = jnp.matmul(xk, S)
        z = jnp.concatenate([z, xk[:, :, None]], axis=2)
    z = jnp.transpose(z, (0, 1, 5, 3, 2, 4)).reshape(B, T, N, E * K * G)
    hf = jnp.transpose(h.reshape(Fo, E * K * G), (1, 0))
    y = jnp.transpose(jnp.matmul(z, hf), (0, 1, 3, 2))
    if b is not None:
        y = y + b
    return y


def grnn_db_ref(a, b, S, x, z0, sigma, xBias=None, zBias=None):
    H, E, K, _F = a.shape
    B, T, _, N, _ = S.shape
    Ax = lsigf_db_ref(a, S, x, b=xBias)
    bf = b.reshape(1, H, E * K * H)
    zK = jnp.concatenate([z0[:, None], jnp.zeros((B, K - 1, H, N))], axis=1)
    zK = jnp.broadcast_to(zK[:, None], (B, E, K, H, N))
    zK = jnp.transpose(zK, (0, 4, 1, 2, 3)).reshape(B, N, E * K * H)
    zK = jnp.transpose(zK, (0, 2, 1))
    zt = jnp.matmul(bf, zK)
    if zBias is not None:
        zt = zt + zBias
    zt = sigma(Ax[:, 0] + zt)
    z = zt[:, None]
    ztq = zt[:, None]
    Sz = jnp.broadcast_to(z0[:, None, None], (B, 1, E, H, N))
    CK = jnp.concatenate([jnp.eye(K - 1), jnp.zeros((1, K - 1))],
                         axis=0).reshape(1, 1, 1, K, K - 1)
    for t in range(1, T):
        if t < K:
            St = jnp.broadcast_to(S[:, t:t + 1], (B, t, E, N, N))
            Sz = jnp.matmul(Sz, St)
            ztThis = jnp.broadcast_to(ztq[:, :, None], (B, 1, E, H, N))
            Sz = jnp.concatenate([ztThis, Sz], axis=1)
            zeroRow = jnp.zeros((B, K - (t + 1), E, H, N))
            SzPad = jnp.concatenate([Sz, zeroRow], axis=1)
            bSz = jnp.transpose(SzPad, (0, 4, 2, 1, 3)).reshape(B, N, E * K * H)
        else:
            Szp = jnp.transpose(Sz, (0, 2, 3, 4, 1))
            Szp = jnp.matmul(Szp, CK)
            Sz = jnp.transpose(Szp, (0, 4, 1, 2, 3))
            St = jnp.broadcast_to(S[:, t:t + 1], (B, K - 1, E, N, N))
            Sz = jnp.matmul(Sz, St)
            ztThis = jnp.broadcast_to(ztq[:, :, None], (B, 1, E, H, N))
            Sz = jnp.concatenate([ztThis, Sz], axis=1)
            bSz = jnp.transpose(Sz, (0, 4, 2, 1, 3)).reshape(B, N, E * K * H)
        bSz = jnp.transpose(bSz, (0, 2, 1))
        Bzt = jnp.matmul(bf, bSz)
        if zBias is not None:
            Bzt = Bzt + zBias
        ztq = sigma(Ax[:, t] + Bzt)[:, None]
        z = jnp.concatenate([z, ztq], axis=1)
    return z


# --------------------------------- main -------------------------------------


def _bf16_round(a):
    # Snap values to bf16-representable f32 so the bf16 inputs fed to the
    # kernel are lossless w.r.t. the f32 reference inputs.
    return a.astype(jnp.bfloat16).astype(jnp.float32)


if __name__ == "__main__":
    B, T, F, H, K, E, N = 2, 8, 4, 32, 3, 1, 128

    key = jax.random.PRNGKey(0)
    k_a, k_b, k_xb, k_zb, k_x, k_S, k_z0 = jax.random.split(key, 7)

    stdv = 1.0 / math.sqrt(F * K)
    aW = _bf16_round(jax.random.uniform(k_a, (H, E, K, F), minval=-stdv, maxval=stdv))
    bW = _bf16_round(jax.random.uniform(k_b, (H, E, K, H), minval=-stdv, maxval=stdv))
    xBias = _bf16_round(jax.random.uniform(k_xb, (H, 1), minval=-stdv, maxval=stdv))
    zBias = _bf16_round(jax.random.uniform(k_zb, (H, 1), minval=-stdv, maxval=stdv))

    # S and x are produced in bf16 at the source (no wrapper-side cast of the
    # big S tensor); the f32 copies below are exact upcasts for the reference.
    x_bf = jax.random.normal(k_x, (B, T, F, N), dtype=jnp.float32).astype(jnp.bfloat16)
    S_bf = (jax.random.normal(k_S, (B, T, E, N, N), dtype=jnp.float32)
            / jnp.sqrt(jnp.float32(N))).astype(jnp.bfloat16)
    z0 = _bf16_round(jax.random.normal(k_z0, (B, H, N), dtype=jnp.float32))

    x_f32 = x_bf.astype(jnp.float32)
    S_f32 = S_bf.astype(jnp.float32)

    z, zT = hidden_state_db_forward(x_bf, z0, S_bf, aW, bW, xBias, zBias)
    jax.block_until_ready((z, zT))

    z_ref = grnn_db_ref(aW, bW, S_f32, x_f32, z0, jnp.tanh, xBias, zBias)
    zT_ref = z_ref[:, T - 1:T][:, None]
    jax.block_until_ready((z_ref, zT_ref))

    assert z.shape == (B, T, H, N)
    assert zT.shape == (B, 1, 1, H, N)

    # Kernel runs the shift/tap matmuls in bf16 (f32 accumulation); the
    # reference is pure f32, so allow a bf16-level tolerance.  A broken
    # recurrence produces O(1) errors, so these thresholds still discriminate.
    max_err = float(jnp.max(jnp.abs(z - z_ref)))
    rel_err = float(jnp.linalg.norm((z - z_ref).ravel())
                    / jnp.linalg.norm(z_ref.ravel()))
    assert max_err < 8e-2, f"mismatch vs reference, max abs err = {max_err}"
    assert rel_err < 3e-2, f"mismatch vs reference, rel l2 err = {rel_err}"
    assert float(jnp.max(jnp.abs(zT - zT_ref))) < 8e-2

    print("KERNEL_OK")
</pallas_src>

<mosaic_0001>
module attributes {stable_mosaic.version = 11 : i64} {
  func.func @kernel(%arg0: i32, %arg1: i32, %arg2: memref<2x4x1x128x128xbf16, #tpu.memory_space<vmem>>, %arg3: memref<2x4x4x128xbf16, #tpu.memory_space<vmem>>, %arg4: memref<2x32x128xf32, #tpu.memory_space<vmem>>, %arg5: memref<32x48xbf16, #tpu.memory_space<vmem>>, %arg6: memref<32x96xbf16, #tpu.memory_space<vmem>>, %arg7: memref<32x32xbf16, #tpu.memory_space<vmem>>, %arg8: memref<32x64xbf16, #tpu.memory_space<vmem>>, %arg9: memref<32x1xf32, #tpu.memory_space<vmem>>, %arg10: memref<2x4x32x128xf32, #tpu.memory_space<vmem>>, %arg11: memref<48x256xbf16, #tpu.memory_space<vmem>>, %arg12: memref<96x256xbf16, #tpu.memory_space<vmem>>, %arg13: memref<4x32x256xf32, #tpu.memory_space<vmem>>, %arg14: memref<32x256xf32, #tpu.memory_space<vmem>>) attributes {dimension_semantics = [#tpu.dimension_semantics<parallel>, #tpu.dimension_semantics<arbitrary>], iteration_bounds = array<i64: 1, 2>, scalar_prefetch = 0 : i64, scratch_operands = 4 : i64, tpu.core_type = #tpu.core_type<tc>, window_params = [{transform_indices = @transform_0, window_bounds = array<i64: 2, 4, 1, 128, 128>}, {transform_indices = @transform_1, window_bounds = array<i64: 2, 4, 4, 128>}, {transform_indices = @transform_2, window_bounds = array<i64: 2, 32, 128>}, {pipeline_mode = #tpu.pipeline_mode<synchronous>, transform_indices = @transform_3, window_bounds = array<i64: 32, 48>}, {pipeline_mode = #tpu.pipeline_mode<synchronous>, transform_indices = @transform_4, window_bounds = array<i64: 32, 96>}, {pipeline_mode = #tpu.pipeline_mode<synchronous>, transform_indices = @transform_5, window_bounds = array<i64: 32, 32>}, {pipeline_mode = #tpu.pipeline_mode<synchronous>, transform_indices = @transform_6, window_bounds = array<i64: 32, 64>}, {pipeline_mode = #tpu.pipeline_mode<synchronous>, transform_indices = @transform_7, window_bounds = array<i64: 32, 1>}, {transform_indices = @transform_8, window_bounds = array<i64: 2, 4, 32, 128>}]} {
    %c0_i32 = arith.constant 0 : i32
    %0 = arith.cmpi eq, %arg1, %c0_i32 : i32
    %1 = arith.extui %0 : i1 to i32
    %c0_i32_0 = arith.constant 0 : i32
    %2 = arith.cmpi ne, %1, %c0_i32_0 : i32
    scf.if %2 {
      %cst_258 = arith.constant 0.000000e+00 : bf16
      %202 = vector.broadcast %cst_258 : bf16 to vector<48x256xbf16>
      %c0_259 = arith.constant 0 : index
      %c0_260 = arith.constant 0 : index
      %203 = vector.load %arg11[%c0_259, %c0_260] : memref<48x256xbf16, #tpu.memory_space<vmem>>, vector<48x256xbf16>
      tpu.vector_store %arg11[%c0_259, %c0_260], %202 {strides = array<i32>} : memref<48x256xbf16, #tpu.memory_space<vmem>>, vector<48x256xbf16>,
      %cst_261 = arith.constant 0.000000e+00 : bf16
      %204 = vector.broadcast %cst_261 : bf16 to vector<96x256xbf16>
      %c0_262 = arith.constant 0 : index
      %c0_263 = arith.constant 0 : index
      %205 = vector.load %arg12[%c0_262, %c0_263] : memref<96x256xbf16, #tpu.memory_space<vmem>>, vector<96x256xbf16>
      tpu.vector_store %arg12[%c0_262, %c0_263], %204 {strides = array<i32>} : memref<96x256xbf16, #tpu.memory_space<vmem>>, vector<96x256xbf16>,
      %c0_264 = arith.constant 0 : index
      %c0_265 = arith.constant 0 : index
      %c0_266 = arith.constant 0 : index
      %206 = vector.load %arg4[%c0_264, %c0_265, %c0_266] : memref<2x32x128xf32, #tpu.memory_space<vmem>>, vector<1x32x128xf32>
      %207 = vector.shape_cast %206 : vector<1x32x128xf32> to vector<32x128xf32>
      %c0_267 = arith.constant 0 : index
      %c0_268 = arith.constant 0 : index
      %208 = vector.load %arg14[%c0_267, %c0_268] : memref<32x256xf32, #tpu.memory_space<vmem>>, vector<32x128xf32>
      tpu.vector_store %arg14[%c0_267, %c0_268], %207 {strides = array<i32>} : memref<32x256xf32, #tpu.memory_space<vmem>>, vector<32x128xf32>,
      %c1_269 = arith.constant 1 : index
      %c0_270 = arith.constant 0 : index
      %c0_271 = arith.constant 0 : index
      %209 = vector.load %arg4[%c1_269, %c0_270, %c0_271] : memref<2x32x128xf32, #tpu.memory_space<vmem>>, vector<1x32x128xf32>
      %210 = vector.shape_cast %209 : vector<1x32x128xf32> to vector<32x128xf32>
      %c0_272 = arith.constant 0 : index
      %c128_273 = arith.constant 128 : index
      %211 = vector.load %arg14[%c0_272, %c128_273] : memref<32x256xf32, #tpu.memory_space<vmem>>, vector<32x128xf32>
      tpu.vector_store %arg14[%c0_272, %c128_273], %210 {strides = array<i32>} : memref<32x256xf32, #tpu.memory_space<vmem>>, vector<32x128xf32>,
    } else {
    }
    %c0 = arith.constant 0 : index
    %c0_1 = arith.constant 0 : index
    %3 = vector.load %arg5[%c0, %c0_1] : memref<32x48xbf16, #tpu.memory_space<vmem>>, vector<32x48xbf16>
    %c0_2 = arith.constant 0 : index
    %c0_3 = arith.constant 0 : index
    %4 = vector.load %arg6[%c0_2, %c0_3] : memref<32x96xbf16, #tpu.memory_space<vmem>>, vector<32x96xbf16>
    %c0_4 = arith.constant 0 : index
    %c0_5 = arith.constant 0 : index
    %5 = vector.load %arg7[%c0_4, %c0_5] : memref<32x32xbf16, #tpu.memory_space<vmem>>, vector<32x32xbf16>
    %c0_6 = arith.constant 0 : index
    %c0_7 = arith.constant 0 : index
    %6 = vector.load %arg8[%c0_6, %c0_7] : memref<32x64xbf16, #tpu.memory_space<vmem>>, vector<32x64xbf16>
    %c0_8 = arith.constant 0 : index
    %c0_9 = arith.constant 0 : index
    %7 = vector.load %arg9[%c0_8, %c0_9] : memref<32x1xf32, #tpu.memory_space<vmem>>, vector<32x1xf32>
    %8 = vector.shape_cast %7 : vector<32x1xf32> to vector<32x1xf32>
    %9 = vector.broadcast %8 : vector<32x1xf32> to vector<32x256xf32>
    %c0_i32_10 = arith.constant 0 : i32
    %10 = arith.cmpi sgt, %arg1, %c0_i32_10 : i32
    %11 = arith.extui %10 : i1 to i32
    %c0_i32_11 = arith.constant 0 : i32
    %12 = arith.cmpi ne, %11, %c0_i32_11 : i32
    scf.if %12 {
      %c0_258 = arith.constant 0 : index
      %c0_259 = arith.constant 0 : index
      %202 = vector.load %arg11[%c0_258, %c0_259] : memref<48x256xbf16, #tpu.memory_space<vmem>>, vector<32x128xbf16>
      %c0_260 = arith.constant 0 : index
      %c0_261 = arith.constant 0 : index
      %c0_262 = arith.constant 0 : index
      %c0_263 = arith.constant 0 : index
      %c0_264 = arith.constant 0 : index
      %203 = vector.load %arg2[%c0_260, %c0_261, %c0_262, %c0_263, %c0_264] : memref<2x4x1x128x128xbf16, #tpu.memory_space<vmem>>, vector<1x1x1x128x128xbf16>
      %204 = vector.shape_cast %203 : vector<1x1x1x128x128xbf16> to vector<128x128xbf16>
      %cst_265 = arith.constant dense<0.000000e+00> : vector<32x128xf32>
      %205 = tpu.matmul %202, %204, %cst_265 {dimension_numbers = #tpu.dot_dimension_numbers<[1], [0], [0], [1], [0, 0, 1, 1], [], []>} : vector<32x128xbf16>, vector<128x128xbf16>, vector<32x128xf32> -> vector<32x128xf32>
      %206 = arith.truncf %205 : vector<32x128xf32> to vector<32x128xbf16>
      %c16_266 = arith.constant 16 : index
      %c0_267 = arith.constant 0 : index
      %207 = vector.load %arg11[%c16_266, %c0_267] : memref<48x256xbf16, #tpu.memory_space<vmem>>, vector<32x128xbf16>
      tpu.vector_store %arg11[%c16_266, %c0_267], %206 {strides = array<i32>} : memref<48x256xbf16, #tpu.memory_space<vmem>>, vector<32x128xbf16>,
      %c0_268 = arith.constant 0 : index
      %c128_269 = arith.constant 128 : index
      %208 = vector.load %arg11[%c0_268, %c128_269] : memref<48x256xbf16, #tpu.memory_space<vmem>>, vector<32x128xbf16>
      %c1_270 = arith.constant 1 : index
      %c0_271 = arith.constant 0 : index
      %c0_272 = arith.constant 0 : index
      %c0_273 = arith.constant 0 : index
      %c0_274 = arith.constant 0 : index
      %209 = vector.load %arg2[%c1_270, %c0_271, %c0_272, %c0_273, %c0_274] : memref<2x4x1x128x128xbf16, #tpu.memory_space<vmem>>, vector<1x1x1x128x128xbf16>
      %210 = vector.shape_cast %209 : vector<1x1x1x128x128xbf16> to vector<128x128xbf16>
      %cst_275 = arith.constant dense<0.000000e+00> : vector<32x128xf32>
      %211 = tpu.matmul %208, %210, %cst_275 {dimension_numbers = #tpu.dot_dimension_numbers<[1], [0], [0], [1], [0, 0, 1, 1], [], []>} : vector<32x128xbf16>, vector<128x128xbf16>, vector<32x128xf32> -> vector<32x128xf32>
      %212 = arith.truncf %211 : vector<32x128xf32> to vector<32x128xbf16>
      %c16_276 = arith.constant 16 : index
      %c128_277 = arith.constant 128 : index
      %213 = vector.load %arg11[%c16_276, %c128_277] : memref<48x256xbf16, #tpu.memory_space<vmem>>, vector<32x128xbf16>
      tpu.vector_store %arg11[%c16_276, %c128_277], %212 {strides = array<i32>} : memref<48x256xbf16, #tpu.memory_space<vmem>>, vector<32x128xbf16>,
    } else {
    }
    %c0_12 = arith.constant 0 : index
    %c0_13 = arith.constant 0 : index
    %c0_14 = arith.constant 0 : index
    %c0_15 = arith.constant 0 : index
    %13 = vector.load %arg3[%c0_12, %c0_13, %c0_14, %c0_15] : memref<2x4x4x128xbf16, #tpu.memory_space<vmem>>, vector<1x1x4x128xbf16>
    %14 = vector.shape_cast %13 : vector<1x1x4x128xbf16> to vector<4x128xbf16>
    %c1 = arith.constant 1 : index
    %c0_16 = arith.constant 0 : index
    %c0_17 = arith.constant 0 : index
    %c0_18 = arith.constant 0 : index
    %15 = vector.load %arg3[%c1, %c0_16, %c0_17, %c0_18] : memref<2x4x4x128xbf16, #tpu.memory_space<vmem>>, vector<1x1x4x128xbf16>
    %16 = vector.shape_cast %15 : vector<1x1x4x128xbf16> to vector<4x128xbf16>
    %c0_19 = arith.constant 0 : index
    %c0_20 = arith.constant 0 : index
    %17 = vector.load %arg11[%c0_19, %c0_20] : memref<48x256xbf16, #tpu.memory_space<vmem>>, vector<4x128xbf16>
    tpu.vector_store %arg11[%c0_19, %c0_20], %14 {strides = array<i32>} : memref<48x256xbf16, #tpu.memory_space<vmem>>, vector<4x128xbf16>,
    %c0_21 = arith.constant 0 : index
    %c128 = arith.constant 128 : index
    %18 = vector.load %arg11[%c0_21, %c128] : memref<48x256xbf16, #tpu.memory_space<vmem>>, vector<4x128xbf16>
    tpu.vector_store %arg11[%c0_21, %c128], %16 {strides = array<i32>} : memref<48x256xbf16, #tpu.memory_space<vmem>>, vector<4x128xbf16>,
    %c0_22 = arith.constant 0 : index
    %c0_23 = arith.constant 0 : index
    %19 = vector.load %arg11[%c0_22, %c0_23] : memref<48x256xbf16, #tpu.memory_space<vmem>>, vector<48x256xbf16>
    %cst = arith.constant dense<0.000000e+00> : vector<32x256xf32>
    %20 = tpu.matmul %3, %19, %cst {dimension_numbers = #tpu.dot_dimension_numbers<[1], [0], [0], [1], [0, 0, 1, 1], [], []>} : vector<32x48xbf16>, vector<48x256xbf16>, vector<32x256xf32> -> vector<32x256xf32>
    %21 = arith.addf %20, %9 : vector<32x256xf32>
    %c0_24 = arith.constant 0 : index
    %c0_25 = arith.constant 0 : index
    %c0_26 = arith.constant 0 : index
    %22 = vector.load %arg13[%c0_24, %c0_25, %c0_26] : memref<4x32x256xf32, #tpu.memory_space<vmem>>, vector<1x32x256xf32>
    %23 = vector.shape_cast %22 : vector<1x32x256xf32> to vector<32x256xf32>
    %24 = vector.shape_cast %21 : vector<32x256xf32> to vector<1x32x256xf32>
    tpu.vector_store %arg13[%c0_24, %c0_25, %c0_26], %24 {strides = array<i32>} : memref<4x32x256xf32, #tpu.memory_space<vmem>>, vector<1x32x256xf32>,
    %c0_27 = arith.constant 0 : index
    %c0_28 = arith.constant 0 : index
    %25 = vector.load %arg11[%c0_27, %c0_28] : memref<48x256xbf16, #tpu.memory_space<vmem>>, vector<32x128xbf16>
    %c0_29 = arith.constant 0 : index
    %c1_30 = arith.constant 1 : index
    %c0_31 = arith.constant 0 : index
    %c0_32 = arith.constant 0 : index
    %c0_33 = arith.constant 0 : index
    %26 = vector.load %arg2[%c0_29, %c1_30, %c0_31, %c0_32, %c0_33] : memref<2x4x1x128x128xbf16, #tpu.memory_space<vmem>>, vector<1x1x1x128x128xbf16>
    %27 = vector.shape_cast %26 : vector<1x1x1x128x128xbf16> to vector<128x128xbf16>
    %cst_34 = arith.constant dense<0.000000e+00> : vector<32x128xf32>
    %28 = tpu.matmul %25, %27, %cst_34 {dimension_numbers = #tpu.dot_dimension_numbers<[1], [0], [0], [1], [0, 0, 1, 1], [], []>} : vector<32x128xbf16>, vector<128x128xbf16>, vector<32x128xf32> -> vector<32x128xf32>
    %29 = arith.truncf %28 : vector<32x128xf32> to vector<32x128xbf16>
    %c16 = arith.constant 16 : index
    %c0_35 = arith.constant 0 : index
    %30 = vector.load %arg11[%c16, %c0_35] : memref<48x256xbf16, #tpu.memory_space<vmem>>, vector<32x128xbf16>
    tpu.vector_store %arg11[%c16, %c0_35], %29 {strides = array<i32>} : memref<48x256xbf16, #tpu.memory_space<vmem>>, vector<32x128xbf16>,
    %c0_36 = arith.constant 0 : index
    %c128_37 = arith.constant 128 : index
    %31 = vector.load %arg11[%c0_36, %c128_37] : memref<48x256xbf16, #tpu.memory_space<vmem>>, vector<32x128xbf16>
    %c1_38 = arith.constant 1 : index
    %c1_39 = arith.constant 1 : index
    %c0_40 = arith.constant 0 : index
    %c0_41 = arith.constant 0 : index
    %c0_42 = arith.constant 0 : index
    %32 = vector.load %arg2[%c1_38, %c1_39, %c0_40, %c0_41, %c0_42] : memref<2x4x1x128x128xbf16, #tpu.memory_space<vmem>>, vector<1x1x1x128x128xbf16>
    %33 = vector.shape_cast %32 : vector<1x1x1x128x128xbf16> to vector<128x128xbf16>
    %cst_43 = arith.constant dense<0.000000e+00> : vector<32x128xf32>
    %34 = tpu.matmul %31, %33, %cst_43 {dimension_numbers = #tpu.dot_dimension_numbers<[1], [0], [0], [1], [0, 0, 1, 1], [], []>} : vector<32x128xbf16>, vector<128x128xbf16>, vector<32x128xf32> -> vector<32x128xf32>
    %35 = arith.truncf %34 : vector<32x128xf32> to vector<32x128xbf16>
    %c16_44 = arith.constant 16 : index
    %c128_45 = arith.constant 128 : index
    %36 = vector.load %arg11[%c16_44, %c128_45] : memref<48x256xbf16, #tpu.memory_space<vmem>>, vector<32x128xbf16>
    tpu.vector_store %arg11[%c16_44, %c128_45], %35 {strides = array<i32>} : memref<48x256xbf16, #tpu.memory_space<vmem>>, vector<32x128xbf16>,
    %c0_46 = arith.constant 0 : index
    %c1_47 = arith.constant 1 : index
    %c0_48 = arith.constant 0 : index
    %c0_49 = arith.constant 0 : index
    %37 = vector.load %arg3[%c0_46, %c1_47, %c0_48, %c0_49] : memref<2x4x4x128xbf16, #tpu.memory_space<vmem>>, vector<1x1x4x128xbf16>
    %38 = vector.shape_cast %37 : vector<1x1x4x128xbf16> to vector<4x128xbf16>
    %c1_50 = arith.constant 1 : index
    %c1_51 = arith.constant 1 : index
    %c0_52 = arith.constant 0 : index
    %c0_53 = arith.constant 0 : index
    %39 = vector.load %arg3[%c1_50, %c1_51, %c0_52, %c0_53] : memref<2x4x4x128xbf16, #tpu.memory_space<vmem>>, vector<1x1x4x128xbf16>
    %40 = vector.shape_cast %39 : vector<1x1x4x128xbf16> to vector<4x128xbf16>
    %c0_54 = arith.constant 0 : index
    %c0_55 = arith.constant 0 : index
    %41 = vector.load %arg11[%c0_54, %c0_55] : memref<48x256xbf16, #tpu.memory_space<vmem>>, vector<4x128xbf16>
    tpu.vector_store %arg11[%c0_54, %c0_55], %38 {strides = array<i32>} : memref<48x256xbf16, #tpu.memory_space<vmem>>, vector<4x128xbf16>,
    %c0_56 = arith.constant 0 : index
    %c128_57 = arith.constant 128 : index
    %42 = vector.load %arg11[%c0_56, %c128_57] : memref<48x256xbf16, #tpu.memory_space<vmem>>, vector<4x128xbf16>
    tpu.vector_store %arg11[%c0_56, %c128_57], %40 {strides = array<i32>} : memref<48x256xbf16, #tpu.memory_space<vmem>>, vector<4x128xbf16>,
    %c0_58 = arith.constant 0 : index
    %c0_59 = arith.constant 0 : index
    %43 = vector.load %arg11[%c0_58, %c0_59] : memref<48x256xbf16, #tpu.memory_space<vmem>>, vector<48x256xbf16>
    %cst_60 = arith.constant dense<0.000000e+00> : vector<32x256xf32>
    %44 = tpu.matmul %3, %43, %cst_60 {dimension_numbers = #tpu.dot_dimension_numbers<[1], [0], [0], [1], [0, 0, 1, 1], [], []>} : vector<32x48xbf16>, vector<48x256xbf16>, vector<32x256xf32> -> vector<32x256xf32>
    %45 = arith.addf %44, %9 : vector<32x256xf32>
    %c1_61 = arith.constant 1 : index
    %c0_62 = arith.constant 0 : index
    %c0_63 = arith.constant 0 : index
    %46 = vector.load %arg13[%c1_61, %c0_62, %c0_63] : memref<4x32x256xf32, #tpu.memory_space<vmem>>, vector<1x32x256xf32>
    %47 = vector.shape_cast %46 : vector<1x32x256xf32> to vector<32x256xf32>
    %48 = vector.shape_cast %45 : vector<32x256xf32> to vector<1x32x256xf32>
    tpu.vector_store %arg13[%c1_61, %c0_62, %c0_63], %48 {strides = array<i32>} : memref<4x32x256xf32, #tpu.memory_space<vmem>>, vector<1x32x256xf32>,
    %c0_64 = arith.constant 0 : index
    %c0_65 = arith.constant 0 : index
    %49 = vector.load %arg11[%c0_64, %c0_65] : memref<48x256xbf16, #tpu.memory_space<vmem>>, vector<32x128xbf16>
    %c0_66 = arith.constant 0 : index
    %c2 = arith.constant 2 : index
    %c0_67 = arith.constant 0 : index
    %c0_68 = arith.constant 0 : index
    %c0_69 = arith.constant 0 : index
    %50 = vector.load %arg2[%c0_66, %c2, %c0_67, %c0_68, %c0_69] : memref<2x4x1x128x128xbf16, #tpu.memory_space<vmem>>, vector<1x1x1x128x128xbf16>
    %51 = vector.shape_cast %50 : vector<1x1x1x128x128xbf16> to vector<128x128xbf16>
    %cst_70 = arith.constant dense<0.000000e+00> : vector<32x128xf32>
    %52 = tpu.matmul %49, %51, %cst_70 {dimension_numbers = #tpu.dot_dimension_numbers<[1], [0], [0], [1], [0, 0, 1, 1], [], []>} : vector<32x128xbf16>, vector<128x128xbf16>, vector<32x128xf32> -> vector<32x128xf32>
    %53 = arith.truncf %52 : vector<32x128xf32> to vector<32x128xbf16>
    %c16_71 = arith.constant 16 : index
    %c0_72 = arith.constant 0 : index
    %54 = vector.load %arg11[%c16_71, %c0_72] : memref<48x256xbf16, #tpu.memory_space<vmem>>, vector<32x128xbf16>
    tpu.vector_store %arg11[%c16_71, %c0_72], %53 {strides = array<i32>} : memref<48x256xbf16, #tpu.memory_space<vmem>>, vector<32x128xbf16>,
    %c0_73 = arith.constant 0 : index
    %c128_74 = arith.constant 128 : index
    %55 = vector.load %arg11[%c0_73, %c128_74] : memref<48x256xbf16, #tpu.memory_space<vmem>>, vector<32x128xbf16>
    %c1_75 = arith.constant 1 : index
    %c2_76 = arith.constant 2 : index
    %c0_77 = arith.constant 0 : index
    %c0_78 = arith.constant 0 : index
    %c0_79 = arith.constant 0 : index
    %56 = vector.load %arg2[%c1_75, %c2_76, %c0_77, %c0_78, %c0_79] : memref<2x4x1x128x128xbf16, #tpu.memory_space<vmem>>, vector<1x1x1x128x128xbf16>
    %57 = vector.shape_cast %56 : vector<1x1x1x128x128xbf16> to vector<128x128xbf16>
    %cst_80 = arith.constant dense<0.000000e+00> : vector<32x128xf32>
    %58 = tpu.matmul %55, %57, %cst_80 {dimension_numbers = #tpu.dot_dimension_numbers<[1], [0], [0], [1], [0, 0, 1, 1], [], []>} : vector<32x128xbf16>, vector<128x128xbf16>, vector<32x128xf32> -> vector<32x128xf32>
    %59 = arith.truncf %58 : vector<32x128xf32> to vector<32x128xbf16>
    %c16_81 = arith.constant 16 : index
    %c128_82 = arith.constant 128 : index
    %60 = vector.load %arg11[%c16_81, %c128_82] : memref<48x256xbf16, #tpu.memory_space<vmem>>, vector<32x128xbf16>
    tpu.vector_store %arg11[%c16_81, %c128_82], %59 {strides = array<i32>} : memref<48x256xbf16, #tpu.memory_space<vmem>>, vector<32x128xbf16>,
    %c0_83 = arith.constant 0 : index
    %c2_84 = arith.constant 2 : index
    %c0_85 = arith.constant 0 : index
    %c0_86 = arith.constant 0 : index
    %61 = vector.load %arg3[%c0_83, %c2_84, %c0_85, %c0_86] : memref<2x4x4x128xbf16, #tpu.memory_space<vmem>>, vector<1x1x4x128xbf16>
    %62 = vector.shape_cast %61 : vector<1x1x4x128xbf16> to vector<4x128xbf16>
    %c1_87 = arith.constant 1 : index
    %c2_88 = arith.constant 2 : index
    %c0_89 = arith.constant 0 : index
    %c0_90 = arith.constant 0 : index
    %63 = vector.load %arg3[%c1_87, %c2_88, %c0_89, %c0_90] : memref<2x4x4x128xbf16, #tpu.memory_space<vmem>>, vector<1x1x4x128xbf16>
    %64 = vector.shape_cast %63 : vector<1x1x4x128xbf16> to vector<4x128xbf16>
    %c0_91 = arith.constant 0 : index
    %c0_92 = arith.constant 0 : index
    %65 = vector.load %arg11[%c0_91, %c0_92] : memref<48x256xbf16, #tpu.memory_space<vmem>>, vector<4x128xbf16>
    tpu.vector_store %arg11[%c0_91, %c0_92], %62 {strides = array<i32>} : memref<48x256xbf16, #tpu.memory_space<vmem>>, vector<4x128xbf16>,
    %c0_93 = arith.constant 0 : index
    %c128_94 = arith.constant 128 : index
    %66 = vector.load %arg11[%c0_93, %c128_94] : memref<48x256xbf16, #tpu.memory_space<vmem>>, vector<4x128xbf16>
    tpu.vector_store %arg11[%c0_93, %c128_94], %64 {strides = array<i32>} : memref<48x256xbf16, #tpu.memory_space<vmem>>, vector<4x128xbf16>,
    %c0_95 = arith.constant 0 : index
    %c0_96 = arith.constant 0 : index
    %67 = vector.load %arg11[%c0_95, %c0_96] : memref<48x256xbf16, #tpu.memory_space<vmem>>, vector<48x256xbf16>
    %cst_97 = arith.constant dense<0.000000e+00> : vector<32x256xf32>
    %68 = tpu.matmul %3, %67, %cst_97 {dimension_numbers = #tpu.dot_dimension_numbers<[1], [0], [0], [1], [0, 0, 1, 1], [], []>} : vector<32x48xbf16>, vector<48x256xbf16>, vector<32x256xf32> -> vector<32x256xf32>
    %69 = arith.addf %68, %9 : vector<32x256xf32>
    %c2_98 = arith.constant 2 : index
    %c0_99 = arith.constant 0 : index
    %c0_100 = arith.constant 0 : index
    %70 = vector.load %arg13[%c2_98, %c0_99, %c0_100] : memref<4x32x256xf32, #tpu.memory_space<vmem>>, vector<1x32x256xf32>
    %71 = vector.shape_cast %70 : vector<1x32x256xf32> to vector<32x256xf32>
    %72 = vector.shape_cast %69 : vector<32x256xf32> to vector<1x32x256xf32>
    tpu.vector_store %arg13[%c2_98, %c0_99, %c0_100], %72 {strides = array<i32>} : memref<4x32x256xf32, #tpu.memory_space<vmem>>, vector<1x32x256xf32>,
    %c0_101 = arith.constant 0 : index
    %c0_102 = arith.constant 0 : index
    %73 = vector.load %arg11[%c0_101, %c0_102] : memref<48x256xbf16, #tpu.memory_space<vmem>>, vector<32x128xbf16>
    %c0_103 = arith.constant 0 : index
    %c3 = arith.constant 3 : index
    %c0_104 = arith.constant 0 : index
    %c0_105 = arith.constant 0 : index
    %c0_106 = arith.constant 0 : index
    %74 = vector.load %arg2[%c0_103, %c3, %c0_104, %c0_105, %c0_106] : memref<2x4x1x128x128xbf16, #tpu.memory_space<vmem>>, vector<1x1x1x128x128xbf16>
    %75 = vector.shape_cast %74 : vector<1x1x1x128x128xbf16> to vector<128x128xbf16>
    %cst_107 = arith.constant dense<0.000000e+00> : vector<32x128xf32>
    %76 = tpu.matmul %73, %75, %cst_107 {dimension_numbers = #tpu.dot_dimension_numbers<[1], [0], [0], [1], [0, 0, 1, 1], [], []>} : vector<32x128xbf16>, vector<128x128xbf16>, vector<32x128xf32> -> vector<32x128xf32>
    %77 = arith.truncf %76 : vector<32x128xf32> to vector<32x128xbf16>
    %c16_108 = arith.constant 16 : index
    %c0_109 = arith.constant 0 : index
    %78 = vector.load %arg11[%c16_108, %c0_109] : memref<48x256xbf16, #tpu.memory_space<vmem>>, vector<32x128xbf16>
    tpu.vector_store %arg11[%c16_108, %c0_109], %77 {strides = array<i32>} : memref<48x256xbf16, #tpu.memory_space<vmem>>, vector<32x128xbf16>,
    %c0_110 = arith.constant 0 : index
    %c128_111 = arith.constant 128 : index
    %79 = vector.load %arg11[%c0_110, %c128_111] : memref<48x256xbf16, #tpu.memory_space<vmem>>, vector<32x128xbf16>
    %c1_112 = arith.constant 1 : index
    %c3_113 = arith.constant 3 : index
    %c0_114 = arith.constant 0 : index
    %c0_115 = arith.constant 0 : index
    %c0_116 = arith.constant 0 : index
    %80 = vector.load %arg2[%c1_112, %c3_113, %c0_114, %c0_115, %c0_116] : memref<2x4x1x128x128xbf16, #tpu.memory_space<vmem>>, vector<1x1x1x128x128xbf16>
    %81 = vector.shape_cast %80 : vector<1x1x1x128x128xbf16> to vector<128x128xbf16>
    %cst_117 = arith.constant dense<0.000000e+00> : vector<32x128xf32>
    %82 = tpu.matmul %79, %81, %cst_117 {dimension_numbers = #tpu.dot_dimension_numbers<[1], [0], [0], [1], [0, 0, 1, 1], [], []>} : vector<32x128xbf16>, vector<128x128xbf16>, vector<32x128xf32> -> vector<32x128xf32>
    %83 = arith.truncf %82 : vector<32x128xf32> to vector<32x128xbf16>
    %c16_118 = arith.constant 16 : index
    %c128_119 = arith.constant 128 : index
    %84 = vector.load %arg11[%c16_118, %c128_119] : memref<48x256xbf16, #tpu.memory_space<vmem>>, vector<32x128xbf16>
    tpu.vector_store %arg11[%c16_118, %c128_119], %83 {strides = array<i32>} : memref<48x256xbf16, #tpu.memory_space<vmem>>, vector<32x128xbf16>,
    %c0_120 = arith.constant 0 : index
    %c3_121 = arith.constant 3 : index
    %c0_122 = arith.constant 0 : index
    %c0_123 = arith.constant 0 : index
    %85 = vector.load %arg3[%c0_120, %c3_121, %c0_122, %c0_123] : memref<2x4x4x128xbf16, #tpu.memory_space<vmem>>, vector<1x1x4x128xbf16>
    %86 = vector.shape_cast %85 : vector<1x1x4x128xbf16> to vector<4x128xbf16>
    %c1_124 = arith.constant 1 : index
    %c3_125 = arith.constant 3 : index
    %c0_126 = arith.constant 0 : index
    %c0_127 = arith.constant 0 : index
    %87 = vector.load %arg3[%c1_124, %c3_125, %c0_126, %c0_127] : memref<2x4x4x128xbf16, #tpu.memory_space<vmem>>, vector<1x1x4x128xbf16>
    %88 = vector.shape_cast %87 : vector<1x1x4x128xbf16> to vector<4x128xbf16>
    %c0_128 = arith.constant 0 : index
    %c0_129 = arith.constant 0 : index
    %89 = vector.load %arg11[%c0_128, %c0_129] : memref<48x256xbf16, #tpu.memory_space<vmem>>, vector<4x128xbf16>
    tpu.vector_store %arg11[%c0_128, %c0_129], %86 {strides = array<i32>} : memref<48x256xbf16, #tpu.memory_space<vmem>>, vector<4x128xbf16>,
    %c0_130 = arith.constant 0 : index
    %c128_131 = arith.constant 128 : index
    %90 = vector.load %arg11[%c0_130, %c128_131] : memref<48x256xbf16, #tpu.memory_space<vmem>>, vector<4x128xbf16>
    tpu.vector_store %arg11[%c0_130, %c128_131], %88 {strides = array<i32>} : memref<48x256xbf16, #tpu.memory_space<vmem>>, vector<4x128xbf16>,
    %c0_132 = arith.constant 0 : index
    %c0_133 = arith.constant 0 : index
    %91 = vector.load %arg11[%c0_132, %c0_133] : memref<48x256xbf16, #tpu.memory_space<vmem>>, vector<48x256xbf16>
    %cst_134 = arith.constant dense<0.000000e+00> : vector<32x256xf32>
    %92 = tpu.matmul %3, %91, %cst_134 {dimension_numbers = #tpu.dot_dimension_numbers<[1], [0], [0], [1], [0, 0, 1, 1], [], []>} : vector<32x48xbf16>, vector<48x256xbf16>, vector<32x256xf32> -> vector<32x256xf32>
    %93 = arith.addf %92, %9 : vector<32x256xf32>
    %c3_135 = arith.constant 3 : index
    %c0_136 = arith.constant 0 : index
    %c0_137 = arith.constant 0 : index
    %94 = vector.load %arg13[%c3_135, %c0_136, %c0_137] : memref<4x32x256xf32, #tpu.memory_space<vmem>>, vector<1x32x256xf32>
    %95 = vector.shape_cast %94 : vector<1x32x256xf32> to vector<32x256xf32>
    %96 = vector.shape_cast %93 : vector<32x256xf32> to vector<1x32x256xf32>
    tpu.vector_store %arg13[%c3_135, %c0_136, %c0_137], %96 {strides = array<i32>} : memref<4x32x256xf32, #tpu.memory_space<vmem>>, vector<1x32x256xf32>,
    %c0_138 = arith.constant 0 : index
    %c0_139 = arith.constant 0 : index
    %97 = vector.load %arg14[%c0_138, %c0_139] : memref<32x256xf32, #tpu.memory_space<vmem>>, vector<32x256xf32>
    %98 = arith.truncf %97 : vector<32x256xf32> to vector<32x256xbf16>
    %c0_i32_140 = arith.constant 0 : i32
    %99 = arith.cmpi sgt, %arg1, %c0_i32_140 : i32
    %100 = arith.extui %99 : i1 to i32
    %c0_i32_141 = arith.constant 0 : i32
    %101 = arith.cmpi ne, %100, %c0_i32_141 : i32
    scf.if %101 {
      %c0_258 = arith.constant 0 : index
      %c0_259 = arith.constant 0 : index
      %202 = vector.load %arg12[%c0_258, %c0_259] : memref<96x256xbf16, #tpu.memory_space<vmem>>, vector<64x128xbf16>
      %c0_260 = arith.constant 0 : index
      %c0_261 = arith.constant 0 : index
      %c0_262 = arith.constant 0 : index
      %c0_263 = arith.constant 0 : index
      %c0_264 = arith.constant 0 : index
      %203 = vector.load %arg2[%c0_260, %c0_261, %c0_262, %c0_263, %c0_264] : memref<2x4x1x128x128xbf16, #tpu.memory_space<vmem>>, vector<1x1x1x128x128xbf16>
      %204 = vector.shape_cast %203 : vector<1x1x1x128x128xbf16> to vector<128x128xbf16>
      %cst_265 = arith.constant dense<0.000000e+00> : vector<64x128xf32>
      %205 = tpu.matmul %202, %204, %cst_265 {dimension_numbers = #tpu.dot_dimension_numbers<[1], [0], [0], [1], [0, 0, 1, 1], [], []>} : vector<64x128xbf16>, vector<128x128xbf16>, vector<64x128xf32> -> vector<64x128xf32>
      %206 = arith.truncf %205 : vector<64x128xf32> to vector<64x128xbf16>
      %c32_266 = arith.constant 32 : index
      %c0_267 = arith.constant 0 : index
      %207 = vector.load %arg12[%c32_266, %c0_267] : memref<96x256xbf16, #tpu.memory_space<vmem>>, vector<64x128xbf16>
      tpu.vector_store %arg12[%c32_266, %c0_267], %206 {strides = array<i32>} : memref<96x256xbf16, #tpu.memory_space<vmem>>, vector<64x128xbf16>,
      %c0_268 = arith.constant 0 : index
      %c128_269 = arith.constant 128 : index
      %208 = vector.load %arg12[%c0_268, %c128_269] : memref<96x256xbf16, #tpu.memory_space<vmem>>, vector<64x128xbf16>
      %c1_270 = arith.constant 1 : index
      %c0_271 = arith.constant 0 : index
      %c0_272 = arith.constant 0 : index
      %c0_273 = arith.constant 0 : index
      %c0_274 = arith.constant 0 : index
      %209 = vector.load %arg2[%c1_270, %c0_271, %c0_272, %c0_273, %c0_274] : memref<2x4x1x128x128xbf16, #tpu.memory_space<vmem>>, vector<1x1x1x128x128xbf16>
      %210 = vector.shape_cast %209 : vector<1x1x1x128x128xbf16> to vector<128x128xbf16>
      %cst_275 = arith.constant dense<0.000000e+00> : vector<64x128xf32>
      %211 = tpu.matmul %208, %210, %cst_275 {dimension_numbers = #tpu.dot_dimension_numbers<[1], [0], [0], [1], [0, 0, 1, 1], [], []>} : vector<64x128xbf16>, vector<128x128xbf16>, vector<64x128xf32> -> vector<64x128xf32>
      %212 = arith.truncf %211 : vector<64x128xf32> to vector<64x128xbf16>
      %c32_276 = arith.constant 32 : index
      %c128_277 = arith.constant 128 : index
      %213 = vector.load %arg12[%c32_276, %c128_277] : memref<96x256xbf16, #tpu.memory_space<vmem>>, vector<64x128xbf16>
      tpu.vector_store %arg12[%c32_276, %c128_277], %212 {strides = array<i32>} : memref<96x256xbf16, #tpu.memory_space<vmem>>, vector<64x128xbf16>,
    } else {
    }
    %c0_142 = arith.constant 0 : index
    %c0_143 = arith.constant 0 : index
    %102 = vector.load %arg12[%c0_142, %c0_143] : memref<96x256xbf16, #tpu.memory_space<vmem>>, vector<32x256xbf16>
    tpu.vector_store %arg12[%c0_142, %c0_143], %98 {strides = array<i32>} : memref<96x256xbf16, #tpu.memory_space<vmem>>, vector<32x256xbf16>,
    %c0_144 = arith.constant 0 : index
    %c0_145 = arith.constant 0 : index
    %103 = vector.load %arg12[%c0_144, %c0_145] : memref<96x256xbf16, #tpu.memory_space<vmem>>, vector<96x256xbf16>
    %cst_146 = arith.constant dense<0.000000e+00> : vector<32x256xf32>
    %104 = tpu.matmul %4, %103, %cst_146 {dimension_numbers = #tpu.dot_dimension_numbers<[1], [0], [0], [1], [0, 0, 1, 1], [], []>} : vector<32x96xbf16>, vector<96x256xbf16>, vector<32x256xf32> -> vector<32x256xf32>
    %c0_147 = arith.constant 0 : index
    %c0_148 = arith.constant 0 : index
    %c0_149 = arith.constant 0 : index
    %105 = vector.load %arg13[%c0_147, %c0_148, %c0_149] : memref<4x32x256xf32, #tpu.memory_space<vmem>>, vector<1x32x256xf32>
    %106 = vector.shape_cast %105 : vector<1x32x256xf32> to vector<32x256xf32>
    %107 = arith.addf %104, %106 : vector<32x256xf32>
    %108 = math.tanh %107 : vector<32x256xf32>
    %109 = vector.extract_strided_slice %108 {offsets = [0, 0], sizes = [32, 128], strides = [1, 1]} : vector<32x256xf32> to vector<32x128xf32>
    %c0_150 = arith.constant 0 : index
    %c0_151 = arith.constant 0 : index
    %c0_152 = arith.constant 0 : index
    %c0_153 = arith.constant 0 : index
    %110 = vector.load %arg10[%c0_150, %c0_151, %c0_152, %c0_153] : memref<2x4x32x128xf32, #tpu.memory_space<vmem>>, vector<1x1x32x128xf32>
    %111 = vector.shape_cast %110 : vector<1x1x32x128xf32> to vector<32x128xf32>
    %112 = vector.shape_cast %109 : vector<32x128xf32> to vector<1x1x32x128xf32>
    tpu.vector_store %arg10[%c0_150, %c0_151, %c0_152, %c0_153], %112 {strides = array<i32>} : memref<2x4x32x128xf32, #tpu.memory_space<vmem>>, vector<1x1x32x128xf32>,
    %113 = vector.extract_strided_slice %108 {offsets = [0, 128], sizes = [32, 128], strides = [1, 1]} : vector<32x256xf32> to vector<32x128xf32>
    %c1_154 = arith.constant 1 : index
    %c0_155 = arith.constant 0 : index
    %c0_156 = arith.constant 0 : index
    %c0_157 = arith.constant 0 : index
    %114 = vector.load %arg10[%c1_154, %c0_155, %c0_156, %c0_157] : memref<2x4x32x128xf32, #tpu.memory_space<vmem>>, vector<1x1x32x128xf32>
    %115 = vector.shape_cast %114 : vector<1x1x32x128xf32> to vector<32x128xf32>
    %116 = vector.shape_cast %113 : vector<32x128xf32> to vector<1x1x32x128xf32>
    tpu.vector_store %arg10[%c1_154, %c0_155, %c0_156, %c0_157], %116 {strides = array<i32>} : memref<2x4x32x128xf32, #tpu.memory_space<vmem>>, vector<1x1x32x128xf32>,
    %117 = arith.truncf %108 : vector<32x256xf32> to vector<32x256xbf16>
    %c0_158 = arith.constant 0 : index
    %c0_159 = arith.constant 0 : index
    %118 = vector.load %arg12[%c0_158, %c0_159] : memref<96x256xbf16, #tpu.memory_space<vmem>>, vector<64x128xbf16>
    %c0_160 = arith.constant 0 : index
    %c1_161 = arith.constant 1 : index
    %c0_162 = arith.constant 0 : index
    %c0_163 = arith.constant 0 : index
    %c0_164 = arith.constant 0 : index
    %119 = vector.load %arg2[%c0_160, %c1_161, %c0_162, %c0_163, %c0_164] : memref<2x4x1x128x128xbf16, #tpu.memory_space<vmem>>, vector<1x1x1x128x128xbf16>
    %120 = vector.shape_cast %119 : vector<1x1x1x128x128xbf16> to vector<128x128xbf16>
    %cst_165 = arith.constant dense<0.000000e+00> : vector<64x128xf32>
    %121 = tpu.matmul %118, %120, %cst_165 {dimension_numbers = #tpu.dot_dimension_numbers<[1], [0], [0], [1], [0, 0, 1, 1], [], []>} : vector<64x128xbf16>, vector<128x128xbf16>, vector<64x128xf32> -> vector<64x128xf32>
    %c0_166 = arith.constant 0 : index
    %c128_167 = arith.constant 128 : index
    %122 = vector.load %arg12[%c0_166, %c128_167] : memref<96x256xbf16, #tpu.memory_space<vmem>>, vector<64x128xbf16>
    %c1_168 = arith.constant 1 : index
    %c1_169 = arith.constant 1 : index
    %c0_170 = arith.constant 0 : index
    %c0_171 = arith.constant 0 : index
    %c0_172 = arith.constant 0 : index
    %123 = vector.load %arg2[%c1_168, %c1_169, %c0_170, %c0_171, %c0_172] : memref<2x4x1x128x128xbf16, #tpu.memory_space<vmem>>, vector<1x1x1x128x128xbf16>
    %124 = vector.shape_cast %123 : vector<1x1x1x128x128xbf16> to vector<128x128xbf16>
    %cst_173 = arith.constant dense<0.000000e+00> : vector<64x128xf32>
    %125 = tpu.matmul %122, %124, %cst_173 {dimension_numbers = #tpu.dot_dimension_numbers<[1], [0], [0], [1], [0, 0, 1, 1], [], []>} : vector<64x128xbf16>, vector<128x128xbf16>, vector<64x128xf32> -> vector<64x128xf32>
    %126 = tpu.concatenate %121, %125 in 1 : vector<64x128xf32>, vector<64x128xf32> -> vector<64x256xf32>
    %127 = arith.truncf %126 : vector<64x256xf32> to vector<64x256xbf16>
    %c32 = arith.constant 32 : index
    %c0_174 = arith.constant 0 : index
    %128 = vector.load %arg12[%c32, %c0_174] : memref<96x256xbf16, #tpu.memory_space<vmem>>, vector<64x256xbf16>
    tpu.vector_store %arg12[%c32, %c0_174], %127 {strides = array<i32>} : memref<96x256xbf16, #tpu.memory_space<vmem>>, vector<64x256xbf16>,
    %cst_175 = arith.constant dense<0.000000e+00> : vector<32x256xf32>
    %129 = tpu.matmul %5, %117, %cst_175 {dimension_numbers = #tpu.dot_dimension_numbers<[1], [0], [0], [1], [0, 0, 1, 1], [], []>} : vector<32x32xbf16>, vector<32x256xbf16>, vector<32x256xf32> -> vector<32x256xf32>
    %cst_176 = arith.constant dense<0.000000e+00> : vector<32x256xf32>
    %130 = tpu.matmul %6, %127, %cst_176 {dimension_numbers = #tpu.dot_dimension_numbers<[1], [0], [0], [1], [0, 0, 1, 1], [], []>} : vector<32x64xbf16>, vector<64x256xbf16>, vector<32x256xf32> -> vector<32x256xf32>
    %131 = arith.addf %129, %130 : vector<32x256xf32>
    %c0_177 = arith.constant 0 : index
    %c0_178 = arith.constant 0 : index
    %132 = vector.load %arg12[%c0_177, %c0_178] : memref<96x256xbf16, #tpu.memory_space<vmem>>, vector<32x256xbf16>
    tpu.vector_store %arg12[%c0_177, %c0_178], %117 {strides = array<i32>} : memref<96x256xbf16, #tpu.memory_space<vmem>>, vector<32x256xbf16>,
    %c1_179 = arith.constant 1 : index
    %c0_180 = arith.constant 0 : index
    %c0_181 = arith.constant 0 : index
    %133 = vector.load %arg13[%c1_179, %c0_180, %c0_181] : memref<4x32x256xf32, #tpu.memory_space<vmem>>, vector<1x32x256xf32>
    %134 = vector.shape_cast %133 : vector<1x32x256xf32> to vector<32x256xf32>
    %135 = arith.addf %131, %134 : vector<32x256xf32>
    %136 = math.tanh %135 : vector<32x256xf32>
    %137 = vector.extract_strided_slice %136 {offsets = [0, 0], sizes = [32, 128], strides = [1, 1]} : vector<32x256xf32> to vector<32x128xf32>
    %c0_182 = arith.constant 0 : index
    %c1_183 = arith.constant 1 : index
    %c0_184 = arith.constant 0 : index
    %c0_185 = arith.constant 0 : index
    %138 = vector.load %arg10[%c0_182, %c1_183, %c0_184, %c0_185] : memref<2x4x32x128xf32, #tpu.memory_space<vmem>>, vector<1x1x32x128xf32>
    %139 = vector.shape_cast %138 : vector<1x1x32x128xf32> to vector<32x128xf32>
    %140 = vector.shape_cast %137 : vector<32x128xf32> to vector<1x1x32x128xf32>
    tpu.vector_store %arg10[%c0_182, %c1_183, %c0_184, %c0_185], %140 {strides = array<i32>} : memref<2x4x32x128xf32, #tpu.memory_space<vmem>>, vector<1x1x32x128xf32>,
    %141 = vector.extract_strided_slice %136 {offsets = [0, 128], sizes = [32, 128], strides = [1, 1]} : vector<32x256xf32> to vector<32x128xf32>
    %c1_186 = arith.constant 1 : index
    %c1_187 = arith.constant 1 : index
    %c0_188 = arith.constant 0 : index
    %c0_189 = arith.constant 0 : index
    %142 = vector.load %arg10[%c1_186, %c1_187, %c0_188, %c0_189] : memref<2x4x32x128xf32, #tpu.memory_space<vmem>>, vector<1x1x32x128xf32>
    %143 = vector.shape_cast %142 : vector<1x1x32x128xf32> to vector<32x128xf32>
    %144 = vector.shape_cast %141 : vector<32x128xf32> to vector<1x1x32x128xf32>
    tpu.vector_store %arg10[%c1_186, %c1_187, %c0_188, %c0_189], %144 {strides = array<i32>} : memref<2x4x32x128xf32, #tpu.memory_space<vmem>>, vector<1x1x32x128xf32>,
    %145 = arith.truncf %136 : vector<32x256xf32> to vector<32x256xbf16>
    %c0_190 = arith.constant 0 : index
    %c0_191 = arith.constant 0 : index
    %146 = vector.load %arg12[%c0_190, %c0_191] : memref<96x256xbf16, #tpu.memory_space<vmem>>, vector<64x128xbf16>
    %c0_192 = arith.constant 0 : index
    %c2_193 = arith.constant 2 : index
    %c0_194 = arith.constant 0 : index
    %c0_195 = arith.constant 0 : index
    %c0_196 = arith.constant 0 : index
    %147 = vector.load %arg2[%c0_192, %c2_193, %c0_194, %c0_195, %c0_196] : memref<2x4x1x128x128xbf16, #tpu.memory_space<vmem>>, vector<1x1x1x128x128xbf16>
    %148 = vector.shape_cast %147 : vector<1x1x1x128x128xbf16> to vector<128x128xbf16>
    %cst_197 = arith.constant dense<0.000000e+00> : vector<64x128xf32>
    %149 = tpu.matmul %146, %148, %cst_197 {dimension_numbers = #tpu.dot_dimension_numbers<[1], [0], [0], [1], [0, 0, 1, 1], [], []>} : vector<64x128xbf16>, vector<128x128xbf16>, vector<64x128xf32> -> vector<64x128xf32>
    %c0_198 = arith.constant 0 : index
    %c128_199 = arith.constant 128 : index
    %150 = vector.load %arg12[%c0_198, %c128_199] : memref<96x256xbf16, #tpu.memory_space<vmem>>, vector<64x128xbf16>
    %c1_200 = arith.constant 1 : index
    %c2_201 = arith.constant 2 : index
    %c0_202 = arith.constant 0 : index
    %c0_203 = arith.constant 0 : index
    %c0_204 = arith.constant 0 : index
    %151 = vector.load %arg2[%c1_200, %c2_201, %c0_202, %c0_203, %c0_204] : memref<2x4x1x128x128xbf16, #tpu.memory_space<vmem>>, vector<1x1x1x128x128xbf16>
    %152 = vector.shape_cast %151 : vector<1x1x1x128x128xbf16> to vector<128x128xbf16>
    %cst_205 = arith.constant dense<0.000000e+00> : vector<64x128xf32>
    %153 = tpu.matmul %150, %152, %cst_205 {dimension_numbers = #tpu.dot_dimension_numbers<[1], [0], [0], [1], [0, 0, 1, 1], [], []>} : vector<64x128xbf16>, vector<128x128xbf16>, vector<64x128xf32> -> vector<64x128xf32>
    %154 = tpu.concatenate %149, %153 in 1 : vector<64x128xf32>, vector<64x128xf32> -> vector<64x256xf32>
    %155 = arith.truncf %154 : vector<64x256xf32> to vector<64x256xbf16>
    %c32_206 = arith.constant 32 : index
    %c0_207 = arith.constant 0 : index
    %156 = vector.load %arg12[%c32_206, %c0_207] : memref<96x256xbf16, #tpu.memory_space<vmem>>, vector<64x256xbf16>
    tpu.vector_store %arg12[%c32_206, %c0_207], %155 {strides = array<i32>} : memref<96x256xbf16, #tpu.memory_space<vmem>>, vector<64x256xbf16>,
    %cst_208 = arith.constant dense<0.000000e+00> : vector<32x256xf32>
    %157 = tpu.matmul %5, %145, %cst_208 {dimension_numbers = #tpu.dot_dimension_numbers<[1], [0], [0], [1], [0, 0, 1, 1], [], []>} : vector<32x32xbf16>, vector<32x256xbf16>, vector<32x256xf32> -> vector<32x256xf32>
    %cst_209 = arith.constant dense<0.000000e+00> : vector<32x256xf32>
    %158 = tpu.matmul %6, %155, %cst_209 {dimension_numbers = #tpu.dot_dimension_numbers<[1], [0], [0], [1], [0, 0, 1, 1], [], []>} : vector<32x64xbf16>, vector<64x256xbf16>, vector<32x256xf32> -> vector<32x256xf32>
    %159 = arith.addf %157, %158 : vector<32x256xf32>
    %c0_210 = arith.constant 0 : index
    %c0_211 = arith.constant 0 : index
    %160 = vector.load %arg12[%c0_210, %c0_211] : memref<96x256xbf16, #tpu.memory_space<vmem>>, vector<32x256xbf16>
    tpu.vector_store %arg12[%c0_210, %c0_211], %145 {strides = array<i32>} : memref<96x256xbf16, #tpu.memory_space<vmem>>, vector<32x256xbf16>,
    %c2_212 = arith.constant 2 : index
    %c0_213 = arith.constant 0 : index
    %c0_214 = arith.constant 0 : index
    %161 = vector.load %arg13[%c2_212, %c0_213, %c0_214] : memref<4x32x256xf32, #tpu.memory_space<vmem>>, vector<1x32x256xf32>
    %162 = vector.shape_cast %161 : vector<1x32x256xf32> to vector<32x256xf32>
    %163 = arith.addf %159, %162 : vector<32x256xf32>
    %164 = math.tanh %163 : vector<32x256xf32>
    %165 = vector.extract_strided_slice %164 {offsets = [0, 0], sizes = [32, 128], strides = [1, 1]} : vector<32x256xf32> to vector<32x128xf32>
    %c0_215 = arith.constant 0 : index
    %c2_216 = arith.constant 2 : index
    %c0_217 = arith.constant 0 : index
    %c0_218 = arith.constant 0 : index
    %166 = vector.load %arg10[%c0_215, %c2_216, %c0_217, %c0_218] : memref<2x4x32x128xf32, #tpu.memory_space<vmem>>, vector<1x1x32x128xf32>
    %167 = vector.shape_cast %166 : vector<1x1x32x128xf32> to vector<32x128xf32>
    %168 = vector.shape_cast %165 : vector<32x128xf32> to vector<1x1x32x128xf32>
    tpu.vector_store %arg10[%c0_215, %c2_216, %c0_217, %c0_218], %168 {strides = array<i32>} : memref<2x4x32x128xf32, #tpu.memory_space<vmem>>, vector<1x1x32x128xf32>,
    %169 = vector.extract_strided_slice %164 {offsets = [0, 128], sizes = [32, 128], strides = [1, 1]} : vector<32x256xf32> to vector<32x128xf32>
    %c1_219 = arith.constant 1 : index
    %c2_220 = arith.constant 2 : index
    %c0_221 = arith.constant 0 : index
    %c0_222 = arith.constant 0 : index
    %170 = vector.load %arg10[%c1_219, %c2_220, %c0_221, %c0_222] : memref<2x4x32x128xf32, #tpu.memory_space<vmem>>, vector<1x1x32x128xf32>
    %171 = vector.shape_cast %170 : vector<1x1x32x128xf32> to vector<32x128xf32>
    %172 = vector.shape_cast %169 : vector<32x128xf32> to vector<1x1x32x128xf32>
    tpu.vector_store %arg10[%c1_219, %c2_220, %c0_221, %c0_222], %172 {strides = array<i32>} : memref<2x4x32x128xf32, #tpu.memory_space<vmem>>, vector<1x1x32x128xf32>,
    %173 = arith.truncf %164 : vector<32x256xf32> to vector<32x256xbf16>
    %c0_223 = arith.constant 0 : index
    %c0_224 = arith.constant 0 : index
    %174 = vector.load %arg12[%c0_223, %c0_224] : memref<96x256xbf16, #tpu.memory_space<vmem>>, vector<64x128xbf16>
    %c0_225 = arith.constant 0 : index
    %c3_226 = arith.constant 3 : index
    %c0_227 = arith.constant 0 : index
    %c0_228 = arith.constant 0 : index
    %c0_229 = arith.constant 0 : index
    %175 = vector.load %arg2[%c0_225, %c3_226, %c0_227, %c0_228, %c0_229] : memref<2x4x1x128x128xbf16, #tpu.memory_space<vmem>>, vector<1x1x1x128x128xbf16>
    %176 = vector.shape_cast %175 : vector<1x1x1x128x128xbf16> to vector<128x128xbf16>
    %cst_230 = arith.constant dense<0.000000e+00> : vector<64x128xf32>
    %177 = tpu.matmul %174, %176, %cst_230 {dimension_numbers = #tpu.dot_dimension_numbers<[1], [0], [0], [1], [0, 0, 1, 1], [], []>} : vector<64x128xbf16>, vector<128x128xbf16>, vector<64x128xf32> -> vector<64x128xf32>
    %c0_231 = arith.constant 0 : index
    %c128_232 = arith.constant 128 : index
    %178 = vector.load %arg12[%c0_231, %c128_232] : memref<96x256xbf16, #tpu.memory_space<vmem>>, vector<64x128xbf16>
    %c1_233 = arith.constant 1 : index
    %c3_234 = arith.constant 3 : index
    %c0_235 = arith.constant 0 : index
    %c0_236 = arith.constant 0 : index
    %c0_237 = arith.constant 0 : index
    %179 = vector.load %arg2[%c1_233, %c3_234, %c0_235, %c0_236, %c0_237] : memref<2x4x1x128x128xbf16, #tpu.memory_space<vmem>>, vector<1x1x1x128x128xbf16>
    %180 = vector.shape_cast %179 : vector<1x1x1x128x128xbf16> to vector<128x128xbf16>
    %cst_238 = arith.constant dense<0.000000e+00> : vector<64x128xf32>
    %181 = tpu.matmul %178, %180, %cst_238 {dimension_numbers = #tpu.dot_dimension_numbers<[1], [0], [0], [1], [0, 0, 1, 1], [], []>} : vector<64x128xbf16>, vector<128x128xbf16>, vector<64x128xf32> -> vector<64x128xf32>
    %182 = tpu.concatenate %177, %181 in 1 : vector<64x128xf32>, vector<64x128xf32> -> vector<64x256xf32>
    %183 = arith.truncf %182 : vector<64x256xf32> to vector<64x256xbf16>
    %c32_239 = arith.constant 32 : index
    %c0_240 = arith.constant 0 : index
    %184 = vector.load %arg12[%c32_239, %c0_240] : memref<96x256xbf16, #tpu.memory_space<vmem>>, vector<64x256xbf16>
    tpu.vector_store %arg12[%c32_239, %c0_240], %183 {strides = array<i32>} : memref<96x256xbf16, #tpu.memory_space<vmem>>, vector<64x256xbf16>,
    %cst_241 = arith.constant dense<0.000000e+00> : vector<32x256xf32>
    %185 = tpu.matmul %5, %173, %cst_241 {dimension_numbers = #tpu.dot_dimension_numbers<[1], [0], [0], [1], [0, 0, 1, 1], [], []>} : vector<32x32xbf16>, vector<32x256xbf16>, vector<32x256xf32> -> vector<32x256xf32>
    %cst_242 = arith.constant dense<0.000000e+00> : vector<32x256xf32>
    %186 = tpu.matmul %6, %183, %cst_242 {dimension_numbers = #tpu.dot_dimension_numbers<[1], [0], [0], [1], [0, 0, 1, 1], [], []>} : vector<32x64xbf16>, vector<64x256xbf16>, vector<32x256xf32> -> vector<32x256xf32>
    %187 = arith.addf %185, %186 : vector<32x256xf32>
    %c0_243 = arith.constant 0 : index
    %c0_244 = arith.constant 0 : index
    %188 = vector.load %arg12[%c0_243, %c0_244] : memref<96x256xbf16, #tpu.memory_space<vmem>>, vector<32x256xbf16>
    tpu.vector_store %arg12[%c0_243, %c0_244], %173 {strides = array<i32>} : memref<96x256xbf16, #tpu.memory_space<vmem>>, vector<32x256xbf16>,
    %c3_245 = arith.constant 3 : index
    %c0_246 = arith.constant 0 : index
    %c0_247 = arith.constant 0 : index
    %189 = vector.load %arg13[%c3_245, %c0_246, %c0_247] : memref<4x32x256xf32, #tpu.memory_space<vmem>>, vector<1x32x256xf32>
    %190 = vector.shape_cast %189 : vector<1x32x256xf32> to vector<32x256xf32>
    %191 = arith.addf %187, %190 : vector<32x256xf32>
    %192 = math.tanh %191 : vector<32x256xf32>
    %193 = vector.extract_strided_slice %192 {offsets = [0, 0], sizes = [32, 128], strides = [1, 1]} : vector<32x256xf32> to vector<32x128xf32>
    %c0_248 = arith.constant 0 : index
    %c3_249 = arith.constant 3 : index
    %c0_250 = arith.constant 0 : index
    %c0_251 = arith.constant 0 : index
    %194 = vector.load %arg10[%c0_248, %c3_249, %c0_250, %c0_251] : memref<2x4x32x128xf32, #tpu.memory_space<vmem>>, vector<1x1x32x128xf32>
    %195 = vector.shape_cast %194 : vector<1x1x32x128xf32> to vector<32x128xf32>
    %196 = vector.shape_cast %193 : vector<32x128xf32> to vector<1x1x32x128xf32>
    tpu.vector_store %arg10[%c0_248, %c3_249, %c0_250, %c0_251], %196 {strides = array<i32>} : memref<2x4x32x128xf32, #tpu.memory_space<vmem>>, vector<1x1x32x128xf32>,
    %197 = vector.extract_strided_slice %192 {offsets = [0, 128], sizes = [32, 128], strides = [1, 1]} : vector<32x256xf32> to vector<32x128xf32>
    %c1_252 = arith.constant 1 : index
    %c3_253 = arith.constant 3 : index
    %c0_254 = arith.constant 0 : index
    %c0_255 = arith.constant 0 : index
    %198 = vector.load %arg10[%c1_252, %c3_253, %c0_254, %c0_255] : memref<2x4x32x128xf32, #tpu.memory_space<vmem>>, vector<1x1x32x128xf32>
    %199 = vector.shape_cast %198 : vector<1x1x32x128xf32> to vector<32x128xf32>
    %200 = vector.shape_cast %197 : vector<32x128xf32> to vector<1x1x32x128xf32>
    tpu.vector_store %arg10[%c1_252, %c3_253, %c0_254, %c0_255], %200 {strides = array<i32>} : memref<2x4x32x128xf32, #tpu.memory_space<vmem>>, vector<1x1x32x128xf32>,
    %c0_256 = arith.constant 0 : index
    %c0_257 = arith.constant 0 : index
    %201 = vector.load %arg14[%c0_256, %c0_257] : memref<32x256xf32, #tpu.memory_space<vmem>>, vector<32x256xf32>
    tpu.vector_store %arg14[%c0_256, %c0_257], %192 {strides = array<i32>} : memref<32x256xf32, #tpu.memory_space<vmem>>, vector<32x256xf32>,
    return
  }
  func.func @transform_0(%arg0: i32, %arg1: i32) -> (i32, i32, i32, i32, i32) {
    %c0_i32 = arith.constant 0 : i32
    %c0_i32_0 = arith.constant 0 : i32
    %c0_i32_1 = arith.constant 0 : i32
    %c0_i32_2 = arith.constant 0 : i32
    return %arg0, %arg1, %c0_i32, %c0_i32_0, %c0_i32_1 : i32, i32, i32, i32, i32
  }
  func.func @transform_1(%arg0: i32, %arg1: i32) -> (i32, i32, i32, i32) {
    %c0_i32 = arith.constant 0 : i32
    %c0_i32_0 = arith.constant 0 : i32
    %c0_i32_1 = arith.constant 0 : i32
    return %arg0, %arg1, %c0_i32, %c0_i32_0 : i32, i32, i32, i32
  }
  func.func @transform_2(%arg0: i32, %arg1: i32) -> (i32, i32, i32) {
    %c0_i32 = arith.constant 0 : i32
    %c0_i32_0 = arith.constant 0 : i32
    %c0_i32_1 = arith.constant 0 : i32
    return %arg0, %c0_i32, %c0_i32_0 : i32, i32, i32
  }
  func.func @transform_3(%arg0: i32, %arg1: i32) -> (i32, i32) {
    %c0_i32 = arith.constant 0 : i32
    %c0_i32_0 = arith.constant 0 : i32
    %c0_i32_1 = arith.constant 0 : i32
    return %c0_i32, %c0_i32_0 : i32, i32
  }
  func.func @transform_4(%arg0: i32, %arg1: i32) -> (i32, i32) {
    %c0_i32 = arith.constant 0 : i32
    %c0_i32_0 = arith.constant 0 : i32
    %c0_i32_1 = arith.constant 0 : i32
    return %c0_i32, %c0_i32_0 : i32, i32
  }
  func.func @transform_5(%arg0: i32, %arg1: i32) -> (i32, i32) {
    %c0_i32 = arith.constant 0 : i32
    %c0_i32_0 = arith.constant 0 : i32
    %c0_i32_1 = arith.constant 0 : i32
    return %c0_i32, %c0_i32_0 : i32, i32
  }
  func.func @transform_6(%arg0: i32, %arg1: i32) -> (i32, i32) {
    %c0_i32 = arith.constant 0 : i32
    %c0_i32_0 = arith.constant 0 : i32
    %c0_i32_1 = arith.constant 0 : i32
    return %c0_i32, %c0_i32_0 : i32, i32
  }
  func.func @transform_7(%arg0: i32, %arg1: i32) -> (i32, i32) {
    %c0_i32 = arith.constant 0 : i32
    %c0_i32_0 = arith.constant 0 : i32
    %c0_i32_1 = arith.constant 0 : i32
    return %c0_i32, %c0_i32_0 : i32, i32
  }
  func.func @transform_8(%arg0: i32, %arg1: i32) -> (i32, i32, i32, i32) {
    %c0_i32 = arith.constant 0 : i32
    %c0_i32_0 = arith.constant 0 : i32
    %c0_i32_1 = arith.constant 0 : i32
    return %arg0, %arg1, %c0_i32, %c0_i32_0 : i32, i32, i32, i32
  }
}

</mosaic_0001>

<llo_original>
// kernel: tpu_custom_call.1
$region0: #{tpu_custom_call.1}
  #allocation0 [shape = 'u32[]', space=smem, size = 0x4, offset = 0x4, fixed_abs, tag = 'smem constant byte address 0x4 - core index']
  #allocation1 [shape = 'u32[144,128]{1,0:T(1,128)}', space=vmem, size = 0x12000, scoped, tag = 'internal scratch']
  #allocation2 [shape = 'bf16[48,256]{1,0:T(16,128)(2,1)}', space=vmem, size = 0x6000, scoped, tag = 'scratch operand']
  #allocation3 [shape = 'bf16[96,256]{1,0:T(16,128)(2,1)}', space=vmem, size = 0xc000, scoped, tag = 'scratch operand']
  #allocation4 [shape = 'f32[4,32,256]{2,1,0:T(8,128)}', space=vmem, size = 0x20000, scoped, tag = 'scratch operand']
  #allocation5 [shape = 'f32[32,256]{1,0:T(8,128)}', space=vmem, size = 0x8000, scoped, tag = 'scratch operand']
  #allocation17 [shape = 's32[]', space=sflag, size = 0x4, offset = 0, fixed_abs, tag = 'sflag constant byte address 0x0 - dummy sync flag']
  #allocation19 [shape = 's32[]', space=sflag, size = 0x4, offset = 0, fixed_abs, tag = 'sflag constant byte address 0x0 - dummy sync flag']
  %s0 = inlined_call_operand.hbm [shape: bf16[2,8,1,128,128], index: 0, kind: input, shape index: {}]
  %s1 = inlined_call_operand.vmem [shape: bf16[2,8,4,128], index: 1, kind: input, shape index: {}]
  %s2 = inlined_call_operand.hbm [shape: f32[2,32,128], index: 2, kind: input, shape index: {}]
  %s3 = inlined_call_operand.hbm [shape: bf16[32,48], index: 3, kind: input, shape index: {}]
  %s4 = inlined_call_operand.vmem [shape: bf16[32,96], index: 4, kind: input, shape index: {}]
  %s5 = inlined_call_operand.hbm [shape: bf16[32,32], index: 5, kind: input, shape index: {}]
  %s6 = inlined_call_operand.hbm [shape: bf16[32,64], index: 6, kind: input, shape index: {}]
  %s7 = inlined_call_operand.vmem [shape: f32[32,1], index: 7, kind: input, shape index: {}]
  %s8 = inlined_call_operand.hbm [shape: f32[2,8,32,128], index: 8, kind: output, shape index: {}]
  %s9 = sld [smem:[#allocation0]]
  $region138: #{tpu_custom_call.1} parent=0
    _
  %s11 = ssub.s32 1, %s9
  %s12 = scalar_select 0, %s11, %s9
  $region1: #{tpu_custom_call.1} parent=0
    #allocation6 [shape = 'u8[524288]{0}', space=vmem, size = 0x80000, scoped, tag = 'input window, operand 0']
    #allocation7 [shape = 's32[2]{0}', space=sflag, size = 0x8, scoped, tag = 'scoped memory for tpu_custom_call.1']
    #allocation8 [shape = 's32[2]{0}', space=sflag, size = 0x8, scoped, tag = 'scoped memory for tpu_custom_call.1']
    #allocation9 [shape = 'u8[16384]{0}', space=vmem, size = 0x4000, scoped, tag = 'input window, operand 1']
    #allocation10 [shape = 'u8[32768]{0}', space=vmem, size = 0x8000, scoped, tag = 'input window, operand 2, single buffered']
    #allocation11 [shape = 's32[1]{0}', space=sflag, size = 0x4, scoped, tag = 'scoped memory for tpu_custom_call.1']
    #allocation12 [shape = 'u8[8192]{0}', space=vmem, size = 0x2000, scoped, tag = 'input window, operand 3, single buffered']
    #allocation13 [shape = 'u8[8192]{0}', space=vmem, size = 0x2000, scoped, tag = 'input window, operand 5, single buffered']
    #allocation14 [shape = 's32[1]{0}', space=sflag, size = 0x4, scoped, tag = 'scoped memory for tpu_custom_call.1']
    #allocation15 [shape = 'u8[8192]{0}', space=vmem, size = 0x2000, scoped, tag = 'input window, operand 6, single buffered']
    #allocation16 [shape = 'u8[262144]{0}', space=vmem, size = 0x40000, scoped, tag = 'output window, operand 0']
    %13 = vsyncpa [#allocation7], 0
    %s14 = scalar_lea.sflag [#allocation7], 1
    %15 = vsyncpa %s14, 0
    %16 = vsyncpa [#allocation11], 0
    %17 = vsyncpa [#allocation14], 0
    %18 = vsyncpa [#allocation8], 0
    %s19 = scalar_lea.sflag [#allocation8], 1
    %20 = vsyncpa %s19, 0
    loop: start=0, step=1, limit=4
    $region2: #{tpu_custom_call.1} parent=1 // loop_pre_header
      _
    $region3: #{tpu_custom_call.1} parent=1 // loop_header
      %s22 = sphi 0, %s26
      %p23 = scmp.ge.s32.totalorder %s22, 4
      %s29 = sphi 0, %s41
      %s30 = sphi 0, %s37
      %s31 = sphi 0, %s29
      %s32 = sphi 0, %s30
      %s33 = sphi 0, %s31
      %s34 = sphi 0, %s32
      %s46 = sphi 0, %s48
      %s49 = sphi 0, %s46
      %s50 = sphi 0, %s49
      %s66 = sphi 0, %s50
      %s74 = sphi 0, %s76
      %s77 = sphi 0, %s74
      %s78 = sphi 0, %s77
      %s94 = sphi 0, %s78
      %s100 = sphi 0, %s102
      %s103 = sphi 0, %s100
      %s104 = sphi 0, %s103
      %s120 = sphi 0, %s104
      %s124 = sphi 0, %s124
      %s126 = sphi 0, %s124
      %s127 = sphi 0, %s126
      %s141 = sphi 0, %s127
      %s145 = sphi 0, %s145
      %s147 = sphi 0, %s145
      %s148 = sphi 0, %s147
      %s162 = sphi 0, %s148
      %s166 = sphi 0, %s166
      %s168 = sphi 0, %s166
      %s169 = sphi 0, %s168
      %s183 = sphi 0, %s169
      %s187 = sphi 0, %s187
      %s189 = sphi 0, %s187
      %s190 = sphi 0, %s189
      %s204 = sphi 0, %s190
      %s208 = sphi 0, %s208
      %s210 = sphi 0, %s208
      %s211 = sphi 0, %s210
      %s225 = sphi 0, %s211
      %s233 = sphi 0, %s235
      %s236 = sphi 0, %s233
      %s237 = sphi 0, %s236
      %s253 = sphi 0, %s237
    $region4: #{tpu_custom_call.1} parent=1 // loop_header_branch
      %25 = sbr.rel (%p23) target = $region8
    $region5: #{tpu_custom_call.1} parent=1 // loop_body
      %s27 = ssub.s32 %s22, 1
      %s28 = ssub.s32 %s22, 2
      %s35 = sadd.s32 1, %s30
      %p36 = scmp.ge.s32.totalorder %s35, 2
      %s37 = scalar_select %p36, 0, %s35
      %s38 = sadd.s32 1, %s29
      %s39 = scalar_select %p36, %s38, %s29
      %p40 = scmp.ge.s32.totalorder %s39, 1
      %s41 = scalar_select %p40, 0, %s39
      %s42 = ssub.s32 %s29, %s41
      %s43 = ssub.s32 %s30, %s37
      %s44 = sor.u32 %s42, %s43
      %p45 = scmp.eq.s32.totalorder %s44, 0
      %s47 = sadd.s32 %s46, 1
      %s48 = scalar_select %p45, %s46, %s47
      %p51 = pneg %p45
      %p52 = scmp.eq.s32.totalorder %s22, 1
      %p53 = por %p51, %p52
      %p54 = scmp.ne.s32.totalorder %s46, %s49
      %p55 = scmp.eq.s32.totalorder %s22, 0
      %p56 = por %p54, %p55
      %p57 = scmp.ne.s32.totalorder %s46, %s49
      %p58 = scmp.eq.s32.totalorder %s27, 1
      %p59 = por %p57, %p58
      %p60 = scmp.ne.s32.totalorder %s49, %s50
      %p61 = scmp.eq.s32.totalorder %s27, 0
      %p62 = por %p60, %p61
      %p63 = scmp.ne.s32.totalorder %s49, %s50
      %p64 = scmp.eq.s32.totalorder %s28, 1
      %p65 = por %p63, %p64
      %p67 = scmp.ne.s32.totalorder %s50, %s66
      %p68 = scmp.eq.s32.totalorder %s28, 0
      %p69 = por %p67, %p68
      %s70 = ssub.s32 %s29, %s41
      %s71 = ssub.s32 %s30, %s37
      %s72 = sor.u32 %s70, %s71
      %p73 = scmp.eq.s32.totalorder %s72, 0
      %s75 = sadd.s32 %s74, 1
      %s76 = scalar_select %p73, %s74, %s75
      %p79 = pneg %p73
      %p80 = scmp.eq.s32.totalorder %s22, 1
      %p81 = por %p79, %p80
      %p82 = scmp.ne.s32.totalorder %s74, %s77
      %p83 = scmp.eq.s32.totalorder %s22, 0
      %p84 = por %p82, %p83
      %p85 = scmp.ne.s32.totalorder %s74, %s77
      %p86 = scmp.eq.s32.totalorder %s27, 1
      %p87 = por %p85, %p86
      %p88 = scmp.ne.s32.totalorder %s77, %s78
      %p89 = scmp.eq.s32.totalorder %s27, 0
      %p90 = por %p88, %p89
      %p91 = scmp.ne.s32.totalorder %s77, %s78
      %p92 = scmp.eq.s32.totalorder %s28, 1
      %p93 = por %p91, %p92
      %p95 = scmp.ne.s32.totalorder %s78, %s94
      %p96 = scmp.eq.s32.totalorder %s28, 0
      %p97 = por %p95, %p96
      %s98 = ssub.s32 %s29, %s41
      %p99 = scmp.eq.s32.totalorder %s98, 0
      %s101 = sadd.s32 %s100, 1
      %s102 = scalar_select %p99, %s100, %s101
      %p105 = pneg %p99
      %p106 = scmp.eq.s32.totalorder %s22, 1
      %p107 = por %p105, %p106
      %p108 = scmp.ne.s32.totalorder %s100, %s103
      %p109 = scmp.eq.s32.totalorder %s22, 0
      %p110 = por %p108, %p109
      %p111 = scmp.ne.s32.totalorder %s100, %s103
      %p112 = scmp.eq.s32.totalorder %s27, 1
      %p113 = por %p111, %p112
      %p114 = scmp.ne.s32.totalorder %s103, %s104
      %p115 = scmp.eq.s32.totalorder %s27, 0
      %p116 = por %p114, %p115
      %p117 = scmp.ne.s32.totalorder %s103, %s104
      %p118 = scmp.eq.s32.totalorder %s28, 1
      %p119 = por %p117, %p118
      %p121 = scmp.ne.s32.totalorder %s104, %s120
      %p122 = scmp.eq.s32.totalorder %s28, 0
      %p123 = por %p121, %p122
      %s125 = sadd.s32 %s124, 1
      %p128 = scmp.eq.s32.totalorder %s22, 1
      %p129 = scmp.ne.s32.totalorder %s124, %s126
      %p130 = scmp.eq.s32.totalorder %s22, 0
      %p131 = por %p129, %p130
      %p132 = scmp.ne.s32.totalorder %s124, %s126
      %p133 = scmp.eq.s32.totalorder %s27, 1
      %p134 = por %p132, %p133
      %p135 = scmp.ne.s32.totalorder %s126, %s127
      %p136 = scmp.eq.s32.totalorder %s27, 0
      %p137 = por %p135, %p136
      %p138 = scmp.ne.s32.totalorder %s126, %s127
      %p139 = scmp.eq.s32.totalorder %s28, 1
      %p140 = por %p138, %p139
      %p142 = scmp.ne.s32.totalorder %s127, %s141
      %p143 = scmp.eq.s32.totalorder %s28, 0
      %p144 = por %p142, %p143
      %s146 = sadd.s32 %s145, 1
      %p149 = scmp.eq.s32.totalorder %s22, 1
      %p150 = scmp.ne.s32.totalorder %s145, %s147
      %p151 = scmp.eq.s32.totalorder %s22, 0
      %p152 = por %p150, %p151
      %p153 = scmp.ne.s32.totalorder %s145, %s147
      %p154 = scmp.eq.s32.totalorder %s27, 1
      %p155 = por %p153, %p154
      %p156 = scmp.ne.s32.totalorder %s147, %s148
      %p157 = scmp.eq.s32.totalorder %s27, 0
      %p158 = por %p156, %p157
      %p159 = scmp.ne.s32.totalorder %s147, %s148
      %p160 = scmp.eq.s32.totalorder %s28, 1
      %p161 = por %p159, %p160
      %p163 = scmp.ne.s32.totalorder %s148, %s162
      %p164 = scmp.eq.s32.totalorder %s28, 0
      %p165 = por %p163, %p164
      %s167 = sadd.s32 %s166, 1
      %p170 = scmp.eq.s32.totalorder %s22, 1
      %p171 = scmp.ne.s32.totalorder %s166, %s168
      %p172 = scmp.eq.s32.totalorder %s22, 0
      %p173 = por %p171, %p172
      %p174 = scmp.ne.s32.totalorder %s166, %s168
      %p175 = scmp.eq.s32.totalorder %s27, 1
      %p176 = por %p174, %p175
      %p177 = scmp.ne.s32.totalorder %s168, %s169
      %p178 = scmp.eq.s32.totalorder %s27, 0
      %p179 = por %p177, %p178
      %p180 = scmp.ne.s32.totalorder %s168, %s169
      %p181 = scmp.eq.s32.totalorder %s28, 1
      %p182 = por %p180, %p181
      %p184 = scmp.ne.s32.totalorder %s169, %s183
      %p185 = scmp.eq.s32.totalorder %s28, 0
      %p186 = por %p184, %p185
      %s188 = sadd.s32 %s187, 1
      %p191 = scmp.eq.s32.totalorder %s22, 1
      %p192 = scmp.ne.s32.totalorder %s187, %s189
      %p193 = scmp.eq.s32.totalorder %s22, 0
      %p194 = por %p192, %p193
      %p195 = scmp.ne.s32.totalorder %s187, %s189
      %p196 = scmp.eq.s32.totalorder %s27, 1
      %p197 = por %p195, %p196
      %p198 = scmp.ne.s32.totalorder %s189, %s190
      %p199 = scmp.eq.s32.totalorder %s27, 0
      %p200 = por %p198, %p199
      %p201 = scmp.ne.s32.totalorder %s189, %s190
      %p202 = scmp.eq.s32.totalorder %s28, 1
      %p203 = por %p201, %p202
      %p205 = scmp.ne.s32.totalorder %s190, %s204
      %p206 = scmp.eq.s32.totalorder %s28, 0
      %p207 = por %p205, %p206
      %s209 = sadd.s32 %s208, 1
      %p212 = scmp.eq.s32.totalorder %s22, 1
      %p213 = scmp.ne.s32.totalorder %s208, %s210
      %p214 = scmp.eq.s32.totalorder %s22, 0
      %p215 = por %p213, %p214
      %p216 = scmp.ne.s32.totalorder %s208, %s210
      %p217 = scmp.eq.s32.totalorder %s27, 1
      %p218 = por %p216, %p217
      %p219 = scmp.ne.s32.totalorder %s210, %s211
      %p220 = scmp.eq.s32.totalorder %s27, 0
      %p221 = por %p219, %p220
      %p222 = scmp.ne.s32.totalorder %s210, %s211
      %p223 = scmp.eq.s32.totalorder %s28, 1
      %p224 = por %p222, %p223
      %p226 = scmp.ne.s32.totalorder %s211, %s225
      %p227 = scmp.eq.s32.totalorder %s28, 0
      %p228 = por %p226, %p227
      %s229 = ssub.s32 %s29, %s41
      %s230 = ssub.s32 %s30, %s37
      %s231 = sor.u32 %s229, %s230
      %p232 = scmp.eq.s32.totalorder %s231, 0
      %s234 = sadd.s32 %s233, 1
      %s235 = scalar_select %p232, %s233, %s234
      %p238 = pneg %p232
      %p239 = scmp.eq.s32.totalorder %s22, 1
      %p240 = por %p238, %p239
      %p241 = scmp.ne.s32.totalorder %s233, %s236
      %p242 = scmp.eq.s32.totalorder %s22, 0
      %p243 = por %p241, %p242
      %p244 = scmp.ne.s32.totalorder %s233, %s236
      %p245 = scmp.eq.s32.totalorder %s27, 1
      %p246 = por %p244, %p245
      %p247 = scmp.ne.s32.totalorder %s236, %s237
      %p248 = scmp.eq.s32.totalorder %s27, 0
      %p249 = por %p247, %p248
      %p250 = scmp.ne.s32.totalorder %s236, %s237
      %p251 = scmp.eq.s32.totalorder %s28, 1
      %p252 = por %p250, %p251
      %p254 = scmp.ne.s32.totalorder %s237, %s253
      %p255 = scmp.eq.s32.totalorder %s28, 0
      %p256 = por %p254, %p255
      %p257 = scmp.le.s32.totalorder 1, %s22
      %p258 = scmp.lt.s32.totalorder %s22, 3
      %p259 = pnand %p257, %p258
      %p260 = pneg %p259
      // Predicated region
      $region9: #{tpu_custom_call.1} parent=5 // pred_check
        _
      $region10: #{tpu_custom_call.1} parent=5 // pred_check_branch
        %262 = sbr.rel (%p259) target = $region12
      $region11: #{tpu_custom_call.1} parent=5 // pred_region
        %s263 = ssub.s32 %s22, 1
        // Predicated region
        $region13: #{tpu_custom_call.1} parent=11 // pred_check
          %p264 = pneg %p116
        $region14: #{tpu_custom_call.1} parent=11 // pred_check_branch
          %266 = sbr.rel (%p264) target = $region16
        $region15: #{tpu_custom_call.1} parent=11 // pred_region
          %s267 = smul.u32 2, %s31
          %s269 = ssub.s32 1024, 1024
          %270 = vsyncadd [#allocation11], %s269
          %s271 = smul.addr %s267, 4
          %s272 = smul.addr %s271, 128
          %s273 = scalar_lea.hbm %s2, %s272
          %s274 = sshll.u32 [#allocation10], 4
          %s275 = int_to_ptr.vmem [resolvable:$true] %s274
          %280 = dma.hbm_to_vmem [thread:$0]  %s273, 1024, %s275, [#allocation11], 128, 128, 8
        $region16: #{tpu_custom_call.1} parent=11 // pred_fallthru
          _
        // Predicated region
        $region17: #{tpu_custom_call.1} parent=11 // pred_check
          %p281 = pneg %p137
        $region18: #{tpu_custom_call.1} parent=11 // pred_check_branch
          %283 = sbr.rel (%p281) target = $region20
        $region19: #{tpu_custom_call.1} parent=11 // pred_region
          %s285 = ssub.s32 256, 256
          %286 = vsyncadd [#allocation11], %s285
          %s287 = sshll.u32 [#allocation12], 4
          %s288 = int_to_ptr.vmem [resolvable:$true] %s287
          %293 = dma.hbm_to_vmem [thread:$0]  %s3, 256, %s288, [#allocation11], 64, 64, 4
        $region20: #{tpu_custom_call.1} parent=11 // pred_fallthru
          _
        // Predicated region
        $region21: #{tpu_custom_call.1} parent=11 // pred_check
          %p294 = pneg %p158
        $region22: #{tpu_custom_call.1} parent=11 // pred_check_branch
          %296 = sbr.rel (%p294) target = $region24
        $region23: #{tpu_custom_call.1} parent=11 // pred_region
          _
        $region24: #{tpu_custom_call.1} parent=11 // pred_fallthru
          _
        // Predicated region
        $region25: #{tpu_custom_call.1} parent=11 // pred_check
          %p297 = pneg %p179
        $region26: #{tpu_custom_call.1} parent=11 // pred_check_branch
          %299 = sbr.rel (%p297) target = $region28
        $region27: #{tpu_custom_call.1} parent=11 // pred_region
          %s301 = ssub.s32 256, 256
          %302 = vsyncadd [#allocation14], %s301
          %s303 = sshll.u32 [#allocation13], 4
          %s304 = int_to_ptr.vmem [resolvable:$true] %s303
          %309 = dma.hbm_to_vmem [thread:$0]  %s5, 256, %s304, [#allocation14], 64, 64, 4
        $region28: #{tpu_custom_call.1} parent=11 // pred_fallthru
          _
        // Predicated region
        $region29: #{tpu_custom_call.1} parent=11 // pred_check
          %p310 = pneg %p200
        $region30: #{tpu_custom_call.1} parent=11 // pred_check_branch
          %312 = sbr.rel (%p310) target = $region32
        $region31: #{tpu_custom_call.1} parent=11 // pred_region
          %s314 = ssub.s32 256, 256
          %315 = vsyncadd [#allocation14], %s314
          %s316 = sshll.u32 [#allocation15], 4
          %s317 = int_to_ptr.vmem [resolvable:$true] %s316
          %322 = dma.hbm_to_vmem [thread:$0]  %s6, 256, %s317, [#allocation14], 64, 64, 4
        $region32: #{tpu_custom_call.1} parent=11 // pred_fallthru
          _
        // Predicated region
        $region33: #{tpu_custom_call.1} parent=11 // pred_check
          %p323 = pneg %p221
        $region34: #{tpu_custom_call.1} parent=11 // pred_check_branch
          %325 = sbr.rel (%p323) target = $region36
        $region35: #{tpu_custom_call.1} parent=11 // pred_region
          _
        $region36: #{tpu_custom_call.1} parent=11 // pred_fallthru
          _
      $region12: #{tpu_custom_call.1} parent=5 // pred_fallthru
        _
      %p326 = scmp.lt.s32.totalorder %s22, 2
      // Predicated region
      $region37: #{tpu_custom_call.1} parent=5 // pred_check
        %p327 = pneg %p326
      $region38: #{tpu_custom_call.1} parent=5 // pred_check_branch
        %329 = sbr.rel (%p327) target = $region40
      $region39: #{tpu_custom_call.1} parent=5 // pred_region
        // Predicated region
        $region41: #{tpu_custom_call.1} parent=39 // pred_check
          %p330 = pneg %p56
        $region42: #{tpu_custom_call.1} parent=39 // pred_check_branch
          %332 = sbr.rel (%p330) target = $region44
        $region43: #{tpu_custom_call.1} parent=39 // pred_region
          #allocation18 [shape = 'u32[6]{0}', space=smem, size = 0x18, scoped, tag = 'DMA stride descriptor']
          %s333 = sand.u32 %s46, 1
          %s334 = scalar_lea.sflag [#allocation7], %s333
          %s335 = sand.u32 %s46, 1
          %s336 = smul.addr %s335, 512
          %s337 = scalar_lea.vmem [#allocation6], %s336
          %s338 = smul.u32 2, %s29
          %s339 = smul.u32 4, %s30
          %s341 = ssub.s32 8192, 8192
          %342 = vsyncadd %s334, %s341
          %s343 = smul.addr %s339, 16
          %s344 = smul.addr %s338, 128
          %s345 = sadd.s32 %s343, %s344
          %s346 = smul.addr %s345, 64
          %s347 = scalar_lea.hbm %s0, %s346
          %s349 = sshll.u32 1, 14
          %s350 = sxor.u32 4294967295, %s349
          %s352 = sld [smem:[#allocation0]]
          %s353 = sadd.s32 2, %s352
          %s355 = sshll.u32 7, 26
          %s356 = sxor.u32 4294967295, %s355
          %s357 = sand.u32 0, %s356
          %s358 = sshll.u32 %s353, 26
          %s359 = sor.u32 %s357, %s358
          %s360 = sshll.u32 %s337, 4
          %s361 = int_to_ptr.vmem [resolvable:$true] %s360
          %367 = sst [smem:[#allocation18]] 8192
          %s368 = scalar_lea.smem [#allocation18], 1
          %369 = sst [smem:[%s368]] 4096
          %s370 = scalar_lea.smem [#allocation18], 2
          %371 = sst [smem:[%s370]] 64
          %s372 = scalar_lea.smem [#allocation18], 3
          %373 = sst [smem:[%s372]] 64
          %s374 = scalar_lea.smem [#allocation18], 4
          %375 = sst [smem:[%s374]] 64
          %s376 = scalar_lea.smem [#allocation18], 5
          %377 = sst [smem:[%s376]] 4
          %379 = dma.general %s347, 8192, %s361, %s334, [#allocation17], [#allocation18], %s359, 0
        $region44: #{tpu_custom_call.1} parent=39 // pred_fallthru
          _
        // Predicated region
        $region45: #{tpu_custom_call.1} parent=39 // pred_check
          %p380 = pneg %p84
        $region46: #{tpu_custom_call.1} parent=39 // pred_check_branch
          %382 = sbr.rel (%p380) target = $region48
        $region47: #{tpu_custom_call.1} parent=39 // pred_region
          %s383 = sand.u32 %s74, 1
          %s384 = sand.u32 %s74, 1
          %s385 = smul.addr %s384, 16
          %s386 = scalar_lea.vmem [#allocation9], %s385
          %s387 = smul.u32 2, %s29
          %s388 = smul.u32 4, %s30
          %s389 = smul.addr %s387, 8
          %s390 = sadd.s32 %s388, %s389
          %s391 = smul.addr %s390, 2
          %s392 = scalar_lea.vmem %s1, %s391
          // Predicated region
          $region49: #{tpu_custom_call.1} parent=47 // pred_check
            _
          $region50: #{tpu_custom_call.1} parent=47 // pred_check_branch
            %394 = sbr.rel (0) target = $region52
          $region51: #{tpu_custom_call.1} parent=47 // pred_region
            // Predicated region
            $region53: #{tpu_custom_call.1} parent=51 // pred_check
              _
            $region54: #{tpu_custom_call.1} parent=51 // pred_check_branch
              %396 = sbr.rel target = $region56
            $region55: #{tpu_custom_call.1} parent=51 // pred_region
              // Predicated region
              $region68: #{tpu_custom_call.1} parent=55 // pred_check
                _
              $region69: #{tpu_custom_call.1} parent=55 // pred_check_branch
                %425 = sbr.rel (0) target = $region71
              $region70: #{tpu_custom_call.1} parent=55 // pred_region
                loop: start=0, step=1, limit=1
                $region72: #{tpu_custom_call.1} parent=70 // loop_pre_header
                  _
                $region73: #{tpu_custom_call.1} parent=70 // loop_header
                  %s427 = sphi 0, %s431
                  %p428 = scmp.ge.s32.totalorder %s427, 1
                  %s432 = sphi %s392, %s392
                  %s433 = sphi %s386, %s386
                $region74: #{tpu_custom_call.1} parent=70 // loop_header_branch
                  %430 = sbr.rel (%p428) target = $region78
                $region75: #{tpu_custom_call.1} parent=70 // loop_body
                  _
                $region76: #{tpu_custom_call.1} parent=70 // loop_footer
                  %s431 = sadd.s32 1, %s427
                $region77: #{tpu_custom_call.1} parent=70 // loop_footer_branch
                  %426 = sbr.rel target = $region73
                $region78: #{tpu_custom_call.1} parent=70 // loop_exit
                  _
                loop: start=0, step=1, limit=1
                $region79: #{tpu_custom_call.1} parent=70 // loop_pre_header
                  _
                $region80: #{tpu_custom_call.1} parent=70 // loop_header
                  %s436 = sphi 0, %s440
                  %p437 = scmp.ge.s32.totalorder %s436, 1
                  %s441 = sphi %s392, %s392
                  %s442 = sphi %s386, %s386
                $region81: #{tpu_custom_call.1} parent=70 // loop_header_branch
                  %439 = sbr.rel (%p437) target = $region85
                $region82: #{tpu_custom_call.1} parent=70 // loop_body
                  %v443 = vld [vmem:[%s441] sm:$0x3]
                  %444 = vst [vmem:[%s442] sm:$0x3] %v443
                  %v445 = vld [vmem:[%s441 + $0x2] sm:$0x3]
                  %446 = vst [vmem:[%s442 + $0x2] sm:$0x3] %v445
                  %v447 = vld [vmem:[%s441 + $0x4] sm:$0x3]
                  %448 = vst [vmem:[%s442 + $0x4] sm:$0x3] %v447
                  %v449 = vld [vmem:[%s441 + $0x6] sm:$0x3]
                  %450 = vst [vmem:[%s442 + $0x6] sm:$0x3] %v449
                  %v451 = vld [vmem:[%s441 + $0x10] sm:$0x3]
                  %452 = vst [vmem:[%s442 + $0x8] sm:$0x3] %v451
                  %v453 = vld [vmem:[%s441 + $0x12] sm:$0x3]
                  %454 = vst [vmem:[%s442 + $0xa] sm:$0x3] %v453
                  %v455 = vld [vmem:[%s441 + $0x14] sm:$0x3]
                  %456 = vst [vmem:[%s442 + $0xc] sm:$0x3] %v455
                  %v457 = vld [vmem:[%s441 + $0x16] sm:$0x3]
                  %458 = vst [vmem:[%s442 + $0xe] sm:$0x3] %v457
                $region83: #{tpu_custom_call.1} parent=70 // loop_footer
                  %s440 = sadd.s32 1, %s436
                $region84: #{tpu_custom_call.1} parent=70 // loop_footer_branch
                  %435 = sbr.rel target = $region80
                $region85: #{tpu_custom_call.1} parent=70 // loop_exit
                  _
              $region71: #{tpu_custom_call.1} parent=55 // pred_fallthru
                _
            $region56: #{tpu_custom_call.1} parent=51 // pred_fallthru
              _
            // Predicated region
            $region57: #{tpu_custom_call.1} parent=51 // pred_check
              _
            $region58: #{tpu_custom_call.1} parent=51 // pred_check_branch
              %398 = sbr.rel (0) target = $region60
            $region59: #{tpu_custom_call.1} parent=51 // pred_region
              loop: start=0, step=1, limit=1
              $region61: #{tpu_custom_call.1} parent=59 // loop_pre_header
                _
              $region62: #{tpu_custom_call.1} parent=59 // loop_header
                %s401 = sphi 0, %s405
                %p402 = scmp.ge.s32.totalorder %s401, 1
                %s406 = sphi %s392, %s392
                %s407 = sphi %s386, %s386
              $region63: #{tpu_custom_call.1} parent=59 // loop_header_branch
                %404 = sbr.rel (%p402) target = $region67
              $region64: #{tpu_custom_call.1} parent=59 // loop_body
                %v408 = vld [vmem:[%s406] sm:$0x3]
                %409 = vst [vmem:[%s407] sm:$0x3] %v408
                %v410 = vld [vmem:[%s406 + $0x2] sm:$0x3]
                %411 = vst [vmem:[%s407 + $0x2] sm:$0x3] %v410
                %v412 = vld [vmem:[%s406 + $0x4] sm:$0x3]
                %413 = vst [vmem:[%s407 + $0x4] sm:$0x3] %v412
                %v414 = vld [vmem:[%s406 + $0x6] sm:$0x3]
                %415 = vst [vmem:[%s407 + $0x6] sm:$0x3] %v414
                %v416 = vld [vmem:[%s406 + $0x10] sm:$0x3]
                %417 = vst [vmem:[%s407 + $0x8] sm:$0x3] %v416
                %v418 = vld [vmem:[%s406 + $0x12] sm:$0x3]
                %419 = vst [vmem:[%s407 + $0xa] sm:$0x3] %v418
                %v420 = vld [vmem:[%s406 + $0x14] sm:$0x3]
                %421 = vst [vmem:[%s407 + $0xc] sm:$0x3] %v420
                %v422 = vld [vmem:[%s406 + $0x16] sm:$0x3]
                %423 = vst [vmem:[%s407 + $0xe] sm:$0x3] %v422
              $region65: #{tpu_custom_call.1} parent=59 // loop_footer
                %s405 = sadd.s32 1, %s401
              $region66: #{tpu_custom_call.1} parent=59 // loop_footer_branch
                %400 = sbr.rel target = $region62
              $region67: #{tpu_custom_call.1} parent=59 // loop_exit
                _
            $region60: #{tpu_custom_call.1} parent=51 // pred_fallthru
              _
          $region52: #{tpu_custom_call.1} parent=47 // pred_fallthru
            _
          %459 = vnop
        $region48: #{tpu_custom_call.1} parent=39 // pred_fallthru
          _
      $region40: #{tpu_custom_call.1} parent=5 // pred_fallthru
        _
      %p460 = scmp.le.s32.totalorder 1, %s22
      %p461 = scmp.lt.s32.totalorder %s22, 3
      %p462 = pnand %p460, %p461
      %p463 = pneg %p462
      // Predicated region
      $region86: #{tpu_custom_call.1} parent=5 // pred_check
        _
      $region87: #{tpu_custom_call.1} parent=5 // pred_check_branch
        %465 = sbr.rel (%p462) target = $region89
      $region88: #{tpu_custom_call.1} parent=5 // pred_region
        %s466 = ssub.s32 %s22, 1
        %s467 = sand.u32 %s49, 1
        %s468 = scalar_lea.sflag [#allocation7], %s467
        %s469 = sand.u32 %s49, 1
        %s470 = smul.addr %s469, 512
        %s471 = scalar_lea.vmem [#allocation6], %s470
        // Predicated region
        $region90: #{tpu_custom_call.1} parent=88 // pred_check
          %p472 = pneg %p62
        $region91: #{tpu_custom_call.1} parent=88 // pred_check_branch
          %474 = sbr.rel (%p472) target = $region93
        $region92: #{tpu_custom_call.1} parent=88 // pred_region
          %475 = dma.done %s468, 8192
        $region93: #{tpu_custom_call.1} parent=88 // pred_fallthru
          _
        %s476 = sand.u32 %s77, 1
        %s477 = sand.u32 %s77, 1
        %s478 = smul.addr %s477, 16
        %s479 = scalar_lea.vmem [#allocation9], %s478
        // Predicated region
        $region94: #{tpu_custom_call.1} parent=88 // pred_check
          %p480 = pneg %p90
        $region95: #{tpu_custom_call.1} parent=88 // pred_check_branch
          %482 = sbr.rel (%p480) target = $region97
        $region96: #{tpu_custom_call.1} parent=88 // pred_region
          _
        $region97: #{tpu_custom_call.1} parent=88 // pred_fallthru
          _
        // Predicated region
        $region98: #{tpu_custom_call.1} parent=88 // pred_check
          %p483 = pneg %p116
        $region99: #{tpu_custom_call.1} parent=88 // pred_check_branch
          %485 = sbr.rel (%p483) target = $region101
        $region100: #{tpu_custom_call.1} parent=88 // pred_region
          %486 = dma.done [#allocation11], 1024
        $region101: #{tpu_custom_call.1} parent=88 // pred_fallthru
          _
        // Predicated region
        $region102: #{tpu_custom_call.1} parent=88 // pred_check
          %p487 = pneg %p137
        $region103: #{tpu_custom_call.1} parent=88 // pred_check_branch
          %489 = sbr.rel (%p487) target = $region105
        $region104: #{tpu_custom_call.1} parent=88 // pred_region
          %490 = dma.done [#allocation11], 256
        $region105: #{tpu_custom_call.1} parent=88 // pred_fallthru
          _
        // Predicated region
        $region106: #{tpu_custom_call.1} parent=88 // pred_check
          %p491 = pneg %p179
        $region107: #{tpu_custom_call.1} parent=88 // pred_check_branch
          %493 = sbr.rel (%p491) target = $region109
        $region108: #{tpu_custom_call.1} parent=88 // pred_region
          %494 = dma.done [#allocation14], 256
        $region109: #{tpu_custom_call.1} parent=88 // pred_fallthru
          _
        // Predicated region
        $region110: #{tpu_custom_call.1} parent=88 // pred_check
          %p495 = pneg %p200
        $region111: #{tpu_custom_call.1} parent=88 // pred_check_branch
          %497 = sbr.rel (%p495) target = $region113
        $region112: #{tpu_custom_call.1} parent=88 // pred_region
          %498 = dma.done [#allocation14], 256
        $region113: #{tpu_custom_call.1} parent=88 // pred_fallthru
          _
        %s499 = sand.u32 %s49, 1
        %s500 = scalar_lea.sflag [#allocation7], %s499
        %s501 = sand.u32 %s49, 1
        %s502 = smul.addr %s501, 512
        %s503 = scalar_lea.vmem [#allocation6], %s502
        %p504 = pneg %p62
        %p505 = pneg %p59
        %s506 = sand.u32 %s77, 1
        %s507 = sand.u32 %s77, 1
        %s508 = smul.addr %s507, 16
        %s509 = scalar_lea.vmem [#allocation9], %s508
        %p510 = pneg %p90
        %p511 = pneg %p87
        %p512 = pneg %p116
        %p513 = pneg %p113
        %p514 = pneg %p137
        %p515 = pneg %p134
        %p516 = pneg %p158
        %p517 = pneg %p155
        %p518 = pneg %p179
        %p519 = pneg %p176
        %p520 = pneg %p200
        %p521 = pneg %p197
        %p522 = pneg %p221
        %p523 = pneg %p218
        %p524 = pneg %p249
        %p525 = pneg %p246
        %s526 = sand.u32 %s236, 1
        %s527 = scalar_lea.sflag [#allocation8], %s526
        %s528 = sand.u32 %s236, 1
        %s529 = smul.addr %s528, 256
        %s530 = scalar_lea.vmem [#allocation16], %s529
        %s531 = smul.u32 2, %s31
        %s532 = smul.u32 4, %s32
        %s533 = smul.u32 2, %s31
        %s534 = smul.u32 4, %s32
        %s535 = smul.u32 2, %s31
        %s536 = smul.u32 2, %s31
        %s537 = smul.u32 4, %s32
        %p539 = scmp.eq.s32.totalorder %s32, 0
        // Predicated region
        $region114: #{tpu_custom_call.1} parent=88 // pred_check
          %p540 = pneg %p539
        $region115: #{tpu_custom_call.1} parent=88 // pred_check_branch
          %542 = sbr.rel (%p540) target = $region117
        $region116: #{tpu_custom_call.1} parent=88 // pred_region
          %543 = vst [vmem:[#allocation2] sm:$0xff] 0
          %544 = vst [vmem:[#allocation2 + $0x8] sm:$0xff] 0
          %545 = vst [vmem:[#allocation2 + $0x10] sm:$0xff] 0
          %546 = vst [vmem:[#allocation2 + $0x18] sm:$0xff] 0
          %547 = vst [vmem:[#allocation2 + $0x20] sm:$0xff] 0
          %548 = vst [vmem:[#allocation2 + $0x28] sm:$0xff] 0
          %549 = vst [vmem:[#allocation3] sm:$0xff] 0
          %550 = vst [vmem:[#allocation3 + $0x8] sm:$0xff] 0
          %551 = vst [vmem:[#allocation3 + $0x10] sm:$0xff] 0
          %552 = vst [vmem:[#allocation3 + $0x18] sm:$0xff] 0
          %553 = vst [vmem:[#allocation3 + $0x20] sm:$0xff] 0
          %554 = vst [vmem:[#allocation3 + $0x28] sm:$0xff] 0
          %555 = vst [vmem:[#allocation3 + $0x30] sm:$0xff] 0
          %556 = vst [vmem:[#allocation3 + $0x38] sm:$0xff] 0
          %557 = vst [vmem:[#allocation3 + $0x40] sm:$0xff] 0
          %558 = vst [vmem:[#allocation3 + $0x48] sm:$0xff] 0
          %559 = vst [vmem:[#allocation3 + $0x50] sm:$0xff] 0
          %560 = vst [vmem:[#allocation3 + $0x58] sm:$0xff] 0
          %v561 = vld [vmem:[#allocation10] sm:$0xff]
          %v562 = vld [vmem:[#allocation10 + $0x8] sm:$0xff]
          %v563 = vld [vmem:[#allocation10 + $0x10] sm:$0xff]
          %v564 = vld [vmem:[#allocation10 + $0x18] sm:$0xff]
          %565 = vst [vmem:[#allocation5] sm:$0xff] %v561
          %566 = vst [vmem:[#allocation5 + $0x10] sm:$0xff] %v562
          %567 = vst [vmem:[#allocation5 + $0x20] sm:$0xff] %v563
          %568 = vst [vmem:[#allocation5 + $0x30] sm:$0xff] %v564
          %s569 = scalar_lea.vmem [#allocation10], 32
          %v570 = vld [vmem:[%s569] sm:$0xff]
          %v571 = vld [vmem:[%s569 + $0x8] sm:$0xff]
          %v572 = vld [vmem:[%s569 + $0x10] sm:$0xff]
          %v573 = vld [vmem:[%s569 + $0x18] sm:$0xff]
          %574 = vst [vmem:[#allocation5 + $0x8] sm:$0xff] %v570
          %575 = vst [vmem:[#allocation5 + $0x18] sm:$0xff] %v571
          %576 = vst [vmem:[#allocation5 + $0x28] sm:$0xff] %v572
          %577 = vst [vmem:[#allocation5 + $0x38] sm:$0xff] %v573
        $region117: #{tpu_custom_call.1} parent=88 // pred_fallthru
          _
        %v578 = vld [vmem:[#allocation12] sm:$0xf]
        %v579 = vld [vmem:[#allocation12 + $0x4] sm:$0xf]
        %v580 = vld [vmem:[#allocation12 + $0x8] sm:$0xf]
        %v581 = vld [vmem:[#allocation12 + $0xc] sm:$0xf]
        %v582 = vld [vmem:[%s4] sm:$0xf]
        %v583 = vld [vmem:[%s4 + $0x4] sm:$0xf]
        %v584 = vld [vmem:[%s4 + $0x8] sm:$0xf]
        %v585 = vld [vmem:[%s4 + $0xc] sm:$0xf]
        %v586 = vld [vmem:[#allocation13] sm:$0xf]
        %v587 = vld [vmem:[#allocation13 + $0x4] sm:$0xf]
        %v588 = vld [vmem:[#allocation13 + $0x8] sm:$0xf]
        %v589 = vld [vmem:[#allocation13 + $0xc] sm:$0xf]
        %v590 = vld [vmem:[#allocation15] sm:$0xf]
        %v591 = vld [vmem:[#allocation15 + $0x4] sm:$0xf]
        %v592 = vld [vmem:[#allocation15 + $0x8] sm:$0xf]
        %v593 = vld [vmem:[#allocation15 + $0xc] sm:$0xf]
        %v594 = vld [vmem:[%s7] sm:$0xff]
        %v595 = vld [vmem:[%s7 + $0x8] sm:$0xff]
        %v596 = vld [vmem:[%s7 + $0x10] sm:$0xff]
        %v597 = vld [vmem:[%s7 + $0x18] sm:$0xff]
        %599 = vset.pattern.permute.xlu0 0
        %600 = vperm.xlu0 %599, %v594
        %v601 = vpop.permute.xlu0 %600
        %604 = vset.pattern.permute.xlu0 0
        %605 = vperm.xlu0 %604, %v595
        %v606 = vpop.permute.xlu0 %605
        %609 = vset.pattern.permute.xlu0 0
        %610 = vperm.xlu0 %609, %v596
        %v611 = vpop.permute.xlu0 %610
        %614 = vset.pattern.permute.xlu0 0
        %615 = vperm.xlu0 %614, %v597
        %v616 = vpop.permute.xlu0 %615
        %p618 = scmp.gt.s32.totalorder %s32, 0
        // Predicated region
        $region118: #{tpu_custom_call.1} parent=88 // pred_check
          %p619 = pneg %p618
        $region119: #{tpu_custom_call.1} parent=88 // pred_check_branch
          %621 = sbr.rel (%p619) target = $region121
        $region120: #{tpu_custom_call.1} parent=88 // pred_region
          %v622 = vld [vmem:[#allocation2] sm:$0xff]
          %v623 = vld [vmem:[#allocation2 + $0x10] sm:$0xff]
          %v624 = vld [vmem:[%s471] sm:$0xf]
          %v625 = vld [vmem:[%s471 + $0x4] sm:$0xf]
          %v626 = vld [vmem:[%s471 + $0x8] sm:$0xf]
          %v627 = vld [vmem:[%s471 + $0xc] sm:$0xf]
          %v628 = vld [vmem:[%s471 + $0x10] sm:$0xf]
          %v629 = vld [vmem:[%s471 + $0x14] sm:$0xf]
          %v630 = vld [vmem:[%s471 + $0x18] sm:$0xf]
          %v631 = vld [vmem:[%s471 + $0x1c] sm:$0xf]
          %v632 = vld [vmem:[%s471 + $0x20] sm:$0xf]
          %v633 = vld [vmem:[%s471 + $0x24] sm:$0xf]
          %v634 = vld [vmem:[%s471 + $0x28] sm:$0xf]
          %v635 = vld [vmem:[%s471 + $0x2c] sm:$0xf]
          %v636 = vld [vmem:[%s471 + $0x30] sm:$0xf]
          %v637 = vld [vmem:[%s471 + $0x34] sm:$0xf]
          %v638 = vld [vmem:[%s471 + $0x38] sm:$0xf]
          %v639 = vld [vmem:[%s471 + $0x3c] sm:$0xf]
          %v656 = vunpack.c.l.b16 %v624
          %v657 = vunpack.c.l.b16 %v625
          %v658 = vunpack.c.l.b16 %v626
          %v659 = vunpack.c.l.b16 %v627
          %v660 = vunpack.c.l.b16 %v628
          %v661 = vunpack.c.l.b16 %v629
          %v662 = vunpack.c.l.b16 %v630
          %v663 = vunpack.c.l.b16 %v631
          %v664 = vunpack.c.l.b16 %v632
          %v665 = vunpack.c.l.b16 %v633
          %v666 = vunpack.c.l.b16 %v634
          %v667 = vunpack.c.l.b16 %v635
          %v668 = vunpack.c.l.b16 %v636
          %v669 = vunpack.c.l.b16 %v637
          %v670 = vunpack.c.l.b16 %v638
          %v671 = vunpack.c.l.b16 %v639
          %v672 = vpack.c.b16 %v657, %v656
          %v673 = vpack.c.b16 %v659, %v658
          %v674 = vpack.c.b16 %v661, %v660
          %v675 = vpack.c.b16 %v663, %v662
          %v676 = vpack.c.b16 %v665, %v664
          %v677 = vpack.c.b16 %v667, %v666
          %v678 = vpack.c.b16 %v669, %v668
          %v679 = vpack.c.b16 %v671, %v670
          %688 = vmatprep.subr.bf16.mxu0 0
          %689 = vmatpush1.bf16.msra.mxu0 %v672
          %690 = vmatprep.subr.bf16.mxu0 0
          %691 = vmatpush1.bf16.msra.mxu0 %v673
          %692 = vmatprep.subr.bf16.mxu0 0
          %693 = vmatpush1.bf16.msra.mxu0 %v674
          %694 = vmatprep.subr.bf16.mxu0 0
          %695 = vmatpush1.bf16.msra.mxu0 %v675
          %696 = vmatprep.subr.bf16.mxu0 0
          %697 = vmatpush1.bf16.msra.mxu0 %v676
          %698 = vmatprep.subr.bf16.mxu0 0
          %699 = vmatpush1.bf16.msra.mxu0 %v677
          %700 = vmatprep.subr.bf16.mxu0 0
          %701 = vmatpush1.bf16.msra.mxu0 %v678
          %702 = vmatprep.subr.bf16.mxu0 0
          %703 = vmatpush1.bf16.msra.mxu0 %v679
          %704 = vmatprep.subr.bf16.mxu0 0
          %705 = vmatpush1.bf16.msra.mxu0 0
          %706 = vmatprep.subr.bf16.mxu0 0
          %707 = vmatpush1.bf16.msra.mxu0 0
          %708 = vmatprep.subr.bf16.mxu0 0
          %709 = vmatpush1.bf16.msra.mxu0 0
          %710 = vmatprep.subr.bf16.mxu0 0
          %711 = vmatpush1.bf16.msra.mxu0 0
          %712 = vmatprep.subr.bf16.mxu0 0
          %713 = vmatpush1.bf16.msra.mxu0 0
          %714 = vmatprep.subr.bf16.mxu0 0
          %715 = vmatpush1.bf16.msra.mxu0 0
          %716 = vmatprep.subr.bf16.mxu0 0
          %717 = vmatpush1.bf16.msra.mxu0 0
          %718 = vmatprep.subr.bf16.mxu0 0
          %719 = vmatpush1.bf16.msra.mxu0 0
          %720 = vmatprep.mubr.bf16.mxu0 0
          %721 = vmatmul.mubr.bf16.gmra.mrb[0].mxu0 %v622
          %v722 = vpop.f32.mrb[0].mxu0
          %v723 = vadd.f32 0.0, %v722
          %v724 = vpop.f32.mrb[0].mxu0
          %v725 = vpop.f32.mrb[0].mxu0
          %v726 = vadd.f32 0.0, %v725
          %v727 = vpop.f32.mrb[0].mxu0
          %728 = vmatprep.mubr.bf16.mxu0 0
          %729 = vmatmul.mubr.bf16.gmra.mrb[0].mxu0 %v623
          %v730 = vpop.f32.mrb[0].mxu0
          %v731 = vadd.f32 0.0, %v730
          %v732 = vpop.f32.mrb[0].mxu0
          %v733 = vpop.f32.mrb[0].mxu0
          %v734 = vadd.f32 0.0, %v733
          %v735 = vpop.f32.mrb[0].mxu0
          %736 = vdwg.mxu0
          %v737 = vpack.c.bf16 %v726, %v723
          %v738 = vpack.c.bf16 %v734, %v731
          %739 = vst [vmem:[#allocation2 + $0x10] sm:$0xff] %v737
          %740 = vst [vmem:[#allocation2 + $0x20] sm:$0xff] %v738
          %v741 = vld [vmem:[#allocation2 + $0x8] sm:$0xff]
          %v742 = vld [vmem:[#allocation2 + $0x18] sm:$0xff]
          %s743 = scalar_lea.vmem %s471, 256 [#allocation6]
          %v744 = vld [vmem:[%s743] sm:$0xf]
          %v745 = vld [vmem:[%s743 + $0x4] sm:$0xf]
          %v746 = vld [vmem:[%s743 + $0x8] sm:$0xf]
          %v747 = vld [vmem:[%s743 + $0xc] sm:$0xf]
          %v748 = vld [vmem:[%s743 + $0x10] sm:$0xf]
          %v749 = vld [vmem:[%s743 + $0x14] sm:$0xf]
          %v750 = vld [vmem:[%s743 + $0x18] sm:$0xf]
          %v751 = vld [vmem:[%s743 + $0x1c] sm:$0xf]
          %v752 = vld [vmem:[%s743 + $0x20] sm:$0xf]
          %v753 = vld [vmem:[%s743 + $0x24] sm:$0xf]
          %v754 = vld [vmem:[%s743 + $0x28] sm:$0xf]
          %v755 = vld [vmem:[%s743 + $0x2c] sm:$0xf]
          %v756 = vld [vmem:[%s743 + $0x30] sm:$0xf]
          %v757 = vld [vmem:[%s743 + $0x34] sm:$0xf]
          %v758 = vld [vmem:[%s743 + $0x38] sm:$0xf]
          %v759 = vld [vmem:[%s743 + $0x3c] sm:$0xf]
          %v776 = vunpack.c.l.b16 %v744
          %v777 = vunpack.c.l.b16 %v745
          %v778 = vunpack.c.l.b16 %v746
          %v779 = vunpack.c.l.b16 %v747
          %v780 = vunpack.c.l.b16 %v748
          %v781 = vunpack.c.l.b16 %v749
          %v782 = vunpack.c.l.b16 %v750
          %v783 = vunpack.c.l.b16 %v751
          %v784 = vunpack.c.l.b16 %v752
          %v785 = vunpack.c.l.b16 %v753
          %v786 = vunpack.c.l.b16 %v754
          %v787 = vunpack.c.l.b16 %v755
          %v788 = vunpack.c.l.b16 %v756
          %v789 = vunpack.c.l.b16 %v757
          %v790 = vunpack.c.l.b16 %v758
          %v791 = vunpack.c.l.b16 %v759
          %v792 = vpack.c.b16 %v777, %v776
          %v793 = vpack.c.b16 %v779, %v778
          %v794 = vpack.c.b16 %v781, %v780
          %v795 = vpack.c.b16 %v783, %v782
          %v796 = vpack.c.b16 %v785, %v784
          %v797 = vpack.c.b16 %v787, %v786
          %v798 = vpack.c.b16 %v789, %v788
          %v799 = vpack.c.b16 %v791, %v790
          %808 = vmatprep.subr.bf16.mxu0 0
          %809 = vmatpush1.bf16.msra.mxu0 %v792
          %810 = vmatprep.subr.bf16.mxu0 0
          %811 = vmatpush1.bf16.msra.mxu0 %v793
          %812 = vmatprep.subr.bf16.mxu0 0
          %813 = vmatpush1.bf16.msra.mxu0 %v794
          %814 = vmatprep.subr.bf16.mxu0 0
          %815 = vmatpush1.bf16.msra.mxu0 %v795
          %816 = vmatprep.subr.bf16.mxu0 0
          %817 = vmatpush1.bf16.msra.mxu0 %v796
          %818 = vmatprep.subr.bf16.mxu0 0
          %819 = vmatpush1.bf16.msra.mxu0 %v797
          %820 = vmatprep.subr.bf16.mxu0 0
          %821 = vmatpush1.bf16.msra.mxu0 %v798
          %822 = vmatprep.subr.bf16.mxu0 0
          %823 = vmatpush1.bf16.msra.mxu0 %v799
          %824 = vmatprep.subr.bf16.mxu0 0
          %825 = vmatpush1.bf16.msra.mxu0 0
          %826 = vmatprep.subr.bf16.mxu0 0
          %827 = vmatpush1.bf16.msra.mxu0 0
          %828 = vmatprep.subr.bf16.mxu0 0
          %829 = vmatpush1.bf16.msra.mxu0 0
          %830 = vmatprep.subr.bf16.mxu0 0
          %831 = vmatpush1.bf16.msra.mxu0 0
          %832 = vmatprep.subr.bf16.mxu0 0
          %833 = vmatpush1.bf16.msra.mxu0 0
          %834 = vmatprep.subr.bf16.mxu0 0
          %835 = vmatpush1.bf16.msra.mxu0 0
          %836 = vmatprep.subr.bf16.mxu0 0
          %837 = vmatpush1.bf16.msra.mxu0 0
          %838 = vmatprep.subr.bf16.mxu0 0
          %839 = vmatpush1.bf16.msra.mxu0 0
          %840 = vmatprep.mubr.bf16.mxu0 0
          %841 = vmatmul.mubr.bf16.gmra.mrb[0].mxu0 %v741
          %v842 = vpop.f32.mrb[0].mxu0
          %v843 = vadd.f32 0.0, %v842
          %v844 = vpop.f32.mrb[0].mxu0
          %v845 = vpop.f32.mrb[0].mxu0
          %v846 = vadd.f32 0.0, %v845
          %v847 = vpop.f32.mrb[0].mxu0
          %848 = vmatprep.mubr.bf16.mxu0 0
          %849 = vmatmul.mubr.bf16.gmra.mrb[0].mxu0 %v742
          %v850 = vpop.f32.mrb[0].mxu0
          %v851 = vadd.f32 0.0, %v850
          %v852 = vpop.f32.mrb[0].mxu0
          %v853 = vpop.f32.mrb[0].mxu0
          %v854 = vadd.f32 0.0, %v853
          %v855 = vpop.f32.mrb[0].mxu0
          %856 = vdwg.mxu0
          %v857 = vpack.c.bf16 %v846, %v843
          %v858 = vpack.c.bf16 %v854, %v851
          %859 = vst [vmem:[#allocation2 + $0x18] sm:$0xff] %v857
          %860 = vst [vmem:[#allocation2 + $0x28] sm:$0xff] %v858
        $region121: #{tpu_custom_call.1} parent=88 // pred_fallthru
          _
        %v861 = vld [vmem:[%s479] sm:$0x3]
        %s862 = scalar_lea.vmem %s479, 8 [#allocation9]
        %v863 = vld [vmem:[%s862] sm:$0x3]
        %864 = vst [vmem:[#allocation2] sm:$0x3] %v861
        %865 = vst [vmem:[#allocation2 + $0x8] sm:$0x3] %v863
        %v866 = vld [vmem:[#allocation2] sm:$0xff]
        %v867 = vld [vmem:[#allocation2 + $0x8] sm:$0xff]
        %v868 = vld [vmem:[#allocation2 + $0x10] sm:$0xff]
        %v869 = vld [vmem:[#allocation2 + $0x18] sm:$0xff]
        %v870 = vld [vmem:[#allocation2 + $0x20] sm:$0xff]
        %v871 = vld [vmem:[#allocation2 + $0x28] sm:$0xff]
        %v876 = vunpack.c.l.b16 %v578
        %v877 = vunpack.c.l.b16 %v579
        %v878 = vunpack.c.l.b16 %v580
        %v879 = vunpack.c.l.b16 %v581
        %v880 = vpack.c.b16 %v877, %v876
        %v881 = vpack.c.b16 %v879, %v878
        %vm882 = vcmask 392192
        %v884 = vsel %vm882, %v880, 0
        %v887 = vsel %vm882, %v881, 0
        %889 = vmatprep.subr.bf16.mxu0 %v867
        %890 = vmatpush1.bf16.msra.mxu0 %v866
        %891 = vmatprep.subr.bf16.mxu0 %v869
        %892 = vmatpush1.bf16.msra.mxu0 %v868
        %893 = vmatprep.subr.bf16.mxu0 %v871
        %894 = vmatpush1.bf16.msra.mxu0 %v870
        %895 = vmatprep.subr.bf16.mxu0 0
        %896 = vmatpush1.bf16.msra.mxu0 0
        %897 = vmatprep.subr.bf16.mxu0 0
        %898 = vmatpush1.bf16.msra.mxu0 0
        %899 = vmatprep.subr.bf16.mxu0 0
        %900 = vmatpush1.bf16.msra.mxu0 0
        %901 = vmatprep.subr.bf16.mxu0 0
        %902 = vmatpush1.bf16.msra.mxu0 0
        %903 = vmatprep.subr.bf16.mxu0 0
        %904 = vmatpush1.bf16.msra.mxu0 0
        %905 = vmatprep.subr.bf16.mxu0 0
        %906 = vmatpush1.bf16.msra.mxu0 0
        %907 = vmatprep.subr.bf16.mxu0 0
        %908 = vmatpush1.bf16.msra.mxu0 0
        %909 = vmatprep.subr.bf16.mxu0 0
        %910 = vmatpush1.bf16.msra.mxu0 0
        %911 = vmatprep.subr.bf16.mxu0 0
        %912 = vmatpush1.bf16.msra.mxu0 0
        %913 = vmatprep.subr.bf16.mxu0 0
        %914 = vmatpush1.bf16.msra.mxu0 0
        %915 = vmatprep.subr.bf16.mxu0 0
        %916 = vmatpush1.bf16.msra.mxu0 0
        %917 = vmatprep.subr.bf16.mxu0 0
        %918 = vmatpush1.bf16.msra.mxu0 0
        %919 = vmatprep.subr.bf16.mxu0 0
        %920 = vmatpush1.bf16.msra.mxu0 0
        %921 = vmatprep.mubr.bf16.mxu0 0
        %922 = vmatmul.mubr.bf16.gmra.mrb[0].mxu0 %v884
        %v923 = vpop.f32.mrb[0].mxu0
        %v924 = vadd.f32 %v601, %v923
        %v925 = vpop.f32.mrb[0].mxu0
        %v926 = vadd.f32 %v601, %v925
        %v927 = vpop.f32.mrb[0].mxu0
        %v928 = vadd.f32 %v606, %v927
        %v929 = vpop.f32.mrb[0].mxu0
        %v930 = vadd.f32 %v606, %v929
        %931 = vmatprep.mubr.bf16.mxu0 0
        %932 = vmatmul.mubr.bf16.gmra.mrb[0].mxu0 %v887
        %v933 = vpop.f32.mrb[0].mxu0
        %v934 = vadd.f32 %v611, %v933
        %v935 = vpop.f32.mrb[0].mxu0
        %v936 = vadd.f32 %v611, %v935
        %v937 = vpop.f32.mrb[0].mxu0
        %v938 = vadd.f32 %v616, %v937
        %v939 = vpop.f32.mrb[0].mxu0
        %v940 = vadd.f32 %v616, %v939
        %941 = vdwg.mxu0
        %942 = vst [vmem:[#allocation4] sm:$0xff] %v924
        %943 = vst [vmem:[#allocation4 + $0x8] sm:$0xff] %v926
        %944 = vst [vmem:[#allocation4 + $0x10] sm:$0xff] %v928
        %945 = vst [vmem:[#allocation4 + $0x18] sm:$0xff] %v930
        %946 = vst [vmem:[#allocation4 + $0x20] sm:$0xff] %v934
        %947 = vst [vmem:[#allocation4 + $0x28] sm:$0xff] %v936
        %948 = vst [vmem:[#allocation4 + $0x30] sm:$0xff] %v938
        %949 = vst [vmem:[#allocation4 + $0x38] sm:$0xff] %v940
        %v950 = vld [vmem:[#allocation2] sm:$0xff]
        %v951 = vld [vmem:[#allocation2 + $0x10] sm:$0xff]
        %s952 = scalar_lea.vmem %s471, 64 [#allocation6]
        %v953 = vld [vmem:[%s952] sm:$0xf]
        %v954 = vld [vmem:[%s952 + $0x4] sm:$0xf]
        %v955 = vld [vmem:[%s952 + $0x8] sm:$0xf]
        %v956 = vld [vmem:[%s952 + $0xc] sm:$0xf]
        %v957 = vld [vmem:[%s952 + $0x10] sm:$0xf]
        %v958 = vld [vmem:[%s952 + $0x14] sm:$0xf]
        %v959 = vld [vmem:[%s952 + $0x18] sm:$0xf]
        %v960 = vld [vmem:[%s952 + $0x1c] sm:$0xf]
        %v961 = vld [vmem:[%s952 + $0x20] sm:$0xf]
        %v962 = vld [vmem:[%s952 + $0x24] sm:$0xf]
        %v963 = vld [vmem:[%s952 + $0x28] sm:$0xf]
        %v964 = vld [vmem:[%s952 + $0x2c] sm:$0xf]
        %v965 = vld [vmem:[%s952 + $0x30] sm:$0xf]
        %v966 = vld [vmem:[%s952 + $0x34] sm:$0xf]
        %v967 = vld [vmem:[%s952 + $0x38] sm:$0xf]
        %v968 = vld [vmem:[%s952 + $0x3c] sm:$0xf]
        %v985 = vunpack.c.l.b16 %v953
        %v986 = vunpack.c.l.b16 %v954
        %v987 = vunpack.c.l.b16 %v955
        %v988 = vunpack.c.l.b16 %v956
        %v989 = vunpack.c.l.b16 %v957
        %v990 = vunpack.c.l.b16 %v958
        %v991 = vunpack.c.l.b16 %v959
        %v992 = vunpack.c.l.b16 %v960
        %v993 = vunpack.c.l.b16 %v961
        %v994 = vunpack.c.l.b16 %v962
        %v995 = vunpack.c.l.b16 %v963
        %v996 = vunpack.c.l.b16 %v964
        %v997 = vunpack.c.l.b16 %v965
        %v998 = vunpack.c.l.b16 %v966
        %v999 = vunpack.c.l.b16 %v967
        %v1000 = vunpack.c.l.b16 %v968
        %v1001 = vpack.c.b16 %v986, %v985
        %v1002 = vpack.c.b16 %v988, %v987
        %v1003 = vpack.c.b16 %v990, %v989
        %v1004 = vpack.c.b16 %v992, %v991
        %v1005 = vpack.c.b16 %v994, %v993
        %v1006 = vpack.c.b16 %v996, %v995
        %v1007 = vpack.c.b16 %v998, %v997
        %v1008 = vpack.c.b16 %v1000, %v999
        %1017 = vmatprep.subr.bf16.mxu0 0
        %1018 = vmatpush1.bf16.msra.mxu0 %v1001
        %1019 = vmatprep.subr.bf16.mxu0 0
        %1020 = vmatpush1.bf16.msra.mxu0 %v1002
        %1021 = vmatprep.subr.bf16.mxu0 0
        %1022 = vmatpush1.bf16.msra.mxu0 %v1003
        %1023 = vmatprep.subr.bf16.mxu0 0
        %1024 = vmatpush1.bf16.msra.mxu0 %v1004
        %1025 = vmatprep.subr.bf16.mxu0 0
        %1026 = vmatpush1.bf16.msra.mxu0 %v1005
        %1027 = vmatprep.subr.bf16.mxu0 0
        %1028 = vmatpush1.bf16.msra.mxu0 %v1006
        %1029 = vmatprep.subr.bf16.mxu0 0
        %1030 = vmatpush1.bf16.msra.mxu0 %v1007
        %1031 = vmatprep.subr.bf16.mxu0 0
        %1032 = vmatpush1.bf16.msra.mxu0 %v1008
        %1033 = vmatprep.subr.bf16.mxu0 0
        %1034 = vmatpush1.bf16.msra.mxu0 0
        %1035 = vmatprep.subr.bf16.mxu0 0
        %1036 = vmatpush1.bf16.msra.mxu0 0
        %1037 = vmatprep.subr.bf16.mxu0 0
        %1038 = vmatpush1.bf16.msra.mxu0 0
        %1039 = vmatprep.subr.bf16.mxu0 0
        %1040 = vmatpush1.bf16.msra.mxu0 0
        %1041 = vmatprep.subr.bf16.mxu0 0
        %1042 = vmatpush1.bf16.msra.mxu0 0
        %1043 = vmatprep.subr.bf16.mxu0 0
        %1044 = vmatpush1.bf16.msra.mxu0 0
        %1045 = vmatprep.subr.bf16.mxu0 0
        %1046 = vmatpush1.bf16.msra.mxu0 0
        %1047 = vmatprep.subr.bf16.mxu0 0
        %1048 = vmatpush1.bf16.msra.mxu0 0
        %1049 = vmatprep.mubr.bf16.mxu0 0
        %1050 = vmatmul.mubr.bf16.gmra.mrb[0].mxu0 %v950
        %v1051 = vpop.f32.mrb[0].mxu0
        %v1052 = vadd.f32 0.0, %v1051
        %v1053 = vpop.f32.mrb[0].mxu0
        %v1054 = vpop.f32.mrb[0].mxu0
        %v1055 = vadd.f32 0.0, %v1054
        %v1056 = vpop.f32.mrb[0].mxu0
        %1057 = vmatprep.mubr.bf16.mxu0 0
        %1058 = vmatmul.mubr.bf16.gmra.mrb[0].mxu0 %v951
        %v1059 = vpop.f32.mrb[0].mxu0
        %v1060 = vadd.f32 0.0, %v1059
        %v1061 = vpop.f32.mrb[0].mxu0
        %v1062 = vpop.f32.mrb[0].mxu0
        %v1063 = vadd.f32 0.0, %v1062
        %v1064 = vpop.f32.mrb[0].mxu0
        %1065 = vdwg.mxu0
        %v1066 = vpack.c.bf16 %v1055, %v1052
        %v1067 = vpack.c.bf16 %v1063, %v1060
        %1068 = vst [vmem:[#allocation2 + $0x10] sm:$0xff] %v1066
        %1069 = vst [vmem:[#allocation2 + $0x20] sm:$0xff] %v1067
        %v1070 = vld [vmem:[#allocation2 + $0x8] sm:$0xff]
        %v1071 = vld [vmem:[#allocation2 + $0x18] sm:$0xff]
        %s1072 = scalar_lea.vmem %s471, 320 [#allocation6]
        %v1073 = vld [vmem:[%s1072] sm:$0xf]
        %v1074 = vld [vmem:[%s1072 + $0x4] sm:$0xf]
        %v1075 = vld [vmem:[%s1072 + $0x8] sm:$0xf]
        %v1076 = vld [vmem:[%s1072 + $0xc] sm:$0xf]
        %v1077 = vld [vmem:[%s1072 + $0x10] sm:$0xf]
        %v1078 = vld [vmem:[%s1072 + $0x14] sm:$0xf]
        %v1079 = vld [vmem:[%s1072 + $0x18] sm:$0xf]
        %v1080 = vld [vmem:[%s1072 + $0x1c] sm:$0xf]
        %v1081 = vld [vmem:[%s1072 + $0x20] sm:$0xf]
        %v1082 = vld [vmem:[%s1072 + $0x24] sm:$0xf]
        %v1083 = vld [vmem:[%s1072 + $0x28] sm:$0xf]
        %v1084 = vld [vmem:[%s1072 + $0x2c] sm:$0xf]
        %v1085 = vld [vmem:[%s1072 + $0x30] sm:$0xf]
        %v1086 = vld [vmem:[%s1072 + $0x34] sm:$0xf]
        %v1087 = vld [vmem:[%s1072 + $0x38] sm:$0xf]
        %v1088 = vld [vmem:[%s1072 + $0x3c] sm:$0xf]
        %v1105 = vunpack.c.l.b16 %v1073
        %v1106 = vunpack.c.l.b16 %v1074
        %v1107 = vunpack.c.l.b16 %v1075
        %v1108 = vunpack.c.l.b16 %v1076
        %v1109 = vunpack.c.l.b16 %v1077
        %v1110 = vunpack.c.l.b16 %v1078
        %v1111 = vunpack.c.l.b16 %v1079
        %v1112 = vunpack.c.l.b16 %v1080
        %v1113 = vunpack.c.l.b16 %v1081
        %v1114 = vunpack.c.l.b16 %v1082
        %v1115 = vunpack.c.l.b16 %v1083
        %v1116 = vunpack.c.l.b16 %v1084
        %v1117 = vunpack.c.l.b16 %v1085
        %v1118 = vunpack.c.l.b16 %v1086
        %v1119 = vunpack.c.l.b16 %v1087
        %v1120 = vunpack.c.l.b16 %v1088
        %v1121 = vpack.c.b16 %v1106, %v1105
        %v1122 = vpack.c.b16 %v1108, %v1107
        %v1123 = vpack.c.b16 %v1110, %v1109
        %v1124 = vpack.c.b16 %v1112, %v1111
        %v1125 = vpack.c.b16 %v1114, %v1113
        %v1126 = vpack.c.b16 %v1116, %v1115
        %v1127 = vpack.c.b16 %v1118, %v1117
        %v1128 = vpack.c.b16 %v1120, %v1119
        %1137 = vmatprep.subr.bf16.mxu0 0
        %1138 = vmatpush1.bf16.msra.mxu0 %v1121
        %1139 = vmatprep.subr.bf16.mxu0 0
        %1140 = vmatpush1.bf16.msra.mxu0 %v1122
        %1141 = vmatprep.subr.bf16.mxu0 0
        %1142 = vmatpush1.bf16.msra.mxu0 %v1123
        %1143 = vmatprep.subr.bf16.mxu0 0
        %1144 = vmatpush1.bf16.msra.mxu0 %v1124
        %1145 = vmatprep.subr.bf16.mxu0 0
        %1146 = vmatpush1.bf16.msra.mxu0 %v1125
        %1147 = vmatprep.subr.bf16.mxu0 0
        %1148 = vmatpush1.bf16.msra.mxu0 %v1126
        %1149 = vmatprep.subr.bf16.mxu0 0
        %1150 = vmatpush1.bf16.msra.mxu0 %v1127
        %1151 = vmatprep.subr.bf16.mxu0 0
        %1152 = vmatpush1.bf16.msra.mxu0 %v1128
        %1153 = vmatprep.subr.bf16.mxu0 0
        %1154 = vmatpush1.bf16.msra.mxu0 0
        %1155 = vmatprep.subr.bf16.mxu0 0
        %1156 = vmatpush1.bf16.msra.mxu0 0
        %1157 = vmatprep.subr.bf16.mxu0 0
        %1158 = vmatpush1.bf16.msra.mxu0 0
        %1159 = vmatprep.subr.bf16.mxu0 0
        %1160 = vmatpush1.bf16.msra.mxu0 0
        %1161 = vmatprep.subr.bf16.mxu0 0
        %1162 = vmatpush1.bf16.msra.mxu0 0
        %1163 = vmatprep.subr.bf16.mxu0 0
        %1164 = vmatpush1.bf16.msra.mxu0 0
        %1165 = vmatprep.subr.bf16.mxu0 0
        %1166 = vmatpush1.bf16.msra.mxu0 0
        %1167 = vmatprep.subr.bf16.mxu0 0
        %1168 = vmatpush1.bf16.msra.mxu0 0
        %1169 = vmatprep.mubr.bf16.mxu0 0
        %1170 = vmatmul.mubr.bf16.gmra.mrb[0].mxu0 %v1070
        %v1171 = vpop.f32.mrb[0].mxu0
        %v1172 = vadd.f32 0.0, %v1171
        %v1173 = vpop.f32.mrb[0].mxu0
        %v1174 = vpop.f32.mrb[0].mxu0
        %v1175 = vadd.f32 0.0, %v1174
        %v1176 = vpop.f32.mrb[0].mxu0
        %1177 = vmatprep.mubr.bf16.mxu0 0
        %1178 = vmatmul.mubr.bf16.gmra.mrb[0].mxu0 %v1071
        %v1179 = vpop.f32.mrb[0].mxu0
        %v1180 = vadd.f32 0.0, %v1179
        %v1181 = vpop.f32.mrb[0].mxu0
        %v1182 = vpop.f32.mrb[0].mxu0
        %v1183 = vadd.f32 0.0, %v1182
        %v1184 = vpop.f32.mrb[0].mxu0
        %1185 = vdwg.mxu0
        %v1186 = vpack.c.bf16 %v1175, %v1172
        %v1187 = vpack.c.bf16 %v1183, %v1180
        %1188 = vst [vmem:[#allocation2 + $0x18] sm:$0xff] %v1186
        %1189 = vst [vmem:[#allocation2 + $0x28] sm:$0xff] %v1187
        %s1190 = scalar_lea.vmem %s479, 2 [#allocation9]
        %v1191 = vld [vmem:[%s1190] sm:$0x3]
        %s1192 = scalar_lea.vmem %s479, 10 [#allocation9]
        %v1193 = vld [vmem:[%s1192] sm:$0x3]
        %1194 = vst [vmem:[#allocation2] sm:$0x3] %v1191
        %1195 = vst [vmem:[#allocation2 + $0x8] sm:$0x3] %v1193
        %v1196 = vld [vmem:[#allocation2] sm:$0xff]
        %v1197 = vld [vmem:[#allocation2 + $0x8] sm:$0xff]
        %v1198 = vld [vmem:[#allocation2 + $0x10] sm:$0xff]
        %v1199 = vld [vmem:[#allocation2 + $0x18] sm:$0xff]
        %v1200 = vld [vmem:[#allocation2 + $0x20] sm:$0xff]
        %v1201 = vld [vmem:[#allocation2 + $0x28] sm:$0xff]
        %1202 = vmatprep.subr.bf16.mxu0 %v1197
        %1203 = vmatpush1.bf16.msra.mxu0 %v1196
        %1204 = vmatprep.subr.bf16.mxu0 %v1199
        %1205 = vmatpush1.bf16.msra.mxu0 %v1198
        %1206 = vmatprep.subr.bf16.mxu0 %v1201
        %1207 = vmatpush1.bf16.msra.mxu0 %v1200
        %1208 = vmatprep.subr.bf16.mxu0 0
        %1209 = vmatpush1.bf16.msra.mxu0 0
        %1210 = vmatprep.subr.bf16.mxu0 0
        %1211 = vmatpush1.bf16.msra.mxu0 0
        %1212 = vmatprep.subr.bf16.mxu0 0
        %1213 = vmatpush1.bf16.msra.mxu0 0
        %1214 = vmatprep.subr.bf16.mxu0 0
        %1215 = vmatpush1.bf16.msra.mxu0 0
        %1216 = vmatprep.subr.bf16.mxu0 0
        %1217 = vmatpush1.bf16.msra.mxu0 0
        %1218 = vmatprep.subr.bf16.mxu0 0
        %1219 = vmatpush1.bf16.msra.mxu0 0
        %1220 = vmatprep.subr.bf16.mxu0 0
        %1221 = vmatpush1.bf16.msra.mxu0 0
        %1222 = vmatprep.subr.bf16.mxu0 0
        %1223 = vmatpush1.bf16.msra.mxu0 0
        %1224 = vmatprep.subr.bf16.mxu0 0
        %1225 = vmatpush1.bf16.msra.mxu0 0
        %1226 = vmatprep.subr.bf16.mxu0 0
        %1227 = vmatpush1.bf16.msra.mxu0 0
        %1228 = vmatprep.subr.bf16.mxu0 0
        %1229 = vmatpush1.bf16.msra.mxu0 0
        %1230 = vmatprep.subr.bf16.mxu0 0
        %1231 = vmatpush1.bf16.msra.mxu0 0
        %1232 = vmatprep.subr.bf16.mxu0 0
        %1233 = vmatpush1.bf16.msra.mxu0 0
        %1234 = vmatprep.mubr.bf16.mxu0 0
        %1235 = vmatmul.mubr.bf16.gmra.mrb[0].mxu0 %v884
        %v1236 = vpop.f32.mrb[0].mxu0
        %v1237 = vadd.f32 %v601, %v1236
        %v1238 = vpop.f32.mrb[0].mxu0
        %v1239 = vadd.f32 %v601, %v1238
        %v1240 = vpop.f32.mrb[0].mxu0
        %v1241 = vadd.f32 %v606, %v1240
        %v1242 = vpop.f32.mrb[0].mxu0
        %v1243 = vadd.f32 %v606, %v1242
        %1244 = vmatprep.mubr.bf16.mxu0 0
        %1245 = vmatmul.mubr.bf16.gmra.mrb[0].mxu0 %v887
        %v1246 = vpop.f32.mrb[0].mxu0
        %v1247 = vadd.f32 %v611, %v1246
        %v1248 = vpop.f32.mrb[0].mxu0
        %v1249 = vadd.f32 %v611, %v1248
        %v1250 = vpop.f32.mrb[0].mxu0
        %v1251 = vadd.f32 %v616, %v1250
        %v1252 = vpop.f32.mrb[0].mxu0
        %v1253 = vadd.f32 %v616, %v1252
        %1254 = vdwg.mxu0
        %s1255 = scalar_lea.vmem [#allocation4], 64
        %1256 = vst [vmem:[%s1255] sm:$0xff] %v1237
        %1257 = vst [vmem:[%s1255 + $0x8] sm:$0xff] %v1239
        %1258 = vst [vmem:[%s1255 + $0x10] sm:$0xff] %v1241
        %1259 = vst [vmem:[%s1255 + $0x18] sm:$0xff] %v1243
        %1260 = vst [vmem:[%s1255 + $0x20] sm:$0xff] %v1247
        %1261 = vst [vmem:[%s1255 + $0x28] sm:$0xff] %v1249
        %1262 = vst [vmem:[%s1255 + $0x30] sm:$0xff] %v1251
        %1263 = vst [vmem:[%s1255 + $0x38] sm:$0xff] %v1253
        %v1264 = vld [vmem:[#allocation2] sm:$0xff]
        %v1265 = vld [vmem:[#allocation2 + $0x10] sm:$0xff]
        %s1266 = scalar_lea.vmem %s471, 128 [#allocation6]
        %v1267 = vld [vmem:[%s1266] sm:$0xf]
        %v1268 = vld [vmem:[%s1266 + $0x4] sm:$0xf]
        %v1269 = vld [vmem:[%s1266 + $0x8] sm:$0xf]
        %v1270 = vld [vmem:[%s1266 + $0xc] sm:$0xf]
        %v1271 = vld [vmem:[%s1266 + $0x10] sm:$0xf]
        %v1272 = vld [vmem:[%s1266 + $0x14] sm:$0xf]
        %v1273 = vld [vmem:[%s1266 + $0x18] sm:$0xf]
        %v1274 = vld [vmem:[%s1266 + $0x1c] sm:$0xf]
        %v1275 = vld [vmem:[%s1266 + $0x20] sm:$0xf]
        %v1276 = vld [vmem:[%s1266 + $0x24] sm:$0xf]
        %v1277 = vld [vmem:[%s1266 + $0x28] sm:$0xf]
        %v1278 = vld [vmem:[%s1266 + $0x2c] sm:$0xf]
        %v1279 = vld [vmem:[%s1266 + $0x30] sm:$0xf]
        %v1280 = vld [vmem:[%s1266 + $0x34] sm:$0xf]
        %v1281 = vld [vmem:[%s1266 + $0x38] sm:$0xf]
        %v1282 = vld [vmem:[%s1266 + $0x3c] sm:$0xf]
        %v1299 = vunpack.c.l.b16 %v1267
        %v1300 = vunpack.c.l.b16 %v1268
        %v1301 = vunpack.c.l.b16 %v1269
        %v1302 = vunpack.c.l.b16 %v1270
        %v1303 = vunpack.c.l.b16 %v1271
        %v1304 = vunpack.c.l.b16 %v1272
        %v1305 = vunpack.c.l.b16 %v1273
        %v1306 = vunpack.c.l.b16 %v1274
        %v1307 = vunpack.c.l.b16 %v1275
        %v1308 = vunpack.c.l.b16 %v1276
        %v1309 = vunpack.c.l.b16 %v1277
        %v1310 = vunpack.c.l.b16 %v1278
        %v1311 = vunpack.c.l.b16 %v1279
        %v1312 = vunpack.c.l.b16 %v1280
        %v1313 = vunpack.c.l.b16 %v1281
        %v1314 = vunpack.c.l.b16 %v1282
        %v1315 = vpack.c.b16 %v1300, %v1299
        %v1316 = vpack.c.b16 %v1302, %v1301
        %v1317 = vpack.c.b16 %v1304, %v1303
        %v1318 = vpack.c.b16 %v1306, %v1305
        %v1319 = vpack.c.b16 %v1308, %v1307
        %v1320 = vpack.c.b16 %v1310, %v1309
        %v1321 = vpack.c.b16 %v1312, %v1311
        %v1322 = vpack.c.b16 %v1314, %v1313
        %1331 = vmatprep.subr.bf16.mxu0 0
        %1332 = vmatpush1.bf16.msra.mxu0 %v1315
        %1333 = vmatprep.subr.bf16.mxu0 0
        %1334 = vmatpush1.bf16.msra.mxu0 %v1316
        %1335 = vmatprep.subr.bf16.mxu0 0
        %1336 = vmatpush1.bf16.msra.mxu0 %v1317
        %1337 = vmatprep.subr.bf16.mxu0 0
        %1338 = vmatpush1.bf16.msra.mxu0 %v1318
        %1339 = vmatprep.subr.bf16.mxu0 0
        %1340 = vmatpush1.bf16.msra.mxu0 %v1319
        %1341 = vmatprep.subr.bf16.mxu0 0
        %1342 = vmatpush1.bf16.msra.mxu0 %v1320
        %1343 = vmatprep.subr.bf16.mxu0 0
        %1344 = vmatpush1.bf16.msra.mxu0 %v1321
        %1345 = vmatprep.subr.bf16.mxu0 0
        %1346 = vmatpush1.bf16.msra.mxu0 %v1322
        %1347 = vmatprep.subr.bf16.mxu0 0
        %1348 = vmatpush1.bf16.msra.mxu0 0
        %1349 = vmatprep.subr.bf16.mxu0 0
        %1350 = vmatpush1.bf16.msra.mxu0 0
        %1351 = vmatprep.subr.bf16.mxu0 0
        %1352 = vmatpush1.bf16.msra.mxu0 0
        %1353 = vmatprep.subr.bf16.mxu0 0
        %1354 = vmatpush1.bf16.msra.mxu0 0
        %1355 = vmatprep.subr.bf16.mxu0 0
        %1356 = vmatpush1.bf16.msra.mxu0 0
        %1357 = vmatprep.subr.bf16.mxu0 0
        %1358 = vmatpush1.bf16.msra.mxu0 0
        %1359 = vmatprep.subr.bf16.mxu0 0
        %1360 = vmatpush1.bf16.msra.mxu0 0
        %1361 = vmatprep.subr.bf16.mxu0 0
        %1362 = vmatpush1.bf16.msra.mxu0 0
        %1363 = vmatprep.mubr.bf16.mxu0 0
        %1364 = vmatmul.mubr.bf16.gmra.mrb[0].mxu0 %v1264
        %v1365 = vpop.f32.mrb[0].mxu0
        %v1366 = vadd.f32 0.0, %v1365
        %v1367 = vpop.f32.mrb[0].mxu0
        %v1368 = vpop.f32.mrb[0].mxu0
        %v1369 = vadd.f32 0.0, %v1368
        %v1370 = vpop.f32.mrb[0].mxu0
        %1371 = vmatprep.mubr.bf16.mxu0 0
        %1372 = vmatmul.mubr.bf16.gmra.mrb[0].mxu0 %v1265
        %v1373 = vpop.f32.mrb[0].mxu0
        %v1374 = vadd.f32 0.0, %v1373
        %v1375 = vpop.f32.mrb[0].mxu0
        %v1376 = vpop.f32.mrb[0].mxu0
        %v1377 = vadd.f32 0.0, %v1376
        %v1378 = vpop.f32.mrb[0].mxu0
        %1379 = vdwg.mxu0
        %v1380 = vpack.c.bf16 %v1369, %v1366
        %v1381 = vpack.c.bf16 %v1377, %v1374
        %1382 = vst [vmem:[#allocation2 + $0x10] sm:$0xff] %v1380
        %1383 = vst [vmem:[#allocation2 + $0x20] sm:$0xff] %v1381
        %v1384 = vld [vmem:[#allocation2 + $0x8] sm:$0xff]
        %v1385 = vld [vmem:[#allocation2 + $0x18] sm:$0xff]
        %s1386 = scalar_lea.vmem %s471, 384 [#allocation6]
        %v1387 = vld [vmem:[%s1386] sm:$0xf]
        %v1388 = vld [vmem:[%s1386 + $0x4] sm:$0xf]
        %v1389 = vld [vmem:[%s1386 + $0x8] sm:$0xf]
        %v1390 = vld [vmem:[%s1386 + $0xc] sm:$0xf]
        %v1391 = vld [vmem:[%s1386 + $0x10] sm:$0xf]
        %v1392 = vld [vmem:[%s1386 + $0x14] sm:$0xf]
        %v1393 = vld [vmem:[%s1386 + $0x18] sm:$0xf]
        %v1394 = vld [vmem:[%s1386 + $0x1c] sm:$0xf]
        %v1395 = vld [vmem:[%s1386 + $0x20] sm:$0xf]
        %v1396 = vld [vmem:[%s1386 + $0x24] sm:$0xf]
        %v1397 = vld [vmem:[%s1386 + $0x28] sm:$0xf]
        %v1398 = vld [vmem:[%s1386 + $0x2c] sm:$0xf]
        %v1399 = vld [vmem:[%s1386 + $0x30] sm:$0xf]
        %v1400 = vld [vmem:[%s1386 + $0x34] sm:$0xf]
        %v1401 = vld [vmem:[%s1386 + $0x38] sm:$0xf]
        %v1402 = vld [vmem:[%s1386 + $0x3c] sm:$0xf]
        %v1419 = vunpack.c.l.b16 %v1387
        %v1420 = vunpack.c.l.b16 %v1388
        %v1421 = vunpack.c.l.b16 %v1389
        %v1422 = vunpack.c.l.b16 %v1390
        %v1423 = vunpack.c.l.b16 %v1391
        %v1424 = vunpack.c.l.b16 %v1392
        %v1425 = vunpack.c.l.b16 %v1393
        %v1426 = vunpack.c.l.b16 %v1394
        %v1427 = vunpack.c.l.b16 %v1395
        %v1428 = vunpack.c.l.b16 %v1396
        %v1429 = vunpack.c.l.b16 %v1397
        %v1430 = vunpack.c.l.b16 %v1398
        %v1431 = vunpack.c.l.b16 %v1399
        %v1432 = vunpack.c.l.b16 %v1400
        %v1433 = vunpack.c.l.b16 %v1401
        %v1434 = vunpack.c.l.b16 %v1402
        %v1435 = vpack.c.b16 %v1420, %v1419
        %v1436 = vpack.c.b16 %v1422, %v1421
        %v1437 = vpack.c.b16 %v1424, %v1423
        %v1438 = vpack.c.b16 %v1426, %v1425
        %v1439 = vpack.c.b16 %v1428, %v1427
        %v1440 = vpack.c.b16 %v1430, %v1429
        %v1441 = vpack.c.b16 %v1432, %v1431
        %v1442 = vpack.c.b16 %v1434, %v1433
        %1451 = vmatprep.subr.bf16.mxu0 0
        %1452 = vmatpush1.bf16.msra.mxu0 %v1435
        %1453 = vmatprep.subr.bf16.mxu0 0
        %1454 = vmatpush1.bf16.msra.mxu0 %v1436
        %1455 = vmatprep.subr.bf16.mxu0 0
        %1456 = vmatpush1.bf16.msra.mxu0 %v1437
        %1457 = vmatprep.subr.bf16.mxu0 0
        %1458 = vmatpush1.bf16.msra.mxu0 %v1438
        %1459 = vmatprep.subr.bf16.mxu0 0
        %1460 = vmatpush1.bf16.msra.mxu0 %v1439
        %1461 = vmatprep.subr.bf16.mxu0 0
        %1462 = vmatpush1.bf16.msra.mxu0 %v1440
        %1463 = vmatprep.subr.bf16.mxu0 0
        %1464 = vmatpush1.bf16.msra.mxu0 %v1441
        %1465 = vmatprep.subr.bf16.mxu0 0
        %1466 = vmatpush1.bf16.msra.mxu0 %v1442
        %1467 = vmatprep.subr.bf16.mxu0 0
        %1468 = vmatpush1.bf16.msra.mxu0 0
        %1469 = vmatprep.subr.bf16.mxu0 0
        %1470 = vmatpush1.bf16.msra.mxu0 0
        %1471 = vmatprep.subr.bf16.mxu0 0
        %1472 = vmatpush1.bf16.msra.mxu0 0
        %1473 = vmatprep.subr.bf16.mxu0 0
        %1474 = vmatpush1.bf16.msra.mxu0 0
        %1475 = vmatprep.subr.bf16.mxu0 0
        %1476 = vmatpush1.bf16.msra.mxu0 0
        %1477 = vmatprep.subr.bf16.mxu0 0
        %1478 = vmatpush1.bf16.msra.mxu0 0
        %1479 = vmatprep.subr.bf16.mxu0 0
        %1480 = vmatpush1.bf16.msra.mxu0 0
        %1481 = vmatprep.subr.bf16.mxu0 0
        %1482 = vmatpush1.bf16.msra.mxu0 0
        %1483 = vmatprep.mubr.bf16.mxu0 0
        %1484 = vmatmul.mubr.bf16.gmra.mrb[0].mxu0 %v1384
        %v1485 = vpop.f32.mrb[0].mxu0
        %v1486 = vadd.f32 0.0, %v1485
        %v1487 = vpop.f32.mrb[0].mxu0
        %v1488 = vpop.f32.mrb[0].mxu0
        %v1489 = vadd.f32 0.0, %v1488
        %v1490 = vpop.f32.mrb[0].mxu0
        %1491 = vmatprep.mubr.bf16.mxu0 0
        %1492 = vmatmul.mubr.bf16.gmra.mrb[0].mxu0 %v1385
        %v1493 = vpop.f32.mrb[0].mxu0
        %v1494 = vadd.f32 0.0, %v1493
        %v1495 = vpop.f32.mrb[0].mxu0
        %v1496 = vpop.f32.mrb[0].mxu0
        %v1497 = vadd.f32 0.0, %v1496
        %v1498 = vpop.f32.mrb[0].mxu0
        %1499 = vdwg.mxu0
        %v1500 = vpack.c.bf16 %v1489, %v1486
        %v1501 = vpack.c.bf16 %v1497, %v1494
        %1502 = vst [vmem:[#allocation2 + $0x18] sm:$0xff] %v1500
        %1503 = vst [vmem:[#allocation2 + $0x28] sm:$0xff] %v1501
        %s1504 = scalar_lea.vmem %s479, 4 [#allocation9]
        %v1505 = vld [vmem:[%s1504] sm:$0x3]
        %s1506 = scalar_lea.vmem %s479, 12 [#allocation9]
        %v1507 = vld [vmem:[%s1506] sm:$0x3]
        %1508 = vst [vmem:[#allocation2] sm:$0x3] %v1505
        %1509 = vst [vmem:[#allocation2 + $0x8] sm:$0x3] %v1507
        %v1510 = vld [vmem:[#allocation2] sm:$0xff]
        %v1511 = vld [vmem:[#allocation2 + $0x8] sm:$0xff]
        %v1512 = vld [vmem:[#allocation2 + $0x10] sm:$0xff]
        %v1513 = vld [vmem:[#allocation2 + $0x18] sm:$0xff]
        %v1514 = vld [vmem:[#allocation2 + $0x20] sm:$0xff]
        %v1515 = vld [vmem:[#allocation2 + $0x28] sm:$0xff]
        %1516 = vmatprep.subr.bf16.mxu0 %v1511
        %1517 = vmatpush1.bf16.msra.mxu0 %v1510
        %1518 = vmatprep.subr.bf16.mxu0 %v1513
        %1519 = vmatpush1.bf16.msra.mxu0 %v1512
        %1520 = vmatprep.subr.bf16.mxu0 %v1515
        %1521 = vmatpush1.bf16.msra.mxu0 %v1514
        %1522 = vmatprep.subr.bf16.mxu0 0
        %1523 = vmatpush1.bf16.msra.mxu0 0
        %1524 = vmatprep.subr.bf16.mxu0 0
        %1525 = vmatpush1.bf16.msra.mxu0 0
        %1526 = vmatprep.subr.bf16.mxu0 0
        %1527 = vmatpush1.bf16.msra.mxu0 0
        %1528 = vmatprep.subr.bf16.mxu0 0
        %1529 = vmatpush1.bf16.msra.mxu0 0
        %1530 = vmatprep.subr.bf16.mxu0 0
        %1531 = vmatpush1.bf16.msra.mxu0 0
        %1532 = vmatprep.subr.bf16.mxu0 0
        %1533 = vmatpush1.bf16.msra.mxu0 0
        %1534 = vmatprep.subr.bf16.mxu0 0
        %1535 = vmatpush1.bf16.msra.mxu0 0
        %1536 = vmatprep.subr.bf16.mxu0 0
        %1537 = vmatpush1.bf16.msra.mxu0 0
        %1538 = vmatprep.subr.bf16.mxu0 0
        %1539 = vmatpush1.bf16.msra.mxu0 0
        %1540 = vmatprep.subr.bf16.mxu0 0
        %1541 = vmatpush1.bf16.msra.mxu0 0
        %1542 = vmatprep.subr.bf16.mxu0 0
        %1543 = vmatpush1.bf16.msra.mxu0 0
        %1544 = vmatprep.subr.bf16.mxu0 0
        %1545 = vmatpush1.bf16.msra.mxu0 0
        %1546 = vmatprep.subr.bf16.mxu0 0
        %1547 = vmatpush1.bf16.msra.mxu0 0
        %1548 = vmatprep.mubr.bf16.mxu0 0
        %1549 = vmatmul.mubr.bf16.gmra.mrb[0].mxu0 %v884
        %v1550 = vpop.f32.mrb[0].mxu0
        %v1551 = vadd.f32 %v601, %v1550
        %v1552 = vpop.f32.mrb[0].mxu0
        %v1553 = vadd.f32 %v601, %v1552
        %v1554 = vpop.f32.mrb[0].mxu0
        %v1555 = vadd.f32 %v606, %v1554
        %v1556 = vpop.f32.mrb[0].mxu0
        %v1557 = vadd.f32 %v606, %v1556
        %1558 = vmatprep.mubr.bf16.mxu0 0
        %1559 = vmatmul.mubr.bf16.gmra.mrb[0].mxu0 %v887
        %v1560 = vpop.f32.mrb[0].mxu0
        %v1561 = vadd.f32 %v611, %v1560
        %v1562 = vpop.f32.mrb[0].mxu0
        %v1563 = vadd.f32 %v611, %v1562
        %v1564 = vpop.f32.mrb[0].mxu0
        %v1565 = vadd.f32 %v616, %v1564
        %v1566 = vpop.f32.mrb[0].mxu0
        %v1567 = vadd.f32 %v616, %v1566
        %1568 = vdwg.mxu0
        %s1569 = scalar_lea.vmem [#allocation4], 128
        %1570 = vst [vmem:[%s1569] sm:$0xff] %v1551
        %1571 = vst [vmem:[%s1569 + $0x8] sm:$0xff] %v1553
        %1572 = vst [vmem:[%s1569 + $0x10] sm:$0xff] %v1555
        %1573 = vst [vmem:[%s1569 + $0x18] sm:$0xff] %v1557
        %1574 = vst [vmem:[%s1569 + $0x20] sm:$0xff] %v1561
        %1575 = vst [vmem:[%s1569 + $0x28] sm:$0xff] %v1563
        %1576 = vst [vmem:[%s1569 + $0x30] sm:$0xff] %v1565
        %1577 = vst [vmem:[%s1569 + $0x38] sm:$0xff] %v1567
        %v1578 = vld [vmem:[#allocation2] sm:$0xff]
        %v1579 = vld [vmem:[#allocation2 + $0x10] sm:$0xff]
        %s1580 = scalar_lea.vmem %s471, 192 [#allocation6]
        %v1581 = vld [vmem:[%s1580] sm:$0xf]
        %v1582 = vld [vmem:[%s1580 + $0x4] sm:$0xf]
        %v1583 = vld [vmem:[%s1580 + $0x8] sm:$0xf]
        %v1584 = vld [vmem:[%s1580 + $0xc] sm:$0xf]
        %v1585 = vld [vmem:[%s1580 + $0x10] sm:$0xf]
        %v1586 = vld [vmem:[%s1580 + $0x14] sm:$0xf]
        %v1587 = vld [vmem:[%s1580 + $0x18] sm:$0xf]
        %v1588 = vld [vmem:[%s1580 + $0x1c] sm:$0xf]
        %v1589 = vld [vmem:[%s1580 + $0x20] sm:$0xf]
        %v1590 = vld [vmem:[%s1580 + $0x24] sm:$0xf]
        %v1591 = vld [vmem:[%s1580 + $0x28] sm:$0xf]
        %v1592 = vld [vmem:[%s1580 + $0x2c] sm:$0xf]
        %v1593 = vld [vmem:[%s1580 + $0x30] sm:$0xf]
        %v1594 = vld [vmem:[%s1580 + $0x34] sm:$0xf]
        %v1595 = vld [vmem:[%s1580 + $0x38] sm:$0xf]
        %v1596 = vld [vmem:[%s1580 + $0x3c] sm:$0xf]
        %v1613 = vunpack.c.l.b16 %v1581
        %v1614 = vunpack.c.l.b16 %v1582
        %v1615 = vunpack.c.l.b16 %v1583
        %v1616 = vunpack.c.l.b16 %v1584
        %v1617 = vunpack.c.l.b16 %v1585
        %v1618 = vunpack.c.l.b16 %v1586
        %v1619 = vunpack.c.l.b16 %v1587
        %v1620 = vunpack.c.l.b16 %v1588
        %v1621 = vunpack.c.l.b16 %v1589
        %v1622 = vunpack.c.l.b16 %v1590
        %v1623 = vunpack.c.l.b16 %v1591
        %v1624 = vunpack.c.l.b16 %v1592
        %v1625 = vunpack.c.l.b16 %v1593
        %v1626 = vunpack.c.l.b16 %v1594
        %v1627 = vunpack.c.l.b16 %v1595
        %v1628 = vunpack.c.l.b16 %v1596
        %v1629 = vpack.c.b16 %v1614, %v1613
        %v1630 = vpack.c.b16 %v1616, %v1615
        %v1631 = vpack.c.b16 %v1618, %v1617
        %v1632 = vpack.c.b16 %v1620, %v1619
        %v1633 = vpack.c.b16 %v1622, %v1621
        %v1634 = vpack.c.b16 %v1624, %v1623
        %v1635 = vpack.c.b16 %v1626, %v1625
        %v1636 = vpack.c.b16 %v1628, %v1627
        %1645 = vmatprep.subr.bf16.mxu0 0
        %1646 = vmatpush1.bf16.msra.mxu0 %v1629
        %1647 = vmatprep.subr.bf16.mxu0 0
        %1648 = vmatpush1.bf16.msra.mxu0 %v1630
        %1649 = vmatprep.subr.bf16.mxu0 0
        %1650 = vmatpush1.bf16.msra.mxu0 %v1631
        %1651 = vmatprep.subr.bf16.mxu0 0
        %1652 = vmatpush1.bf16.msra.mxu0 %v1632
        %1653 = vmatprep.subr.bf16.mxu0 0
        %1654 = vmatpush1.bf16.msra.mxu0 %v1633
        %1655 = vmatprep.subr.bf16.mxu0 0
        %1656 = vmatpush1.bf16.msra.mxu0 %v1634
        %1657 = vmatprep.subr.bf16.mxu0 0
        %1658 = vmatpush1.bf16.msra.mxu0 %v1635
        %1659 = vmatprep.subr.bf16.mxu0 0
        %1660 = vmatpush1.bf16.msra.mxu0 %v1636
        %1661 = vmatprep.subr.bf16.mxu0 0
        %1662 = vmatpush1.bf16.msra.mxu0 0
        %1663 = vmatprep.subr.bf16.mxu0 0
        %1664 = vmatpush1.bf16.msra.mxu0 0
        %1665 = vmatprep.subr.bf16.mxu0 0
        %1666 = vmatpush1.bf16.msra.mxu0 0
        %1667 = vmatprep.subr.bf16.mxu0 0
        %1668 = vmatpush1.bf16.msra.mxu0 0
        %1669 = vmatprep.subr.bf16.mxu0 0
        %1670 = vmatpush1.bf16.msra.mxu0 0
        %1671 = vmatprep.subr.bf16.mxu0 0
        %1672 = vmatpush1.bf16.msra.mxu0 0
        %1673 = vmatprep.subr.bf16.mxu0 0
        %1674 = vmatpush1.bf16.msra.mxu0 0
        %1675 = vmatprep.subr.bf16.mxu0 0
        %1676 = vmatpush1.bf16.msra.mxu0 0
        %1677 = vmatprep.mubr.bf16.mxu0 0
        %1678 = vmatmul.mubr.bf16.gmra.mrb[0].mxu0 %v1578
        %v1679 = vpop.f32.mrb[0].mxu0
        %v1680 = vadd.f32 0.0, %v1679
        %v1681 = vpop.f32.mrb[0].mxu0
        %v1682 = vpop.f32.mrb[0].mxu0
        %v1683 = vadd.f32 0.0, %v1682
        %v1684 = vpop.f32.mrb[0].mxu0
        %1685 = vmatprep.mubr.bf16.mxu0 0
        %1686 = vmatmul.mubr.bf16.gmra.mrb[0].mxu0 %v1579
        %v1687 = vpop.f32.mrb[0].mxu0
        %v1688 = vadd.f32 0.0, %v1687
        %v1689 = vpop.f32.mrb[0].mxu0
        %v1690 = vpop.f32.mrb[0].mxu0
        %v1691 = vadd.f32 0.0, %v1690
        %v1692 = vpop.f32.mrb[0].mxu0
        %1693 = vdwg.mxu0
        %v1694 = vpack.c.bf16 %v1683, %v1680
        %v1695 = vpack.c.bf16 %v1691, %v1688
        %1696 = vst [vmem:[#allocation2 + $0x10] sm:$0xff] %v1694
        %1697 = vst [vmem:[#allocation2 + $0x20] sm:$0xff] %v1695
        %v1698 = vld [vmem:[#allocation2 + $0x8] sm:$0xff]
        %v1699 = vld [vmem:[#allocation2 + $0x18] sm:$0xff]
        %s1700 = scalar_lea.vmem %s471, 448 [#allocation6]
        %v1701 = vld [vmem:[%s1700] sm:$0xf]
        %v1702 = vld [vmem:[%s1700 + $0x4] sm:$0xf]
        %v1703 = vld [vmem:[%s1700 + $0x8] sm:$0xf]
        %v1704 = vld [vmem:[%s1700 + $0xc] sm:$0xf]
        %v1705 = vld [vmem:[%s1700 + $0x10] sm:$0xf]
        %v1706 = vld [vmem:[%s1700 + $0x14] sm:$0xf]
        %v1707 = vld [vmem:[%s1700 + $0x18] sm:$0xf]
        %v1708 = vld [vmem:[%s1700 + $0x1c] sm:$0xf]
        %v1709 = vld [vmem:[%s1700 + $0x20] sm:$0xf]
        %v1710 = vld [vmem:[%s1700 + $0x24] sm:$0xf]
        %v1711 = vld [vmem:[%s1700 + $0x28] sm:$0xf]
        %v1712 = vld [vmem:[%s1700 + $0x2c] sm:$0xf]
        %v1713 = vld [vmem:[%s1700 + $0x30] sm:$0xf]
        %v1714 = vld [vmem:[%s1700 + $0x34] sm:$0xf]
        %v1715 = vld [vmem:[%s1700 + $0x38] sm:$0xf]
        %v1716 = vld [vmem:[%s1700 + $0x3c] sm:$0xf]
        %v1733 = vunpack.c.l.b16 %v1701
        %v1734 = vunpack.c.l.b16 %v1702
        %v1735 = vunpack.c.l.b16 %v1703
        %v1736 = vunpack.c.l.b16 %v1704
        %v1737 = vunpack.c.l.b16 %v1705
        %v1738 = vunpack.c.l.b16 %v1706
        %v1739 = vunpack.c.l.b16 %v1707
        %v1740 = vunpack.c.l.b16 %v1708
        %v1741 = vunpack.c.l.b16 %v1709
        %v1742 = vunpack.c.l.b16 %v1710
        %v1743 = vunpack.c.l.b16 %v1711
        %v1744 = vunpack.c.l.b16 %v1712
        %v1745 = vunpack.c.l.b16 %v1713
        %v1746 = vunpack.c.l.b16 %v1714
        %v1747 = vunpack.c.l.b16 %v1715
        %v1748 = vunpack.c.l.b16 %v1716
        %v1749 = vpack.c.b16 %v1734, %v1733
        %v1750 = vpack.c.b16 %v1736, %v1735
        %v1751 = vpack.c.b16 %v1738, %v1737
        %v1752 = vpack.c.b16 %v1740, %v1739
        %v1753 = vpack.c.b16 %v1742, %v1741
        %v1754 = vpack.c.b16 %v1744, %v1743
        %v1755 = vpack.c.b16 %v1746, %v1745
        %v1756 = vpack.c.b16 %v1748, %v1747
        %1765 = vmatprep.subr.bf16.mxu0 0
        %1766 = vmatpush1.bf16.msra.mxu0 %v1749
        %1767 = vmatprep.subr.bf16.mxu0 0
        %1768 = vmatpush1.bf16.msra.mxu0 %v1750
        %1769 = vmatprep.subr.bf16.mxu0 0
        %1770 = vmatpush1.bf16.msra.mxu0 %v1751
        %1771 = vmatprep.subr.bf16.mxu0 0
        %1772 = vmatpush1.bf16.msra.mxu0 %v1752
        %1773 = vmatprep.subr.bf16.mxu0 0
        %1774 = vmatpush1.bf16.msra.mxu0 %v1753
        %1775 = vmatprep.subr.bf16.mxu0 0
        %1776 = vmatpush1.bf16.msra.mxu0 %v1754
        %1777 = vmatprep.subr.bf16.mxu0 0
        %1778 = vmatpush1.bf16.msra.mxu0 %v1755
        %1779 = vmatprep.subr.bf16.mxu0 0
        %1780 = vmatpush1.bf16.msra.mxu0 %v1756
        %1781 = vmatprep.subr.bf16.mxu0 0
        %1782 = vmatpush1.bf16.msra.mxu0 0
        %1783 = vmatprep.subr.bf16.mxu0 0
        %1784 = vmatpush1.bf16.msra.mxu0 0
        %1785 = vmatprep.subr.bf16.mxu0 0
        %1786 = vmatpush1.bf16.msra.mxu0 0
        %1787 = vmatprep.subr.bf16.mxu0 0
        %1788 = vmatpush1.bf16.msra.mxu0 0
        %1789 = vmatprep.subr.bf16.mxu0 0
        %1790 = vmatpush1.bf16.msra.mxu0 0
        %1791 = vmatprep.subr.bf16.mxu0 0
        %1792 = vmatpush1.bf16.msra.mxu0 0
        %1793 = vmatprep.subr.bf16.mxu0 0
        %1794 = vmatpush1.bf16.msra.mxu0 0
        %1795 = vmatprep.subr.bf16.mxu0 0
        %1796 = vmatpush1.bf16.msra.mxu0 0
        %1797 = vmatprep.mubr.bf16.mxu0 0
        %1798 = vmatmul.mubr.bf16.gmra.mrb[0].mxu0 %v1698
        %v1799 = vpop.f32.mrb[0].mxu0
        %v1800 = vadd.f32 0.0, %v1799
        %v1801 = vpop.f32.mrb[0].mxu0
        %v1802 = vpop.f32.mrb[0].mxu0
        %v1803 = vadd.f32 0.0, %v1802
        %v1804 = vpop.f32.mrb[0].mxu0
        %1805 = vmatprep.mubr.bf16.mxu0 0
        %1806 = vmatmul.mubr.bf16.gmra.mrb[0].mxu0 %v1699
        %v1807 = vpop.f32.mrb[0].mxu0
        %v1808 = vadd.f32 0.0, %v1807
        %v1809 = vpop.f32.mrb[0].mxu0
        %v1810 = vpop.f32.mrb[0].mxu0
        %v1811 = vadd.f32 0.0, %v1810
        %v1812 = vpop.f32.mrb[0].mxu0
        %1813 = vdwg.mxu0
        %v1814 = vpack.c.bf16 %v1803, %v1800
        %v1815 = vpack.c.bf16 %v1811, %v1808
        %1816 = vst [vmem:[#allocation2 + $0x18] sm:$0xff] %v1814
        %1817 = vst [vmem:[#allocation2 + $0x28] sm:$0xff] %v1815
        %s1818 = scalar_lea.vmem %s479, 6 [#allocation9]
        %v1819 = vld [vmem:[%s1818] sm:$0x3]
        %s1820 = scalar_lea.vmem %s479, 14 [#allocation9]
        %v1821 = vld [vmem:[%s1820] sm:$0x3]
        %1822 = vst [vmem:[#allocation2] sm:$0x3] %v1819
        %1823 = vst [vmem:[#allocation2 + $0x8] sm:$0x3] %v1821
        %v1824 = vld [vmem:[#allocation2] sm:$0xff]
        %v1825 = vld [vmem:[#allocation2 + $0x8] sm:$0xff]
        %v1826 = vld [vmem:[#allocation2 + $0x10] sm:$0xff]
        %v1827 = vld [vmem:[#allocation2 + $0x18] sm:$0xff]
        %v1828 = vld [vmem:[#allocation2 + $0x20] sm:$0xff]
        %v1829 = vld [vmem:[#allocation2 + $0x28] sm:$0xff]
        %1830 = vmatprep.subr.bf16.mxu0 %v1825
        %1831 = vmatpush1.bf16.msra.mxu0 %v1824
        %1832 = vmatprep.subr.bf16.mxu0 %v1827
        %1833 = vmatpush1.bf16.msra.mxu0 %v1826
        %1834 = vmatprep.subr.bf16.mxu0 %v1829
        %1835 = vmatpush1.bf16.msra.mxu0 %v1828
        %1836 = vmatprep.subr.bf16.mxu0 0
        %1837 = vmatpush1.bf16.msra.mxu0 0
        %1838 = vmatprep.subr.bf16.mxu0 0
        %1839 = vmatpush1.bf16.msra.mxu0 0
        %1840 = vmatprep.subr.bf16.mxu0 0
        %1841 = vmatpush1.bf16.msra.mxu0 0
        %1842 = vmatprep.subr.bf16.mxu0 0
        %1843 = vmatpush1.bf16.msra.mxu0 0
        %1844 = vmatprep.subr.bf16.mxu0 0
        %1845 = vmatpush1.bf16.msra.mxu0 0
        %1846 = vmatprep.subr.bf16.mxu0 0
        %1847 = vmatpush1.bf16.msra.mxu0 0
        %1848 = vmatprep.subr.bf16.mxu0 0
        %1849 = vmatpush1.bf16.msra.mxu0 0
        %1850 = vmatprep.subr.bf16.mxu0 0
        %1851 = vmatpush1.bf16.msra.mxu0 0
        %1852 = vmatprep.subr.bf16.mxu0 0
        %1853 = vmatpush1.bf16.msra.mxu0 0
        %1854 = vmatprep.subr.bf16.mxu0 0
        %1855 = vmatpush1.bf16.msra.mxu0 0
        %1856 = vmatprep.subr.bf16.mxu0 0
        %1857 = vmatpush1.bf16.msra.mxu0 0
        %1858 = vmatprep.subr.bf16.mxu0 0
        %1859 = vmatpush1.bf16.msra.mxu0 0
        %1860 = vmatprep.subr.bf16.mxu0 0
        %1861 = vmatpush1.bf16.msra.mxu0 0
        %1862 = vmatprep.mubr.bf16.mxu0 0
        %1863 = vmatmul.mubr.bf16.gmra.mrb[0].mxu0 %v884
        %v1864 = vpop.f32.mrb[0].mxu0
        %v1865 = vadd.f32 %v601, %v1864
        %v1866 = vpop.f32.mrb[0].mxu0
        %v1867 = vadd.f32 %v601, %v1866
        %v1868 = vpop.f32.mrb[0].mxu0
        %v1869 = vadd.f32 %v606, %v1868
        %v1870 = vpop.f32.mrb[0].mxu0
        %v1871 = vadd.f32 %v606, %v1870
        %1872 = vmatprep.mubr.bf16.mxu0 0
        %1873 = vmatmul.mubr.bf16.gmra.mrb[0].mxu0 %v887
        %v1874 = vpop.f32.mrb[0].mxu0
        %v1875 = vadd.f32 %v611, %v1874
        %v1876 = vpop.f32.mrb[0].mxu0
        %v1877 = vadd.f32 %v611, %v1876
        %v1878 = vpop.f32.mrb[0].mxu0
        %v1879 = vadd.f32 %v616, %v1878
        %v1880 = vpop.f32.mrb[0].mxu0
        %v1881 = vadd.f32 %v616, %v1880
        %1882 = vdwg.mxu0
        %s1883 = scalar_lea.vmem [#allocation4], 192
        %1884 = vst [vmem:[%s1883] sm:$0xff] %v1865
        %1885 = vst [vmem:[%s1883 + $0x8] sm:$0xff] %v1867
        %1886 = vst [vmem:[%s1883 + $0x10] sm:$0xff] %v1869
        %1887 = vst [vmem:[%s1883 + $0x18] sm:$0xff] %v1871
        %1888 = vst [vmem:[%s1883 + $0x20] sm:$0xff] %v1875
        %1889 = vst [vmem:[%s1883 + $0x28] sm:$0xff] %v1877
        %1890 = vst [vmem:[%s1883 + $0x30] sm:$0xff] %v1879
        %1891 = vst [vmem:[%s1883 + $0x38] sm:$0xff] %v1881
        %v1892 = vld [vmem:[#allocation5] sm:$0xff]
        %v1893 = vld [vmem:[#allocation5 + $0x8] sm:$0xff]
        %v1894 = vld [vmem:[#allocation5 + $0x10] sm:$0xff]
        %v1895 = vld [vmem:[#allocation5 + $0x18] sm:$0xff]
        %v1896 = vld [vmem:[#allocation5 + $0x20] sm:$0xff]
        %v1897 = vld [vmem:[#allocation5 + $0x28] sm:$0xff]
        %v1898 = vld [vmem:[#allocation5 + $0x30] sm:$0xff]
        %v1899 = vld [vmem:[#allocation5 + $0x38] sm:$0xff]
        %v1900 = vpack.c.bf16 %v1894, %v1892
        %v1901 = vpack.c.bf16 %v1895, %v1893
        %v1902 = vpack.c.bf16 %v1898, %v1896
        %v1903 = vpack.c.bf16 %v1899, %v1897
        // Predicated region
        $region122: #{tpu_custom_call.1} parent=88 // pred_check
          %p1904 = pneg %p618
        $region123: #{tpu_custom_call.1} parent=88 // pred_check_branch
          %1906 = sbr.rel (%p1904) target = $region125
        $region124: #{tpu_custom_call.1} parent=88 // pred_region
          %v1907 = vld [vmem:[#allocation3] sm:$0xff]
          %v1908 = vld [vmem:[#allocation3 + $0x10] sm:$0xff]
          %v1909 = vld [vmem:[#allocation3 + $0x20] sm:$0xff]
          %v1910 = vld [vmem:[#allocation3 + $0x30] sm:$0xff]
          %v1911 = vld [vmem:[%s471] sm:$0xf]
          %v1912 = vld [vmem:[%s471 + $0x4] sm:$0xf]
          %v1913 = vld [vmem:[%s471 + $0x8] sm:$0xf]
          %v1914 = vld [vmem:[%s471 + $0xc] sm:$0xf]
          %v1915 = vld [vmem:[%s471 + $0x10] sm:$0xf]
          %v1916 = vld [vmem:[%s471 + $0x14] sm:$0xf]
          %v1917 = vld [vmem:[%s471 + $0x18] sm:$0xf]
          %v1918 = vld [vmem:[%s471 + $0x1c] sm:$0xf]
          %v1919 = vld [vmem:[%s471 + $0x20] sm:$0xf]
          %v1920 = vld [vmem:[%s471 + $0x24] sm:$0xf]
          %v1921 = vld [vmem:[%s471 + $0x28] sm:$0xf]
          %v1922 = vld [vmem:[%s471 + $0x2c] sm:$0xf]
          %v1923 = vld [vmem:[%s471 + $0x30] sm:$0xf]
          %v1924 = vld [vmem:[%s471 + $0x34] sm:$0xf]
          %v1925 = vld [vmem:[%s471 + $0x38] sm:$0xf]
          %v1926 = vld [vmem:[%s471 + $0x3c] sm:$0xf]
          %v1943 = vunpack.c.l.b16 %v1911
          %v1944 = vunpack.c.l.b16 %v1912
          %v1945 = vunpack.c.l.b16 %v1913
          %v1946 = vunpack.c.l.b16 %v1914
          %v1947 = vunpack.c.l.b16 %v1915
          %v1948 = vunpack.c.l.b16 %v1916
          %v1949 = vunpack.c.l.b16 %v1917
          %v1950 = vunpack.c.l.b16 %v1918
          %v1951 = vunpack.c.l.b16 %v1919
          %v1952 = vunpack.c.l.b16 %v1920
          %v1953 = vunpack.c.l.b16 %v1921
          %v1954 = vunpack.c.l.b16 %v1922
          %v1955 = vunpack.c.l.b16 %v1923
          %v1956 = vunpack.c.l.b16 %v1924
          %v1957 = vunpack.c.l.b16 %v1925
          %v1958 = vunpack.c.l.b16 %v1926
          %v1959 = vpack.c.b16 %v1944, %v1943
          %v1960 = vpack.c.b16 %v1946, %v1945
          %v1961 = vpack.c.b16 %v1948, %v1947
          %v1962 = vpack.c.b16 %v1950, %v1949
          %v1963 = vpack.c.b16 %v1952, %v1951
          %v1964 = vpack.c.b16 %v1954, %v1953
          %v1965 = vpack.c.b16 %v1956, %v1955
          %v1966 = vpack.c.b16 %v1958, %v1957
          %1975 = vmatprep.subr.bf16.mxu0 0
          %1976 = vmatpush1.bf16.msra.mxu0 %v1959
          %1977 = vmatprep.subr.bf16.mxu0 0
          %1978 = vmatpush1.bf16.msra.mxu0 %v1960
          %1979 = vmatprep.subr.bf16.mxu0 0
          %1980 = vmatpush1.bf16.msra.mxu0 %v1961
          %1981 = vmatprep.subr.bf16.mxu0 0
          %1982 = vmatpush1.bf16.msra.mxu0 %v1962
          %1983 = vmatprep.subr.bf16.mxu0 0
          %1984 = vmatpush1.bf16.msra.mxu0 %v1963
          %1985 = vmatprep.subr.bf16.mxu0 0
          %1986 = vmatpush1.bf16.msra.mxu0 %v1964
          %1987 = vmatprep.subr.bf16.mxu0 0
          %1988 = vmatpush1.bf16.msra.mxu0 %v1965
          %1989 = vmatprep.subr.bf16.mxu0 0
          %1990 = vmatpush1.bf16.msra.mxu0 %v1966
          %1991 = vmatprep.subr.bf16.mxu0 0
          %1992 = vmatpush1.bf16.msra.mxu0 0
          %1993 = vmatprep.subr.bf16.mxu0 0
          %1994 = vmatpush1.bf16.msra.mxu0 0
          %1995 = vmatprep.subr.bf16.mxu0 0
          %1996 = vmatpush1.bf16.msra.mxu0 0
          %1997 = vmatprep.subr.bf16.mxu0 0
          %1998 = vmatpush1.bf16.msra.mxu0 0
          %1999 = vmatprep.subr.bf16.mxu0 0
          %2000 = vmatpush1.bf16.msra.mxu0 0
          %2001 = vmatprep.subr.bf16.mxu0 0
          %2002 = vmatpush1.bf16.msra.mxu0 0
          %2003 = vmatprep.subr.bf16.mxu0 0
          %2004 = vmatpush1.bf16.msra.mxu0 0
          %2005 = vmatprep.subr.bf16.mxu0 0
          %2006 = vmatpush1.bf16.msra.mxu0 0
          %2007 = vmatprep.mubr.bf16.mxu0 0
          %2008 = vmatmul.mubr.bf16.gmra.mrb[0].mxu0 %v1907
          %v2009 = vpop.f32.mrb[0].mxu0
          %v2010 = vadd.f32 0.0, %v2009
          %v2011 = vpop.f32.mrb[0].mxu0
          %v2012 = vpop.f32.mrb[0].mxu0
          %v2013 = vadd.f32 0.0, %v2012
          %v2014 = vpop.f32.mrb[0].mxu0
          %2015 = vmatprep.mubr.bf16.mxu0 0
          %2016 = vmatmul.mubr.bf16.gmra.mrb[0].mxu0 %v1908
          %v2017 = vpop.f32.mrb[0].mxu0
          %v2018 = vadd.f32 0.0, %v2017
          %v2019 = vpop.f32.mrb[0].mxu0
          %v2020 = vpop.f32.mrb[0].mxu0
          %v2021 = vadd.f32 0.0, %v2020
          %v2022 = vpop.f32.mrb[0].mxu0
          %2023 = vmatprep.mubr.bf16.mxu0 0
          %2024 = vmatmul.mubr.bf16.gmra.mrb[0].mxu0 %v1909
          %v2025 = vpop.f32.mrb[0].mxu0
          %v2026 = vadd.f32 0.0, %v2025
          %v2027 = vpop.f32.mrb[0].mxu0
          %v2028 = vpop.f32.mrb[0].mxu0
          %v2029 = vadd.f32 0.0, %v2028
          %v2030 = vpop.f32.mrb[0].mxu0
          %2031 = vmatprep.mubr.bf16.mxu0 0
          %2032 = vmatmul.mubr.bf16.gmra.mrb[0].mxu0 %v1910
          %v2033 = vpop.f32.mrb[0].mxu0
          %v2034 = vadd.f32 0.0, %v2033
          %v2035 = vpop.f32.mrb[0].mxu0
          %v2036 = vpop.f32.mrb[0].mxu0
          %v2037 = vadd.f32 0.0, %v2036
          %v2038 = vpop.f32.mrb[0].mxu0
          %2039 = vdwg.mxu0
          %v2040 = vpack.c.bf16 %v2013, %v2010
          %v2041 = vpack.c.bf16 %v2021, %v2018
          %v2042 = vpack.c.bf16 %v2029, %v2026
          %v2043 = vpack.c.bf16 %v2037, %v2034
          %2044 = vst [vmem:[#allocation3 + $0x20] sm:$0xff] %v2040
          %2045 = vst [vmem:[#allocation3 + $0x30] sm:$0xff] %v2041
          %2046 = vst [vmem:[#allocation3 + $0x40] sm:$0xff] %v2042
          %2047 = vst [vmem:[#allocation3 + $0x50] sm:$0xff] %v2043
          %v2048 = vld [vmem:[#allocation3 + $0x8] sm:$0xff]
          %v2049 = vld [vmem:[#allocation3 + $0x18] sm:$0xff]
          %v2050 = vld [vmem:[#allocation3 + $0x28] sm:$0xff]
          %v2051 = vld [vmem:[#allocation3 + $0x38] sm:$0xff]
          %s2052 = scalar_lea.vmem %s471, 256 [#allocation6]
          %v2053 = vld [vmem:[%s2052] sm:$0xf]
          %v2054 = vld [vmem:[%s2052 + $0x4] sm:$0xf]
          %v2055 = vld [vmem:[%s2052 + $0x8] sm:$0xf]
          %v2056 = vld [vmem:[%s2052 + $0xc] sm:$0xf]
          %v2057 = vld [vmem:[%s2052 + $0x10] sm:$0xf]
          %v2058 = vld [vmem:[%s2052 + $0x14] sm:$0xf]
          %v2059 = vld [vmem:[%s2052 + $0x18] sm:$0xf]
          %v2060 = vld [vmem:[%s2052 + $0x1c] sm:$0xf]
          %v2061 = vld [vmem:[%s2052 + $0x20] sm:$0xf]
          %v2062 = vld [vmem:[%s2052 + $0x24] sm:$0xf]
          %v2063 = vld [vmem:[%s2052 + $0x28] sm:$0xf]
          %v2064 = vld [vmem:[%s2052 + $0x2c] sm:$0xf]
          %v2065 = vld [vmem:[%s2052 + $0x30] sm:$0xf]
          %v2066 = vld [vmem:[%s2052 + $0x34] sm:$0xf]
          %v2067 = vld [vmem:[%s2052 + $0x38] sm:$0xf]
          %v2068 = vld [vmem:[%s2052 + $0x3c] sm:$0xf]
          %v2085 = vunpack.c.l.b16 %v2053
          %v2086 = vunpack.c.l.b16 %v2054
          %v2087 = vunpack.c.l.b16 %v2055
          %v2088 = vunpack.c.l.b16 %v2056
          %v2089 = vunpack.c.l.b16 %v2057
          %v2090 = vunpack.c.l.b16 %v2058
          %v2091 = vunpack.c.l.b16 %v2059
          %v2092 = vunpack.c.l.b16 %v2060
          %v2093 = vunpack.c.l.b16 %v2061
          %v2094 = vunpack.c.l.b16 %v2062
          %v2095 = vunpack.c.l.b16 %v2063
          %v2096 = vunpack.c.l.b16 %v2064
          %v2097 = vunpack.c.l.b16 %v2065
          %v2098 = vunpack.c.l.b16 %v2066
          %v2099 = vunpack.c.l.b16 %v2067
          %v2100 = vunpack.c.l.b16 %v2068
          %v2101 = vpack.c.b16 %v2086, %v2085
          %v2102 = vpack.c.b16 %v2088, %v2087
          %v2103 = vpack.c.b16 %v2090, %v2089
          %v2104 = vpack.c.b16 %v2092, %v2091
          %v2105 = vpack.c.b16 %v2094, %v2093
          %v2106 = vpack.c.b16 %v2096, %v2095
          %v2107 = vpack.c.b16 %v2098, %v2097
          %v2108 = vpack.c.b16 %v2100, %v2099
          %2117 = vmatprep.subr.bf16.mxu0 0
          %2118 = vmatpush1.bf16.msra.mxu0 %v2101
          %2119 = vmatprep.subr.bf16.mxu0 0
          %2120 = vmatpush1.bf16.msra.mxu0 %v2102
          %2121 = vmatprep.subr.bf16.mxu0 0
          %2122 = vmatpush1.bf16.msra.mxu0 %v2103
          %2123 = vmatprep.subr.bf16.mxu0 0
          %2124 = vmatpush1.bf16.msra.mxu0 %v2104
          %2125 = vmatprep.subr.bf16.mxu0 0
          %2126 = vmatpush1.bf16.msra.mxu0 %v2105
          %2127 = vmatprep.subr.bf16.mxu0 0
          %2128 = vmatpush1.bf16.msra.mxu0 %v2106
          %2129 = vmatprep.subr.bf16.mxu0 0
          %2130 = vmatpush1.bf16.msra.mxu0 %v2107
          %2131 = vmatprep.subr.bf16.mxu0 0
          %2132 = vmatpush1.bf16.msra.mxu0 %v2108
          %2133 = vmatprep.subr.bf16.mxu0 0
          %2134 = vmatpush1.bf16.msra.mxu0 0
          %2135 = vmatprep.subr.bf16.mxu0 0
          %2136 = vmatpush1.bf16.msra.mxu0 0
          %2137 = vmatprep.subr.bf16.mxu0 0
          %2138 = vmatpush1.bf16.msra.mxu0 0
          %2139 = vmatprep.subr.bf16.mxu0 0
          %2140 = vmatpush1.bf16.msra.mxu0 0
          %2141 = vmatprep.subr.bf16.mxu0 0
          %2142 = vmatpush1.bf16.msra.mxu0 0
          %2143 = vmatprep.subr.bf16.mxu0 0
          %2144 = vmatpush1.bf16.msra.mxu0 0
          %2145 = vmatprep.subr.bf16.mxu0 0
          %2146 = vmatpush1.bf16.msra.mxu0 0
          %2147 = vmatprep.subr.bf16.mxu0 0
          %2148 = vmatpush1.bf16.msra.mxu0 0
          %2149 = vmatprep.mubr.bf16.mxu0 0
          %2150 = vmatmul.mubr.bf16.gmra.mrb[0].mxu0 %v2048
          %v2151 = vpop.f32.mrb[0].mxu0
          %v2152 = vadd.f32 0.0, %v2151
          %v2153 = vpop.f32.mrb[0].mxu0
          %v2154 = vpop.f32.mrb[0].mxu0
          %v2155 = vadd.f32 0.0, %v2154
          %v2156 = vpop.f32.mrb[0].mxu0
          %2157 = vmatprep.mubr.bf16.mxu0 0
          %2158 = vmatmul.mubr.bf16.gmra.mrb[0].mxu0 %v2049
          %v2159 = vpop.f32.mrb[0].mxu0
          %v2160 = vadd.f32 0.0, %v2159
          %v2161 = vpop.f32.mrb[0].mxu0
          %v2162 = vpop.f32.mrb[0].mxu0
          %v2163 = vadd.f32 0.0, %v2162
          %v2164 = vpop.f32.mrb[0].mxu0
          %2165 = vmatprep.mubr.bf16.mxu0 0
          %2166 = vmatmul.mubr.bf16.gmra.mrb[0].mxu0 %v2050
          %v2167 = vpop.f32.mrb[0].mxu0
          %v2168 = vadd.f32 0.0, %v2167
          %v2169 = vpop.f32.mrb[0].mxu0
          %v2170 = vpop.f32.mrb[0].mxu0
          %v2171 = vadd.f32 0.0, %v2170
          %v2172 = vpop.f32.mrb[0].mxu0
          %2173 = vmatprep.mubr.bf16.mxu0 0
          %2174 = vmatmul.mubr.bf16.gmra.mrb[0].mxu0 %v2051
          %v2175 = vpop.f32.mrb[0].mxu0
          %v2176 = vadd.f32 0.0, %v2175
          %v2177 = vpop.f32.mrb[0].mxu0
          %v2178 = vpop.f32.mrb[0].mxu0
          %v2179 = vadd.f32 0.0, %v2178
          %v2180 = vpop.f32.mrb[0].mxu0
          %2181 = vdwg.mxu0
          %v2182 = vpack.c.bf16 %v2155, %v2152
          %v2183 = vpack.c.bf16 %v2163, %v2160
          %v2184 = vpack.c.bf16 %v2171, %v2168
          %v2185 = vpack.c.bf16 %v2179, %v2176
          %2186 = vst [vmem:[#allocation3 + $0x28] sm:$0xff] %v2182
          %2187 = vst [vmem:[#allocation3 + $0x38] sm:$0xff] %v2183
          %2188 = vst [vmem:[#allocation3 + $0x48] sm:$0xff] %v2184
          %2189 = vst [vmem:[#allocation3 + $0x58] sm:$0xff] %v2185
        $region125: #{tpu_custom_call.1} parent=88 // pred_fallthru
          _
        %2190 = vst [vmem:[#allocation3] sm:$0xff] %v1900
        %2191 = vst [vmem:[#allocation3 + $0x8] sm:$0xff] %v1901
        %2192 = vst [vmem:[#allocation3 + $0x10] sm:$0xff] %v1902
        %2193 = vst [vmem:[#allocation3 + $0x18] sm:$0xff] %v1903
        %v2194 = vld [vmem:[#allocation3] sm:$0xff]
        %v2195 = vld [vmem:[#allocation3 + $0x8] sm:$0xff]
        %v2196 = vld [vmem:[#allocation3 + $0x10] sm:$0xff]
        %v2197 = vld [vmem:[#allocation3 + $0x18] sm:$0xff]
        %v2198 = vld [vmem:[#allocation3 + $0x20] sm:$0xff]
        %v2199 = vld [vmem:[#allocation3 + $0x28] sm:$0xff]
        %v2200 = vld [vmem:[#allocation3 + $0x30] sm:$0xff]
        %v2201 = vld [vmem:[#allocation3 + $0x38] sm:$0xff]
        %v2202 = vld [vmem:[#allocation3 + $0x40] sm:$0xff]
        %v2203 = vld [vmem:[#allocation3 + $0x48] sm:$0xff]
        %v2204 = vld [vmem:[#allocation3 + $0x50] sm:$0xff]
        %v2205 = vld [vmem:[#allocation3 + $0x58] sm:$0xff]
        %v2206 = vld [vmem:[#allocation4] sm:$0xff]
        %v2207 = vld [vmem:[#allocation4 + $0x8] sm:$0xff]
        %v2208 = vld [vmem:[#allocation4 + $0x10] sm:$0xff]
        %v2209 = vld [vmem:[#allocation4 + $0x18] sm:$0xff]
        %v2210 = vld [vmem:[#allocation4 + $0x20] sm:$0xff]
        %v2211 = vld [vmem:[#allocation4 + $0x28] sm:$0xff]
        %v2212 = vld [vmem:[#allocation4 + $0x30] sm:$0xff]
        %v2213 = vld [vmem:[#allocation4 + $0x38] sm:$0xff]
        %v2218 = vunpack.c.l.b16 %v582
        %v2219 = vunpack.c.l.b16 %v583
        %v2220 = vunpack.c.l.b16 %v584
        %v2221 = vunpack.c.l.b16 %v585
        %v2222 = vpack.c.b16 %v2219, %v2218
        %v2223 = vpack.c.b16 %v2221, %v2220
        %vm2224 = vcmask 785408
        %v2226 = vsel %vm2224, %v2222, 0
        %v2229 = vsel %vm2224, %v2223, 0
        %2231 = vmatprep.subr.bf16.mxu0 %v2195
        %2232 = vmatpush1.bf16.msra.mxu0 %v2194
        %2233 = vmatprep.subr.bf16.mxu0 %v2197
        %2234 = vmatpush1.bf16.msra.mxu0 %v2196
        %2235 = vmatprep.subr.bf16.mxu0 %v2199
        %2236 = vmatpush1.bf16.msra.mxu0 %v2198
        %2237 = vmatprep.subr.bf16.mxu0 %v2201
        %2238 = vmatpush1.bf16.msra.mxu0 %v2200
        %2239 = vmatprep.subr.bf16.mxu0 %v2203
        %2240 = vmatpush1.bf16.msra.mxu0 %v2202
        %2241 = vmatprep.subr.bf16.mxu0 %v2205
        %2242 = vmatpush1.bf16.msra.mxu0 %v2204
        %2243 = vmatprep.subr.bf16.mxu0 0
        %2244 = vmatpush1.bf16.msra.mxu0 0
        %2245 = vmatprep.subr.bf16.mxu0 0
        %2246 = vmatpush1.bf16.msra.mxu0 0
        %2247 = vmatprep.subr.bf16.mxu0 0
        %2248 = vmatpush1.bf16.msra.mxu0 0
        %2249 = vmatprep.subr.bf16.mxu0 0
        %2250 = vmatpush1.bf16.msra.mxu0 0
        %2251 = vmatprep.subr.bf16.mxu0 0
        %2252 = vmatpush1.bf16.msra.mxu0 0
        %2253 = vmatprep.subr.bf16.mxu0 0
        %2254 = vmatpush1.bf16.msra.mxu0 0
        %2255 = vmatprep.subr.bf16.mxu0 0
        %2256 = vmatpush1.bf16.msra.mxu0 0
        %2257 = vmatprep.subr.bf16.mxu0 0
        %2258 = vmatpush1.bf16.msra.mxu0 0
        %2259 = vmatprep.subr.bf16.mxu0 0
        %2260 = vmatpush1.bf16.msra.mxu0 0
        %2261 = vmatprep.subr.bf16.mxu0 0
        %2262 = vmatpush1.bf16.msra.mxu0 0
        %2263 = vmatprep.mubr.bf16.mxu0 0
        %2264 = vmatmul.mubr.bf16.gmra.mrb[0].mxu0 %v2226
        %v2265 = vpop.f32.mrb[0].mxu0
        %v2266 = vadd.f32 %v2206, %v2265
        %v2267 = vpop.f32.mrb[0].mxu0
        %v2268 = vadd.f32 %v2207, %v2267
        %v2269 = vpop.f32.mrb[0].mxu0
        %v2270 = vadd.f32 %v2208, %v2269
        %v2271 = vpop.f32.mrb[0].mxu0
        %v2272 = vadd.f32 %v2209, %v2271
        %2273 = vmatprep.mubr.bf16.mxu0 0
        %2274 = vmatmul.mubr.bf16.gmra.mrb[0].mxu0 %v2229
        %v2275 = vpop.f32.mrb[0].mxu0
        %v2276 = vadd.f32 %v2210, %v2275
        %v2277 = vpop.f32.mrb[0].mxu0
        %v2278 = vadd.f32 %v2211, %v2277
        %v2279 = vpop.f32.mrb[0].mxu0
        %v2280 = vadd.f32 %v2212, %v2279
        %v2281 = vpop.f32.mrb[0].mxu0
        %v2282 = vadd.f32 %v2213, %v2281
        %2283 = vdwg.mxu0
        %v2284 = vtanh.pop %v2266
        %v2285 = vtanh.pop %v2268
        %v2286 = vtanh.pop %v2270
        %v2287 = vtanh.pop %v2272
        %v2288 = vtanh.pop %v2276
        %v2289 = vtanh.pop %v2278
        %v2290 = vtanh.pop %v2280
        %v2291 = vtanh.pop %v2282
        %2292 = vst [vmem:[%s530] sm:$0xff] %v2284
        %2293 = vst [vmem:[%s530 + $0x8] sm:$0xff] %v2286
        %2294 = vst [vmem:[%s530 + $0x10] sm:$0xff] %v2288
        %2295 = vst [vmem:[%s530 + $0x18] sm:$0xff] %v2290
        %s2296 = scalar_lea.vmem %s530, 128 [#allocation16]
        %2297 = vst [vmem:[%s2296] sm:$0xff] %v2285
        %2298 = vst [vmem:[%s2296 + $0x8] sm:$0xff] %v2287
        %2299 = vst [vmem:[%s2296 + $0x10] sm:$0xff] %v2289
        %2300 = vst [vmem:[%s2296 + $0x18] sm:$0xff] %v2291
        %v2301 = vpack.c.bf16 %v2286, %v2284
        %v2302 = vpack.c.bf16 %v2287, %v2285
        %v2303 = vpack.c.bf16 %v2290, %v2288
        %v2304 = vpack.c.bf16 %v2291, %v2289
        %v2305 = vld [vmem:[#allocation3] sm:$0xff]
        %v2306 = vld [vmem:[#allocation3 + $0x10] sm:$0xff]
        %v2307 = vld [vmem:[#allocation3 + $0x20] sm:$0xff]
        %v2308 = vld [vmem:[#allocation3 + $0x30] sm:$0xff]
        %v2309 = vld [vmem:[%s952] sm:$0xf]
        %v2310 = vld [vmem:[%s952 + $0x4] sm:$0xf]
        %v2311 = vld [vmem:[%s952 + $0x8] sm:$0xf]
        %v2312 = vld [vmem:[%s952 + $0xc] sm:$0xf]
        %v2313 = vld [vmem:[%s952 + $0x10] sm:$0xf]
        %v2314 = vld [vmem:[%s952 + $0x14] sm:$0xf]
        %v2315 = vld [vmem:[%s952 + $0x18] sm:$0xf]
        %v2316 = vld [vmem:[%s952 + $0x1c] sm:$0xf]
        %v2317 = vld [vmem:[%s952 + $0x20] sm:$0xf]
        %v2318 = vld [vmem:[%s952 + $0x24] sm:$0xf]
        %v2319 = vld [vmem:[%s952 + $0x28] sm:$0xf]
        %v2320 = vld [vmem:[%s952 + $0x2c] sm:$0xf]
        %v2321 = vld [vmem:[%s952 + $0x30] sm:$0xf]
        %v2322 = vld [vmem:[%s952 + $0x34] sm:$0xf]
        %v2323 = vld [vmem:[%s952 + $0x38] sm:$0xf]
        %v2324 = vld [vmem:[%s952 + $0x3c] sm:$0xf]
        %v2341 = vunpack.c.l.b16 %v2309
        %v2342 = vunpack.c.l.b16 %v2310
        %v2343 = vunpack.c.l.b16 %v2311
        %v2344 = vunpack.c.l.b16 %v2312
        %v2345 = vunpack.c.l.b16 %v2313
        %v2346 = vunpack.c.l.b16 %v2314
        %v2347 = vunpack.c.l.b16 %v2315
        %v2348 = vunpack.c.l.b16 %v2316
        %v2349 = vunpack.c.l.b16 %v2317
        %v2350 = vunpack.c.l.b16 %v2318
        %v2351 = vunpack.c.l.b16 %v2319
        %v2352 = vunpack.c.l.b16 %v2320
        %v2353 = vunpack.c.l.b16 %v2321
        %v2354 = vunpack.c.l.b16 %v2322
        %v2355 = vunpack.c.l.b16 %v2323
        %v2356 = vunpack.c.l.b16 %v2324
        %v2357 = vpack.c.b16 %v2342, %v2341
        %v2358 = vpack.c.b16 %v2344, %v2343
        %v2359 = vpack.c.b16 %v2346, %v2345
        %v2360 = vpack.c.b16 %v2348, %v2347
        %v2361 = vpack.c.b16 %v2350, %v2349
        %v2362 = vpack.c.b16 %v2352, %v2351
        %v2363 = vpack.c.b16 %v2354, %v2353
        %v2364 = vpack.c.b16 %v2356, %v2355
        %2373 = vmatprep.subr.bf16.mxu0 0
        %2374 = vmatpush1.bf16.msra.mxu0 %v2357
        %2375 = vmatprep.subr.bf16.mxu0 0
        %2376 = vmatpush1.bf16.msra.mxu0 %v2358
        %2377 = vmatprep.subr.bf16.mxu0 0
        %2378 = vmatpush1.bf16.msra.mxu0 %v2359
        %2379 = vmatprep.subr.bf16.mxu0 0
        %2380 = vmatpush1.bf16.msra.mxu0 %v2360
        %2381 = vmatprep.subr.bf16.mxu0 0
        %2382 = vmatpush1.bf16.msra.mxu0 %v2361
        %2383 = vmatprep.subr.bf16.mxu0 0
        %2384 = vmatpush1.bf16.msra.mxu0 %v2362
        %2385 = vmatprep.subr.bf16.mxu0 0
        %2386 = vmatpush1.bf16.msra.mxu0 %v2363
        %2387 = vmatprep.subr.bf16.mxu0 0
        %2388 = vmatpush1.bf16.msra.mxu0 %v2364
        %2389 = vmatprep.subr.bf16.mxu0 0
        %2390 = vmatpush1.bf16.msra.mxu0 0
        %2391 = vmatprep.subr.bf16.mxu0 0
        %2392 = vmatpush1.bf16.msra.mxu0 0
        %2393 = vmatprep.subr.bf16.mxu0 0
        %2394 = vmatpush1.bf16.msra.mxu0 0
        %2395 = vmatprep.subr.bf16.mxu0 0
        %2396 = vmatpush1.bf16.msra.mxu0 0
        %2397 = vmatprep.subr.bf16.mxu0 0
        %2398 = vmatpush1.bf16.msra.mxu0 0
        %2399 = vmatprep.subr.bf16.mxu0 0
        %2400 = vmatpush1.bf16.msra.mxu0 0
        %2401 = vmatprep.subr.bf16.mxu0 0
        %2402 = vmatpush1.bf16.msra.mxu0 0
        %2403 = vmatprep.subr.bf16.mxu0 0
        %2404 = vmatpush1.bf16.msra.mxu0 0
        %2405 = vmatprep.mubr.bf16.mxu0 0
        %2406 = vmatmul.mubr.bf16.gmra.mrb[0].mxu0 %v2305
        %v2407 = vpop.f32.mrb[0].mxu0
        %v2408 = vadd.f32 0.0, %v2407
        %v2409 = vpop.f32.mrb[0].mxu0
        %v2410 = vpop.f32.mrb[0].mxu0
        %v2411 = vadd.f32 0.0, %v2410
        %v2412 = vpop.f32.mrb[0].mxu0
        %2413 = vmatprep.mubr.bf16.mxu0 0
        %2414 = vmatmul.mubr.bf16.gmra.mrb[0].mxu0 %v2306
        %v2415 = vpop.f32.mrb[0].mxu0
        %v2416 = vadd.f32 0.0, %v2415
        %v2417 = vpop.f32.mrb[0].mxu0
        %v2418 = vpop.f32.mrb[0].mxu0
        %v2419 = vadd.f32 0.0, %v2418
        %v2420 = vpop.f32.mrb[0].mxu0
        %2421 = vmatprep.mubr.bf16.mxu0 0
        %2422 = vmatmul.mubr.bf16.gmra.mrb[0].mxu0 %v2307
        %v2423 = vpop.f32.mrb[0].mxu0
        %v2424 = vadd.f32 0.0, %v2423
        %v2425 = vpop.f32.mrb[0].mxu0
        %v2426 = vpop.f32.mrb[0].mxu0
        %v2427 = vadd.f32 0.0, %v2426
        %v2428 = vpop.f32.mrb[0].mxu0
        %2429 = vmatprep.mubr.bf16.mxu0 0
        %2430 = vmatmul.mubr.bf16.gmra.mrb[0].mxu0 %v2308
        %v2431 = vpop.f32.mrb[0].mxu0
        %v2432 = vadd.f32 0.0, %v2431
        %v2433 = vpop.f32.mrb[0].mxu0
        %v2434 = vpop.f32.mrb[0].mxu0
        %v2435 = vadd.f32 0.0, %v2434
        %v2436 = vpop.f32.mrb[0].mxu0
        %2437 = vdwg.mxu0
        %v2438 = vld [vmem:[#allocation3 + $0x8] sm:$0xff]
        %v2439 = vld [vmem:[#allocation3 + $0x18] sm:$0xff]
        %v2440 = vld [vmem:[#allocation3 + $0x28] sm:$0xff]
        %v2441 = vld [vmem:[#allocation3 + $0x38] sm:$0xff]
        %v2442 = vld [vmem:[%s1072] sm:$0xf]
        %v2443 = vld [vmem:[%s1072 + $0x4] sm:$0xf]
        %v2444 = vld [vmem:[%s1072 + $0x8] sm:$0xf]
        %v2445 = vld [vmem:[%s1072 + $0xc] sm:$0xf]
        %v2446 = vld [vmem:[%s1072 + $0x10] sm:$0xf]
        %v2447 = vld [vmem:[%s1072 + $0x14] sm:$0xf]
        %v2448 = vld [vmem:[%s1072 + $0x18] sm:$0xf]
        %v2449 = vld [vmem:[%s1072 + $0x1c] sm:$0xf]
        %v2450 = vld [vmem:[%s1072 + $0x20] sm:$0xf]
        %v2451 = vld [vmem:[%s1072 + $0x24] sm:$0xf]
        %v2452 = vld [vmem:[%s1072 + $0x28] sm:$0xf]
        %v2453 = vld [vmem:[%s1072 + $0x2c] sm:$0xf]
        %v2454 = vld [vmem:[%s1072 + $0x30] sm:$0xf]
        %v2455 = vld [vmem:[%s1072 + $0x34] sm:$0xf]
        %v2456 = vld [vmem:[%s1072 + $0x38] sm:$0xf]
        %v2457 = vld [vmem:[%s1072 + $0x3c] sm:$0xf]
        %v2474 = vunpack.c.l.b16 %v2442
        %v2475 = vunpack.c.l.b16 %v2443
        %v2476 = vunpack.c.l.b16 %v2444
        %v2477 = vunpack.c.l.b16 %v2445
        %v2478 = vunpack.c.l.b16 %v2446
        %v2479 = vunpack.c.l.b16 %v2447
        %v2480 = vunpack.c.l.b16 %v2448
        %v2481 = vunpack.c.l.b16 %v2449
        %v2482 = vunpack.c.l.b16 %v2450
        %v2483 = vunpack.c.l.b16 %v2451
        %v2484 = vunpack.c.l.b16 %v2452
        %v2485 = vunpack.c.l.b16 %v2453
        %v2486 = vunpack.c.l.b16 %v2454
        %v2487 = vunpack.c.l.b16 %v2455
        %v2488 = vunpack.c.l.b16 %v2456
        %v2489 = vunpack.c.l.b16 %v2457
        %v2490 = vpack.c.b16 %v2475, %v2474
        %v2491 = vpack.c.b16 %v2477, %v2476
        %v2492 = vpack.c.b16 %v2479, %v2478
        %v2493 = vpack.c.b16 %v2481, %v2480
        %v2494 = vpack.c.b16 %v2483, %v2482
        %v2495 = vpack.c.b16 %v2485, %v2484
        %v2496 = vpack.c.b16 %v2487, %v2486
        %v2497 = vpack.c.b16 %v2489, %v2488
        %2506 = vmatprep.subr.bf16.mxu0 0
        %2507 = vmatpush1.bf16.msra.mxu0 %v2490
        %2508 = vmatprep.subr.bf16.mxu0 0
        %2509 = vmatpush1.bf16.msra.mxu0 %v2491
        %2510 = vmatprep.subr.bf16.mxu0 0
        %2511 = vmatpush1.bf16.msra.mxu0 %v2492
        %2512 = vmatprep.subr.bf16.mxu0 0
        %2513 = vmatpush1.bf16.msra.mxu0 %v2493
        %2514 = vmatprep.subr.bf16.mxu0 0
        %2515 = vmatpush1.bf16.msra.mxu0 %v2494
        %2516 = vmatprep.subr.bf16.mxu0 0
        %2517 = vmatpush1.bf16.msra.mxu0 %v2495
        %2518 = vmatprep.subr.bf16.mxu0 0
        %2519 = vmatpush1.bf16.msra.mxu0 %v2496
        %2520 = vmatprep.subr.bf16.mxu0 0
        %2521 = vmatpush1.bf16.msra.mxu0 %v2497
        %2522 = vmatprep.subr.bf16.mxu0 0
        %2523 = vmatpush1.bf16.msra.mxu0 0
        %2524 = vmatprep.subr.bf16.mxu0 0
        %2525 = vmatpush1.bf16.msra.mxu0 0
        %2526 = vmatprep.subr.bf16.mxu0 0
        %2527 = vmatpush1.bf16.msra.mxu0 0
        %2528 = vmatprep.subr.bf16.mxu0 0
        %2529 = vmatpush1.bf16.msra.mxu0 0
        %2530 = vmatprep.subr.bf16.mxu0 0
        %2531 = vmatpush1.bf16.msra.mxu0 0
        %2532 = vmatprep.subr.bf16.mxu0 0
        %2533 = vmatpush1.bf16.msra.mxu0 0
        %2534 = vmatprep.subr.bf16.mxu0 0
        %2535 = vmatpush1.bf16.msra.mxu0 0
        %2536 = vmatprep.subr.bf16.mxu0 0
        %2537 = vmatpush1.bf16.msra.mxu0 0
        %2538 = vmatprep.mubr.bf16.mxu0 0
        %2539 = vmatmul.mubr.bf16.gmra.mrb[0].mxu0 %v2438
        %v2540 = vpop.f32.mrb[0].mxu0
        %v2541 = vadd.f32 0.0, %v2540
        %v2542 = vpop.f32.mrb[0].mxu0
        %v2543 = vpop.f32.mrb[0].mxu0
        %v2544 = vadd.f32 0.0, %v2543
        %v2545 = vpop.f32.mrb[0].mxu0
        %2546 = vmatprep.mubr.bf16.mxu0 0
        %2547 = vmatmul.mubr.bf16.gmra.mrb[0].mxu0 %v2439
        %v2548 = vpop.f32.mrb[0].mxu0
        %v2549 = vadd.f32 0.0, %v2548
        %v2550 = vpop.f32.mrb[0].mxu0
        %v2551 = vpop.f32.mrb[0].mxu0
        %v2552 = vadd.f32 0.0, %v2551
        %v2553 = vpop.f32.mrb[0].mxu0
        %2554 = vmatprep.mubr.bf16.mxu0 0
        %2555 = vmatmul.mubr.bf16.gmra.mrb[0].mxu0 %v2440
        %v2556 = vpop.f32.mrb[0].mxu0
        %v2557 = vadd.f32 0.0, %v2556
        %v2558 = vpop.f32.mrb[0].mxu0
        %v2559 = vpop.f32.mrb[0].mxu0
        %v2560 = vadd.f32 0.0, %v2559
        %v2561 = vpop.f32.mrb[0].mxu0
        %2562 = vmatprep.mubr.bf16.mxu0 0
        %2563 = vmatmul.mubr.bf16.gmra.mrb[0].mxu0 %v2441
        %v2564 = vpop.f32.mrb[0].mxu0
        %v2565 = vadd.f32 0.0, %v2564
        %v2566 = vpop.f32.mrb[0].mxu0
        %v2567 = vpop.f32.mrb[0].mxu0
        %v2568 = vadd.f32 0.0, %v2567
        %v2569 = vpop.f32.mrb[0].mxu0
        %2570 = vdwg.mxu0
        %v2571 = vpack.c.bf16 %v2411, %v2408
        %v2572 = vpack.c.bf16 %v2544, %v2541
        %v2573 = vpack.c.bf16 %v2419, %v2416
        %v2574 = vpack.c.bf16 %v2552, %v2549
        %v2575 = vpack.c.bf16 %v2427, %v2424
        %v2576 = vpack.c.bf16 %v2560, %v2557
        %v2577 = vpack.c.bf16 %v2435, %v2432
        %v2578 = vpack.c.bf16 %v2568, %v2565
        %2579 = vst [vmem:[#allocation3 + $0x20] sm:$0xff] %v2571
        %2580 = vst [vmem:[#allocation3 + $0x28] sm:$0xff] %v2572
        %2581 = vst [vmem:[#allocation3 + $0x30] sm:$0xff] %v2573
        %2582 = vst [vmem:[#allocation3 + $0x38] sm:$0xff] %v2574
        %2583 = vst [vmem:[#allocation3 + $0x40] sm:$0xff] %v2575
        %2584 = vst [vmem:[#allocation3 + $0x48] sm:$0xff] %v2576
        %2585 = vst [vmem:[#allocation3 + $0x50] sm:$0xff] %v2577
        %2586 = vst [vmem:[#allocation3 + $0x58] sm:$0xff] %v2578
        %v2591 = vunpack.c.l.b16 %v590
        %v2592 = vunpack.c.l.b16 %v591
        %v2593 = vunpack.c.l.b16 %v592
        %v2594 = vunpack.c.l.b16 %v593
        %v2595 = vpack.c.b16 %v2592, %v2591
        %v2596 = vpack.c.b16 %v2594, %v2593
        %vm2597 = vcmask 523264
        %v2599 = vsel %vm2597, %v2595, 0
        %v2602 = vsel %vm2597, %v2596, 0
        %2604 = vmatprep.subr.bf16.mxu0 %v2572
        %2605 = vmatpush1.bf16.msra.mxu0 %v2571
        %2606 = vmatprep.subr.bf16.mxu0 %v2574
        %2607 = vmatpush1.bf16.msra.mxu0 %v2573
        %2608 = vmatprep.subr.bf16.mxu0 %v2576
        %2609 = vmatpush1.bf16.msra.mxu0 %v2575
        %2610 = vmatprep.subr.bf16.mxu0 %v2578
        %2611 = vmatpush1.bf16.msra.mxu0 %v2577
        %2612 = vmatprep.subr.bf16.mxu0 0
        %2613 = vmatpush1.bf16.msra.mxu0 0
        %2614 = vmatprep.subr.bf16.mxu0 0
        %2615 = vmatpush1.bf16.msra.mxu0 0
        %2616 = vmatprep.subr.bf16.mxu0 0
        %2617 = vmatpush1.bf16.msra.mxu0 0
        %2618 = vmatprep.subr.bf16.mxu0 0
        %2619 = vmatpush1.bf16.msra.mxu0 0
        %2620 = vmatprep.subr.bf16.mxu0 0
        %2621 = vmatpush1.bf16.msra.mxu0 0
        %2622 = vmatprep.subr.bf16.mxu0 0
        %2623 = vmatpush1.bf16.msra.mxu0 0
        %2624 = vmatprep.subr.bf16.mxu0 0
        %2625 = vmatpush1.bf16.msra.mxu0 0
        %2626 = vmatprep.subr.bf16.mxu0 0
        %2627 = vmatpush1.bf16.msra.mxu0 0
        %2628 = vmatprep.subr.bf16.mxu0 0
        %2629 = vmatpush1.bf16.msra.mxu0 0
        %2630 = vmatprep.subr.bf16.mxu0 0
        %2631 = vmatpush1.bf16.msra.mxu0 0
        %2632 = vmatprep.subr.bf16.mxu0 0
        %2633 = vmatpush1.bf16.msra.mxu0 0
        %2634 = vmatprep.subr.bf16.mxu0 0
        %2635 = vmatpush1.bf16.msra.mxu0 0
        %2636 = vmatprep.mubr.bf16.mxu0 0
        %2637 = vmatmul.mubr.bf16.gmra.mrb[0].mxu0 %v2599
        %v2638 = vpop.f32.mrb[0].mxu0
        %v2639 = vadd.f32 0.0, %v2638
        %v2640 = vpop.f32.mrb[0].mxu0
        %v2641 = vadd.f32 0.0, %v2640
        %v2642 = vpop.f32.mrb[0].mxu0
        %v2643 = vadd.f32 0.0, %v2642
        %v2644 = vpop.f32.mrb[0].mxu0
        %v2645 = vadd.f32 0.0, %v2644
        %2646 = vmatprep.mubr.bf16.mxu0 0
        %2647 = vmatmul.mubr.bf16.gmra.mrb[0].mxu0 %v2602
        %v2648 = vpop.f32.mrb[0].mxu0
        %v2649 = vadd.f32 0.0, %v2648
        %v2650 = vpop.f32.mrb[0].mxu0
        %v2651 = vadd.f32 0.0, %v2650
        %v2652 = vpop.f32.mrb[0].mxu0
        %v2653 = vadd.f32 0.0, %v2652
        %v2654 = vpop.f32.mrb[0].mxu0
        %v2655 = vadd.f32 0.0, %v2654
        %2656 = vdwg.mxu0
        %v2661 = vunpack.c.l.b16 %v586
        %v2662 = vunpack.c.l.b16 %v587
        %v2663 = vunpack.c.l.b16 %v588
        %v2664 = vunpack.c.l.b16 %v589
        %v2665 = vpack.c.b16 %v2662, %v2661
        %v2666 = vpack.c.b16 %v2664, %v2663
        %vm2667 = vcmask 261120
        %v2669 = vsel %vm2667, %v2665, 0
        %v2672 = vsel %vm2667, %v2666, 0
        %2674 = vmatprep.subr.bf16.mxu0 %v2302
        %2675 = vmatpush1.bf16.msra.mxu0 %v2301
        %2676 = vmatprep.subr.bf16.mxu0 %v2304
        %2677 = vmatpush1.bf16.msra.mxu0 %v2303
        %2678 = vmatprep.subr.bf16.mxu0 0
        %2679 = vmatpush1.bf16.msra.mxu0 0
        %2680 = vmatprep.subr.bf16.mxu0 0
        %2681 = vmatpush1.bf16.msra.mxu0 0
        %2682 = vmatprep.subr.bf16.mxu0 0
        %2683 = vmatpush1.bf16.msra.mxu0 0
        %2684 = vmatprep.subr.bf16.mxu0 0
        %2685 = vmatpush1.bf16.msra.mxu0 0
        %2686 = vmatprep.subr.bf16.mxu0 0
        %2687 = vmatpush1.bf16.msra.mxu0 0
        %2688 = vmatprep.subr.bf16.mxu0 0
        %2689 = vmatpush1.bf16.msra.mxu0 0
        %2690 = vmatprep.subr.bf16.mxu0 0
        %2691 = vmatpush1.bf16.msra.mxu0 0
        %2692 = vmatprep.subr.bf16.mxu0 0
        %2693 = vmatpush1.bf16.msra.mxu0 0
        %2694 = vmatprep.subr.bf16.mxu0 0
        %2695 = vmatpush1.bf16.msra.mxu0 0
        %2696 = vmatprep.subr.bf16.mxu0 0
        %2697 = vmatpush1.bf16.msra.mxu0 0
        %2698 = vmatprep.subr.bf16.mxu0 0
        %2699 = vmatpush1.bf16.msra.mxu0 0
        %2700 = vmatprep.subr.bf16.mxu0 0
        %2701 = vmatpush1.bf16.msra.mxu0 0
        %2702 = vmatprep.subr.bf16.mxu0 0
        %2703 = vmatpush1.bf16.msra.mxu0 0
        %2704 = vmatprep.subr.bf16.mxu0 0
        %2705 = vmatpush1.bf16.msra.mxu0 0
        %2706 = vmatprep.mubr.bf16.mxu0 0
        %2707 = vmatmul.mubr.bf16.gmra.mrb[0].mxu0 %v2669
        %v2708 = vpop.f32.mrb[0].mxu0
        %v2709 = vadd.f32 %v2639, %v2708
        %v2710 = vpop.f32.mrb[0].mxu0
        %v2711 = vadd.f32 %v2641, %v2710
        %v2712 = vpop.f32.mrb[0].mxu0
        %v2713 = vadd.f32 %v2643, %v2712
        %v2714 = vpop.f32.mrb[0].mxu0
        %v2715 = vadd.f32 %v2645, %v2714
        %2716 = vmatprep.mubr.bf16.mxu0 0
        %2717 = vmatmul.mubr.bf16.gmra.mrb[0].mxu0 %v2672
        %v2718 = vpop.f32.mrb[0].mxu0
        %v2719 = vadd.f32 %v2649, %v2718
        %v2720 = vpop.f32.mrb[0].mxu0
        %v2721 = vadd.f32 %v2651, %v2720
        %v2722 = vpop.f32.mrb[0].mxu0
        %v2723 = vadd.f32 %v2653, %v2722
        %v2724 = vpop.f32.mrb[0].mxu0
        %v2725 = vadd.f32 %v2655, %v2724
        %2726 = vdwg.mxu0
        %2727 = vst [vmem:[#allocation3] sm:$0xff] %v2301
        %2728 = vst [vmem:[#allocation3 + $0x8] sm:$0xff] %v2302
        %2729 = vst [vmem:[#allocation3 + $0x10] sm:$0xff] %v2303
        %2730 = vst [vmem:[#allocation3 + $0x18] sm:$0xff] %v2304
        %v2731 = vld [vmem:[%s1255] sm:$0xff]
        %v2732 = vld [vmem:[%s1255 + $0x8] sm:$0xff]
        %v2733 = vld [vmem:[%s1255 + $0x10] sm:$0xff]
        %v2734 = vld [vmem:[%s1255 + $0x18] sm:$0xff]
        %v2735 = vld [vmem:[%s1255 + $0x20] sm:$0xff]
        %v2736 = vld [vmem:[%s1255 + $0x28] sm:$0xff]
        %v2737 = vld [vmem:[%s1255 + $0x30] sm:$0xff]
        %v2738 = vld [vmem:[%s1255 + $0x38] sm:$0xff]
        %v2739 = vadd.f32 %v2709, %v2731
        %v2740 = vadd.f32 %v2711, %v2732
        %v2741 = vadd.f32 %v2713, %v2733
        %v2742 = vadd.f32 %v2715, %v2734
        %v2743 = vadd.f32 %v2719, %v2735
        %v2744 = vadd.f32 %v2721, %v2736
        %v2745 = vadd.f32 %v2723, %v2737
        %v2746 = vadd.f32 %v2725, %v2738
        %v2747 = vtanh.pop %v2739
        %v2748 = vtanh.pop %v2740
        %v2749 = vtanh.pop %v2741
        %v2750 = vtanh.pop %v2742
        %v2751 = vtanh.pop %v2743
        %v2752 = vtanh.pop %v2744
        %v2753 = vtanh.pop %v2745
        %v2754 = vtanh.pop %v2746
        %s2755 = scalar_lea.vmem %s530, 32 [#allocation16]
        %2756 = vst [vmem:[%s2755] sm:$0xff] %v2747
        %2757 = vst [vmem:[%s2755 + $0x8] sm:$0xff] %v2749
        %2758 = vst [vmem:[%s2755 + $0x10] sm:$0xff] %v2751
        %2759 = vst [vmem:[%s2755 + $0x18] sm:$0xff] %v2753
        %s2760 = scalar_lea.vmem %s530, 160 [#allocation16]
        %2761 = vst [vmem:[%s2760] sm:$0xff] %v2748
        %2762 = vst [vmem:[%s2760 + $0x8] sm:$0xff] %v2750
        %2763 = vst [vmem:[%s2760 + $0x10] sm:$0xff] %v2752
        %2764 = vst [vmem:[%s2760 + $0x18] sm:$0xff] %v2754
        %v2765 = vpack.c.bf16 %v2749, %v2747
        %v2766 = vpack.c.bf16 %v2750, %v2748
        %v2767 = vpack.c.bf16 %v2753, %v2751
        %v2768 = vpack.c.bf16 %v2754, %v2752
        %v2769 = vld [vmem:[#allocation3] sm:$0xff]
        %v2770 = vld [vmem:[#allocation3 + $0x10] sm:$0xff]
        %v2771 = vld [vmem:[#allocation3 + $0x20] sm:$0xff]
        %v2772 = vld [vmem:[#allocation3 + $0x30] sm:$0xff]
        %v2773 = vld [vmem:[%s1266] sm:$0xf]
        %v2774 = vld [vmem:[%s1266 + $0x4] sm:$0xf]
        %v2775 = vld [vmem:[%s1266 + $0x8] sm:$0xf]
        %v2776 = vld [vmem:[%s1266 + $0xc] sm:$0xf]
        %v2777 = vld [vmem:[%s1266 + $0x10] sm:$0xf]
        %v2778 = vld [vmem:[%s1266 + $0x14] sm:$0xf]
        %v2779 = vld [vmem:[%s1266 + $0x18] sm:$0xf]
        %v2780 = vld [vmem:[%s1266 + $0x1c] sm:$0xf]
        %v2781 = vld [vmem:[%s1266 + $0x20] sm:$0xf]
        %v2782 = vld [vmem:[%s1266 + $0x24] sm:$0xf]
        %v2783 = vld [vmem:[%s1266 + $0x28] sm:$0xf]
        %v2784 = vld [vmem:[%s1266 + $0x2c] sm:$0xf]
        %v2785 = vld [vmem:[%s1266 + $0x30] sm:$0xf]
        %v2786 = vld [vmem:[%s1266 + $0x34] sm:$0xf]
        %v2787 = vld [vmem:[%s1266 + $0x38] sm:$0xf]
        %v2788 = vld [vmem:[%s1266 + $0x3c] sm:$0xf]
        %v2805 = vunpack.c.l.b16 %v2773
        %v2806 = vunpack.c.l.b16 %v2774
        %v2807 = vunpack.c.l.b16 %v2775
        %v2808 = vunpack.c.l.b16 %v2776
        %v2809 = vunpack.c.l.b16 %v2777
        %v2810 = vunpack.c.l.b16 %v2778
        %v2811 = vunpack.c.l.b16 %v2779
        %v2812 = vunpack.c.l.b16 %v2780
        %v2813 = vunpack.c.l.b16 %v2781
        %v2814 = vunpack.c.l.b16 %v2782
        %v2815 = vunpack.c.l.b16 %v2783
        %v2816 = vunpack.c.l.b16 %v2784
        %v2817 = vunpack.c.l.b16 %v2785
        %v2818 = vunpack.c.l.b16 %v2786
        %v2819 = vunpack.c.l.b16 %v2787
        %v2820 = vunpack.c.l.b16 %v2788
        %v2821 = vpack.c.b16 %v2806, %v2805
        %v2822 = vpack.c.b16 %v2808, %v2807
        %v2823 = vpack.c.b16 %v2810, %v2809
        %v2824 = vpack.c.b16 %v2812, %v2811
        %v2825 = vpack.c.b16 %v2814, %v2813
        %v2826 = vpack.c.b16 %v2816, %v2815
        %v2827 = vpack.c.b16 %v2818, %v2817
        %v2828 = vpack.c.b16 %v2820, %v2819
        %2837 = vmatprep.subr.bf16.mxu0 0
        %2838 = vmatpush1.bf16.msra.mxu0 %v2821
        %2839 = vmatprep.subr.bf16.mxu0 0
        %2840 = vmatpush1.bf16.msra.mxu0 %v2822
        %2841 = vmatprep.subr.bf16.mxu0 0
        %2842 = vmatpush1.bf16.msra.mxu0 %v2823
        %2843 = vmatprep.subr.bf16.mxu0 0
        %2844 = vmatpush1.bf16.msra.mxu0 %v2824
        %2845 = vmatprep.subr.bf16.mxu0 0
        %2846 = vmatpush1.bf16.msra.mxu0 %v2825
        %2847 = vmatprep.subr.bf16.mxu0 0
        %2848 = vmatpush1.bf16.msra.mxu0 %v2826
        %2849 = vmatprep.subr.bf16.mxu0 0
        %2850 = vmatpush1.bf16.msra.mxu0 %v2827
        %2851 = vmatprep.subr.bf16.mxu0 0
        %2852 = vmatpush1.bf16.msra.mxu0 %v2828
        %2853 = vmatprep.subr.bf16.mxu0 0
        %2854 = vmatpush1.bf16.msra.mxu0 0
        %2855 = vmatprep.subr.bf16.mxu0 0
        %2856 = vmatpush1.bf16.msra.mxu0 0
        %2857 = vmatprep.subr.bf16.mxu0 0
        %2858 = vmatpush1.bf16.msra.mxu0 0
        %2859 = vmatprep.subr.bf16.mxu0 0
        %2860 = vmatpush1.bf16.msra.mxu0 0
        %2861 = vmatprep.subr.bf16.mxu0 0
        %2862 = vmatpush1.bf16.msra.mxu0 0
        %2863 = vmatprep.subr.bf16.mxu0 0
        %2864 = vmatpush1.bf16.msra.mxu0 0
        %2865 = vmatprep.subr.bf16.mxu0 0
        %2866 = vmatpush1.bf16.msra.mxu0 0
        %2867 = vmatprep.subr.bf16.mxu0 0
        %2868 = vmatpush1.bf16.msra.mxu0 0
        %2869 = vmatprep.mubr.bf16.mxu0 0
        %2870 = vmatmul.mubr.bf16.gmra.mrb[0].mxu0 %v2769
        %v2871 = vpop.f32.mrb[0].mxu0
        %v2872 = vadd.f32 0.0, %v2871
        %v2873 = vpop.f32.mrb[0].mxu0
        %v2874 = vpop.f32.mrb[0].mxu0
        %v2875 = vadd.f32 0.0, %v2874
        %v2876 = vpop.f32.mrb[0].mxu0
        %2877 = vmatprep.mubr.bf16.mxu0 0
        %2878 = vmatmul.mubr.bf16.gmra.mrb[0].mxu0 %v2770
        %v2879 = vpop.f32.mrb[0].mxu0
        %v2880 = vadd.f32 0.0, %v2879
        %v2881 = vpop.f32.mrb[0].mxu0
        %v2882 = vpop.f32.mrb[0].mxu0
        %v2883 = vadd.f32 0.0, %v2882
        %v2884 = vpop.f32.mrb[0].mxu0
        %2885 = vmatprep.mubr.bf16.mxu0 0
        %2886 = vmatmul.mubr.bf16.gmra.mrb[0].mxu0 %v2771
        %v2887 = vpop.f32.mrb[0].mxu0
        %v2888 = vadd.f32 0.0, %v2887
        %v2889 = vpop.f32.mrb[0].mxu0
        %v2890 = vpop.f32.mrb[0].mxu0
        %v2891 = vadd.f32 0.0, %v2890
        %v2892 = vpop.f32.mrb[0].mxu0
        %2893 = vmatprep.mubr.bf16.mxu0 0
        %2894 = vmatmul.mubr.bf16.gmra.mrb[0].mxu0 %v2772
        %v2895 = vpop.f32.mrb[0].mxu0
        %v2896 = vadd.f32 0.0, %v2895
        %v2897 = vpop.f32.mrb[0].mxu0
        %v2898 = vpop.f32.mrb[0].mxu0
        %v2899 = vadd.f32 0.0, %v2898
        %v2900 = vpop.f32.mrb[0].mxu0
        %2901 = vdwg.mxu0
        %v2902 = vld [vmem:[#allocation3 + $0x8] sm:$0xff]
        %v2903 = vld [vmem:[#allocation3 + $0x18] sm:$0xff]
        %v2904 = vld [vmem:[#allocation3 + $0x28] sm:$0xff]
        %v2905 = vld [vmem:[#allocation3 + $0x38] sm:$0xff]
        %v2906 = vld [vmem:[%s1386] sm:$0xf]
        %v2907 = vld [vmem:[%s1386 + $0x4] sm:$0xf]
        %v2908 = vld [vmem:[%s1386 + $0x8] sm:$0xf]
        %v2909 = vld [vmem:[%s1386 + $0xc] sm:$0xf]
        %v2910 = vld [vmem:[%s1386 + $0x10] sm:$0xf]
        %v2911 = vld [vmem:[%s1386 + $0x14] sm:$0xf]
        %v2912 = vld [vmem:[%s1386 + $0x18] sm:$0xf]
        %v2913 = vld [vmem:[%s1386 + $0x1c] sm:$0xf]
        %v2914 = vld [vmem:[%s1386 + $0x20] sm:$0xf]
        %v2915 = vld [vmem:[%s1386 + $0x24] sm:$0xf]
        %v2916 = vld [vmem:[%s1386 + $0x28] sm:$0xf]
        %v2917 = vld [vmem:[%s1386 + $0x2c] sm:$0xf]
        %v2918 = vld [vmem:[%s1386 + $0x30] sm:$0xf]
        %v2919 = vld [vmem:[%s1386 + $0x34] sm:$0xf]
        %v2920 = vld [vmem:[%s1386 + $0x38] sm:$0xf]
        %v2921 = vld [vmem:[%s1386 + $0x3c] sm:$0xf]
        %v2938 = vunpack.c.l.b16 %v2906
        %v2939 = vunpack.c.l.b16 %v2907
        %v2940 = vunpack.c.l.b16 %v2908
        %v2941 = vunpack.c.l.b16 %v2909
        %v2942 = vunpack.c.l.b16 %v2910
        %v2943 = vunpack.c.l.b16 %v2911
        %v2944 = vunpack.c.l.b16 %v2912
        %v2945 = vunpack.c.l.b16 %v2913
        %v2946 = vunpack.c.l.b16 %v2914
        %v2947 = vunpack.c.l.b16 %v2915
        %v2948 = vunpack.c.l.b16 %v2916
        %v2949 = vunpack.c.l.b16 %v2917
        %v2950 = vunpack.c.l.b16 %v2918
        %v2951 = vunpack.c.l.b16 %v2919
        %v2952 = vunpack.c.l.b16 %v2920
        %v2953 = vunpack.c.l.b16 %v2921
        %v2954 = vpack.c.b16 %v2939, %v2938
        %v2955 = vpack.c.b16 %v2941, %v2940
        %v2956 = vpack.c.b16 %v2943, %v2942
        %v2957 = vpack.c.b16 %v2945, %v2944
        %v2958 = vpack.c.b16 %v2947, %v2946
        %v2959 = vpack.c.b16 %v2949, %v2948
        %v2960 = vpack.c.b16 %v2951, %v2950
        %v2961 = vpack.c.b16 %v2953, %v2952
        %2970 = vmatprep.subr.bf16.mxu0 0
        %2971 = vmatpush1.bf16.msra.mxu0 %v2954
        %2972 = vmatprep.subr.bf16.mxu0 0
        %2973 = vmatpush1.bf16.msra.mxu0 %v2955
        %2974 = vmatprep.subr.bf16.mxu0 0
        %2975 = vmatpush1.bf16.msra.mxu0 %v2956
        %2976 = vmatprep.subr.bf16.mxu0 0
        %2977 = vmatpush1.bf16.msra.mxu0 %v2957
        %2978 = vmatprep.subr.bf16.mxu0 0
        %2979 = vmatpush1.bf16.msra.mxu0 %v2958
        %2980 = vmatprep.subr.bf16.mxu0 0
        %2981 = vmatpush1.bf16.msra.mxu0 %v2959
        %2982 = vmatprep.subr.bf16.mxu0 0
        %2983 = vmatpush1.bf16.msra.mxu0 %v2960
        %2984 = vmatprep.subr.bf16.mxu0 0
        %2985 = vmatpush1.bf16.msra.mxu0 %v2961
        %2986 = vmatprep.subr.bf16.mxu0 0
        %2987 = vmatpush1.bf16.msra.mxu0 0
        %2988 = vmatprep.subr.bf16.mxu0 0
        %2989 = vmatpush1.bf16.msra.mxu0 0
        %2990 = vmatprep.subr.bf16.mxu0 0
        %2991 = vmatpush1.bf16.msra.mxu0 0
        %2992 = vmatprep.subr.bf16.mxu0 0
        %2993 = vmatpush1.bf16.msra.mxu0 0
        %2994 = vmatprep.subr.bf16.mxu0 0
        %2995 = vmatpush1.bf16.msra.mxu0 0
        %2996 = vmatprep.subr.bf16.mxu0 0
        %2997 = vmatpush1.bf16.msra.mxu0 0
        %2998 = vmatprep.subr.bf16.mxu0 0
        %2999 = vmatpush1.bf16.msra.mxu0 0
        %3000 = vmatprep.subr.bf16.mxu0 0
        %3001 = vmatpush1.bf16.msra.mxu0 0
        %3002 = vmatprep.mubr.bf16.mxu0 0
        %3003 = vmatmul.mubr.bf16.gmra.mrb[0].mxu0 %v2902
        %v3004 = vpop.f32.mrb[0].mxu0
        %v3005 = vadd.f32 0.0, %v3004
        %v3006 = vpop.f32.mrb[0].mxu0
        %v3007 = vpop.f32.mrb[0].mxu0
        %v3008 = vadd.f32 0.0, %v3007
        %v3009 = vpop.f32.mrb[0].mxu0
        %3010 = vmatprep.mubr.bf16.mxu0 0
        %3011 = vmatmul.mubr.bf16.gmra.mrb[0].mxu0 %v2903
        %v3012 = vpop.f32.mrb[0].mxu0
        %v3013 = vadd.f32 0.0, %v3012
        %v3014 = vpop.f32.mrb[0].mxu0
        %v3015 = vpop.f32.mrb[0].mxu0
        %v3016 = vadd.f32 0.0, %v3015
        %v3017 = vpop.f32.mrb[0].mxu0
        %3018 = vmatprep.mubr.bf16.mxu0 0
        %3019 = vmatmul.mubr.bf16.gmra.mrb[0].mxu0 %v2904
        %v3020 = vpop.f32.mrb[0].mxu0
        %v3021 = vadd.f32 0.0, %v3020
        %v3022 = vpop.f32.mrb[0].mxu0
        %v3023 = vpop.f32.mrb[0].mxu0
        %v3024 = vadd.f32 0.0, %v3023
        %v3025 = vpop.f32.mrb[0].mxu0
        %3026 = vmatprep.mubr.bf16.mxu0 0
        %3027 = vmatmul.mubr.bf16.gmra.mrb[0].mxu0 %v2905
        %v3028 = vpop.f32.mrb[0].mxu0
        %v3029 = vadd.f32 0.0, %v3028
        %v3030 = vpop.f32.mrb[0].mxu0
        %v3031 = vpop.f32.mrb[0].mxu0
        %v3032 = vadd.f32 0.0, %v3031
        %v3033 = vpop.f32.mrb[0].mxu0
        %3034 = vdwg.mxu0
        %v3035 = vpack.c.bf16 %v2875, %v2872
        %v3036 = vpack.c.bf16 %v3008, %v3005
        %v3037 = vpack.c.bf16 %v2883, %v2880
        %v3038 = vpack.c.bf16 %v3016, %v3013
        %v3039 = vpack.c.bf16 %v2891, %v2888
        %v3040 = vpack.c.bf16 %v3024, %v3021
        %v3041 = vpack.c.bf16 %v2899, %v2896
        %v3042 = vpack.c.bf16 %v3032, %v3029
        %3043 = vst [vmem:[#allocation3 + $0x20] sm:$0xff] %v3035
        %3044 = vst [vmem:[#allocation3 + $0x28] sm:$0xff] %v3036
        %3045 = vst [vmem:[#allocation3 + $0x30] sm:$0xff] %v3037
        %3046 = vst [vmem:[#allocation3 + $0x38] sm:$0xff] %v3038
        %3047 = vst [vmem:[#allocation3 + $0x40] sm:$0xff] %v3039
        %3048 = vst [vmem:[#allocation3 + $0x48] sm:$0xff] %v3040
        %3049 = vst [vmem:[#allocation3 + $0x50] sm:$0xff] %v3041
        %3050 = vst [vmem:[#allocation3 + $0x58] sm:$0xff] %v3042
        %3051 = vmatprep.subr.bf16.mxu0 %v3036
        %3052 = vmatpush1.bf16.msra.mxu0 %v3035
        %3053 = vmatprep.subr.bf16.mxu0 %v3038
        %3054 = vmatpush1.bf16.msra.mxu0 %v3037
        %3055 = vmatprep.subr.bf16.mxu0 %v3040
        %3056 = vmatpush1.bf16.msra.mxu0 %v3039
        %3057 = vmatprep.subr.bf16.mxu0 %v3042
        %3058 = vmatpush1.bf16.msra.mxu0 %v3041
        %3059 = vmatprep.subr.bf16.mxu0 0
        %3060 = vmatpush1.bf16.msra.mxu0 0
        %3061 = vmatprep.subr.bf16.mxu0 0
        %3062 = vmatpush1.bf16.msra.mxu0 0
        %3063 = vmatprep.subr.bf16.mxu0 0
        %3064 = vmatpush1.bf16.msra.mxu0 0
        %3065 = vmatprep.subr.bf16.mxu0 0
        %3066 = vmatpush1.bf16.msra.mxu0 0
        %3067 = vmatprep.subr.bf16.mxu0 0
        %3068 = vmatpush1.bf16.msra.mxu0 0
        %3069 = vmatprep.subr.bf16.mxu0 0
        %3070 = vmatpush1.bf16.msra.mxu0 0
        %3071 = vmatprep.subr.bf16.mxu0 0
        %3072 = vmatpush1.bf16.msra.mxu0 0
        %3073 = vmatprep.subr.bf16.mxu0 0
        %3074 = vmatpush1.bf16.msra.mxu0 0
        %3075 = vmatprep.subr.bf16.mxu0 0
        %3076 = vmatpush1.bf16.msra.mxu0 0
        %3077 = vmatprep.subr.bf16.mxu0 0
        %3078 = vmatpush1.bf16.msra.mxu0 0
        %3079 = vmatprep.subr.bf16.mxu0 0
        %3080 = vmatpush1.bf16.msra.mxu0 0
        %3081 = vmatprep.subr.bf16.mxu0 0
        %3082 = vmatpush1.bf16.msra.mxu0 0
        %3083 = vmatprep.mubr.bf16.mxu0 0
        %3084 = vmatmul.mubr.bf16.gmra.mrb[0].mxu0 %v2599
        %v3085 = vpop.f32.mrb[0].mxu0
        %v3086 = vadd.f32 0.0, %v3085
        %v3087 = vpop.f32.mrb[0].mxu0
        %v3088 = vadd.f32 0.0, %v3087
        %v3089 = vpop.f32.mrb[0].mxu0
        %v3090 = vadd.f32 0.0, %v3089
        %v3091 = vpop.f32.mrb[0].mxu0
        %v3092 = vadd.f32 0.0, %v3091
        %3093 = vmatprep.mubr.bf16.mxu0 0
        %3094 = vmatmul.mubr.bf16.gmra.mrb[0].mxu0 %v2602
        %v3095 = vpop.f32.mrb[0].mxu0
        %v3096 = vadd.f32 0.0, %v3095
        %v3097 = vpop.f32.mrb[0].mxu0
        %v3098 = vadd.f32 0.0, %v3097
        %v3099 = vpop.f32.mrb[0].mxu0
        %v3100 = vadd.f32 0.0, %v3099
        %v3101 = vpop.f32.mrb[0].mxu0
        %v3102 = vadd.f32 0.0, %v3101
        %3103 = vdwg.mxu0
        %3104 = vmatprep.subr.bf16.mxu0 %v2766
        %3105 = vmatpush1.bf16.msra.mxu0 %v2765
        %3106 = vmatprep.subr.bf16.mxu0 %v2768
        %3107 = vmatpush1.bf16.msra.mxu0 %v2767
        %3108 = vmatprep.subr.bf16.mxu0 0
        %3109 = vmatpush1.bf16.msra.mxu0 0
        %3110 = vmatprep.subr.bf16.mxu0 0
        %3111 = vmatpush1.bf16.msra.mxu0 0
        %3112 = vmatprep.subr.bf16.mxu0 0
        %3113 = vmatpush1.bf16.msra.mxu0 0
        %3114 = vmatprep.subr.bf16.mxu0 0
        %3115 = vmatpush1.bf16.msra.mxu0 0
        %3116 = vmatprep.subr.bf16.mxu0 0
        %3117 = vmatpush1.bf16.msra.mxu0 0
        %3118 = vmatprep.subr.bf16.mxu0 0
        %3119 = vmatpush1.bf16.msra.mxu0 0
        %3120 = vmatprep.subr.bf16.mxu0 0
        %3121 = vmatpush1.bf16.msra.mxu0 0
        %3122 = vmatprep.subr.bf16.mxu0 0
        %3123 = vmatpush1.bf16.msra.mxu0 0
        %3124 = vmatprep.subr.bf16.mxu0 0
        %3125 = vmatpush1.bf16.msra.mxu0 0
        %3126 = vmatprep.subr.bf16.mxu0 0
        %3127 = vmatpush1.bf16.msra.mxu0 0
        %3128 = vmatprep.subr.bf16.mxu0 0
        %3129 = vmatpush1.bf16.msra.mxu0 0
        %3130 = vmatprep.subr.bf16.mxu0 0
        %3131 = vmatpush1.bf16.msra.mxu0 0
        %3132 = vmatprep.subr.bf16.mxu0 0
        %3133 = vmatpush1.bf16.msra.mxu0 0
        %3134 = vmatprep.subr.bf16.mxu0 0
        %3135 = vmatpush1.bf16.msra.mxu0 0
        %3136 = vmatprep.mubr.bf16.mxu0 0
        %3137 = vmatmul.mubr.bf16.gmra.mrb[0].mxu0 %v2669
        %v3138 = vpop.f32.mrb[0].mxu0
        %v3139 = vadd.f32 %v3086, %v3138
        %v3140 = vpop.f32.mrb[0].mxu0
        %v3141 = vadd.f32 %v3088, %v3140
        %v3142 = vpop.f32.mrb[0].mxu0
        %v3143 = vadd.f32 %v3090, %v3142
        %v3144 = vpop.f32.mrb[0].mxu0
        %v3145 = vadd.f32 %v3092, %v3144
        %3146 = vmatprep.mubr.bf16.mxu0 0
        %3147 = vmatmul.mubr.bf16.gmra.mrb[0].mxu0 %v2672
        %v3148 = vpop.f32.mrb[0].mxu0
        %v3149 = vadd.f32 %v3096, %v3148
        %v3150 = vpop.f32.mrb[0].mxu0
        %v3151 = vadd.f32 %v3098, %v3150
        %v3152 = vpop.f32.mrb[0].mxu0
        %v3153 = vadd.f32 %v3100, %v3152
        %v3154 = vpop.f32.mrb[0].mxu0
        %v3155 = vadd.f32 %v3102, %v3154
        %3156 = vdwg.mxu0
        %3157 = vst [vmem:[#allocation3] sm:$0xff] %v2765
        %3158 = vst [vmem:[#allocation3 + $0x8] sm:$0xff] %v2766
        %3159 = vst [vmem:[#allocation3 + $0x10] sm:$0xff] %v2767
        %3160 = vst [vmem:[#allocation3 + $0x18] sm:$0xff] %v2768
        %v3161 = vld [vmem:[%s1569] sm:$0xff]
        %v3162 = vld [vmem:[%s1569 + $0x8] sm:$0xff]
        %v3163 = vld [vmem:[%s1569 + $0x10] sm:$0xff]
        %v3164 = vld [vmem:[%s1569 + $0x18] sm:$0xff]
        %v3165 = vld [vmem:[%s1569 + $0x20] sm:$0xff]
        %v3166 = vld [vmem:[%s1569 + $0x28] sm:$0xff]
        %v3167 = vld [vmem:[%s1569 + $0x30] sm:$0xff]
        %v3168 = vld [vmem:[%s1569 + $0x38] sm:$0xff]
        %v3169 = vadd.f32 %v3139, %v3161
        %v3170 = vadd.f32 %v3141, %v3162
        %v3171 = vadd.f32 %v3143, %v3163
        %v3172 = vadd.f32 %v3145, %v3164
        %v3173 = vadd.f32 %v3149, %v3165
        %v3174 = vadd.f32 %v3151, %v3166
        %v3175 = vadd.f32 %v3153, %v3167
        %v3176 = vadd.f32 %v3155, %v3168
        %v3177 = vtanh.pop %v3169
        %v3178 = vtanh.pop %v3170
        %v3179 = vtanh.pop %v3171
        %v3180 = vtanh.pop %v3172
        %v3181 = vtanh.pop %v3173
        %v3182 = vtanh.pop %v3174
        %v3183 = vtanh.pop %v3175
        %v3184 = vtanh.pop %v3176
        %s3185 = scalar_lea.vmem %s530, 64 [#allocation16]
        %3186 = vst [vmem:[%s3185] sm:$0xff] %v3177
        %3187 = vst [vmem:[%s3185 + $0x8] sm:$0xff] %v3179
        %3188 = vst [vmem:[%s3185 + $0x10] sm:$0xff] %v3181
        %3189 = vst [vmem:[%s3185 + $0x18] sm:$0xff] %v3183
        %s3190 = scalar_lea.vmem %s530, 192 [#allocation16]
        %3191 = vst [vmem:[%s3190] sm:$0xff] %v3178
        %3192 = vst [vmem:[%s3190 + $0x8] sm:$0xff] %v3180
        %3193 = vst [vmem:[%s3190 + $0x10] sm:$0xff] %v3182
        %3194 = vst [vmem:[%s3190 + $0x18] sm:$0xff] %v3184
        %v3195 = vpack.c.bf16 %v3179, %v3177
        %v3196 = vpack.c.bf16 %v3180, %v3178
        %v3197 = vpack.c.bf16 %v3183, %v3181
        %v3198 = vpack.c.bf16 %v3184, %v3182
        %v3199 = vld [vmem:[#allocation3] sm:$0xff]
        %v3200 = vld [vmem:[#allocation3 + $0x10] sm:$0xff]
        %v3201 = vld [vmem:[#allocation3 + $0x20] sm:$0xff]
        %v3202 = vld [vmem:[#allocation3 + $0x30] sm:$0xff]
        %v3203 = vld [vmem:[%s1580] sm:$0xf]
        %v3204 = vld [vmem:[%s1580 + $0x4] sm:$0xf]
        %v3205 = vld [vmem:[%s1580 + $0x8] sm:$0xf]
        %v3206 = vld [vmem:[%s1580 + $0xc] sm:$0xf]
        %v3207 = vld [vmem:[%s1580 + $0x10] sm:$0xf]
        %v3208 = vld [vmem:[%s1580 + $0x14] sm:$0xf]
        %v3209 = vld [vmem:[%s1580 + $0x18] sm:$0xf]
        %v3210 = vld [vmem:[%s1580 + $0x1c] sm:$0xf]
        %v3211 = vld [vmem:[%s1580 + $0x20] sm:$0xf]
        %v3212 = vld [vmem:[%s1580 + $0x24] sm:$0xf]
        %v3213 = vld [vmem:[%s1580 + $0x28] sm:$0xf]
        %v3214 = vld [vmem:[%s1580 + $0x2c] sm:$0xf]
        %v3215 = vld [vmem:[%s1580 + $0x30] sm:$0xf]
        %v3216 = vld [vmem:[%s1580 + $0x34] sm:$0xf]
        %v3217 = vld [vmem:[%s1580 + $0x38] sm:$0xf]
        %v3218 = vld [vmem:[%s1580 + $0x3c] sm:$0xf]
        %v3235 = vunpack.c.l.b16 %v3203
        %v3236 = vunpack.c.l.b16 %v3204
        %v3237 = vunpack.c.l.b16 %v3205
        %v3238 = vunpack.c.l.b16 %v3206
        %v3239 = vunpack.c.l.b16 %v3207
        %v3240 = vunpack.c.l.b16 %v3208
        %v3241 = vunpack.c.l.b16 %v3209
        %v3242 = vunpack.c.l.b16 %v3210
        %v3243 = vunpack.c.l.b16 %v3211
        %v3244 = vunpack.c.l.b16 %v3212
        %v3245 = vunpack.c.l.b16 %v3213
        %v3246 = vunpack.c.l.b16 %v3214
        %v3247 = vunpack.c.l.b16 %v3215
        %v3248 = vunpack.c.l.b16 %v3216
        %v3249 = vunpack.c.l.b16 %v3217
        %v3250 = vunpack.c.l.b16 %v3218
        %v3251 = vpack.c.b16 %v3236, %v3235
        %v3252 = vpack.c.b16 %v3238, %v3237
        %v3253 = vpack.c.b16 %v3240, %v3239
        %v3254 = vpack.c.b16 %v3242, %v3241
        %v3255 = vpack.c.b16 %v3244, %v3243
        %v3256 = vpack.c.b16 %v3246, %v3245
        %v3257 = vpack.c.b16 %v3248, %v3247
        %v3258 = vpack.c.b16 %v3250, %v3249
        %3267 = vmatprep.subr.bf16.mxu0 0
        %3268 = vmatpush1.bf16.msra.mxu0 %v3251
        %3269 = vmatprep.subr.bf16.mxu0 0
        %3270 = vmatpush1.bf16.msra.mxu0 %v3252
        %3271 = vmatprep.subr.bf16.mxu0 0
        %3272 = vmatpush1.bf16.msra.mxu0 %v3253
        %3273 = vmatprep.subr.bf16.mxu0 0
        %3274 = vmatpush1.bf16.msra.mxu0 %v3254
        %3275 = vmatprep.subr.bf16.mxu0 0
        %3276 = vmatpush1.bf16.msra.mxu0 %v3255
        %3277 = vmatprep.subr.bf16.mxu0 0
        %3278 = vmatpush1.bf16.msra.mxu0 %v3256
        %3279 = vmatprep.subr.bf16.mxu0 0
        %3280 = vmatpush1.bf16.msra.mxu0 %v3257
        %3281 = vmatprep.subr.bf16.mxu0 0
        %3282 = vmatpush1.bf16.msra.mxu0 %v3258
        %3283 = vmatprep.subr.bf16.mxu0 0
        %3284 = vmatpush1.bf16.msra.mxu0 0
        %3285 = vmatprep.subr.bf16.mxu0 0
        %3286 = vmatpush1.bf16.msra.mxu0 0
        %3287 = vmatprep.subr.bf16.mxu0 0
        %3288 = vmatpush1.bf16.msra.mxu0 0
        %3289 = vmatprep.subr.bf16.mxu0 0
        %3290 = vmatpush1.bf16.msra.mxu0 0
        %3291 = vmatprep.subr.bf16.mxu0 0
        %3292 = vmatpush1.bf16.msra.mxu0 0
        %3293 = vmatprep.subr.bf16.mxu0 0
        %3294 = vmatpush1.bf16.msra.mxu0 0
        %3295 = vmatprep.subr.bf16.mxu0 0
        %3296 = vmatpush1.bf16.msra.mxu0 0
        %3297 = vmatprep.subr.bf16.mxu0 0
        %3298 = vmatpush1.bf16.msra.mxu0 0
        %3299 = vmatprep.mubr.bf16.mxu0 0
        %3300 = vmatmul.mubr.bf16.gmra.mrb[0].mxu0 %v3199
        %v3301 = vpop.f32.mrb[0].mxu0
        %v3302 = vadd.f32 0.0, %v3301
        %v3303 = vpop.f32.mrb[0].mxu0
        %v3304 = vpop.f32.mrb[0].mxu0
        %v3305 = vadd.f32 0.0, %v3304
        %v3306 = vpop.f32.mrb[0].mxu0
        %3307 = vmatprep.mubr.bf16.mxu0 0
        %3308 = vmatmul.mubr.bf16.gmra.mrb[0].mxu0 %v3200
        %v3309 = vpop.f32.mrb[0].mxu0
        %v3310 = vadd.f32 0.0, %v3309
        %v3311 = vpop.f32.mrb[0].mxu0
        %v3312 = vpop.f32.mrb[0].mxu0
        %v3313 = vadd.f32 0.0, %v3312
        %v3314 = vpop.f32.mrb[0].mxu0
        %3315 = vmatprep.mubr.bf16.mxu0 0
        %3316 = vmatmul.mubr.bf16.gmra.mrb[0].mxu0 %v3201
        %v3317 = vpop.f32.mrb[0].mxu0
        %v3318 = vadd.f32 0.0, %v3317
        %v3319 = vpop.f32.mrb[0].mxu0
        %v3320 = vpop.f32.mrb[0].mxu0
        %v3321 = vadd.f32 0.0, %v3320
        %v3322 = vpop.f32.mrb[0].mxu0
        %3323 = vmatprep.mubr.bf16.mxu0 0
        %3324 = vmatmul.mubr.bf16.gmra.mrb[0].mxu0 %v3202
        %v3325 = vpop.f32.mrb[0].mxu0
        %v3326 = vadd.f32 0.0, %v3325
        %v3327 = vpop.f32.mrb[0].mxu0
        %v3328 = vpop.f32.mrb[0].mxu0
        %v3329 = vadd.f32 0.0, %v3328
        %v3330 = vpop.f32.mrb[0].mxu0
        %3331 = vdwg.mxu0
        %v3332 = vld [vmem:[#allocation3 + $0x8] sm:$0xff]
        %v3333 = vld [vmem:[#allocation3 + $0x18] sm:$0xff]
        %v3334 = vld [vmem:[#allocation3 + $0x28] sm:$0xff]
        %v3335 = vld [vmem:[#allocation3 + $0x38] sm:$0xff]
        %v3336 = vld [vmem:[%s1700] sm:$0xf]
        %v3337 = vld [vmem:[%s1700 + $0x4] sm:$0xf]
        %v3338 = vld [vmem:[%s1700 + $0x8] sm:$0xf]
        %v3339 = vld [vmem:[%s1700 + $0xc] sm:$0xf]
        %v3340 = vld [vmem:[%s1700 + $0x10] sm:$0xf]
        %v3341 = vld [vmem:[%s1700 + $0x14] sm:$0xf]
        %v3342 = vld [vmem:[%s1700 + $0x18] sm:$0xf]
        %v3343 = vld [vmem:[%s1700 + $0x1c] sm:$0xf]
        %v3344 = vld [vmem:[%s1700 + $0x20] sm:$0xf]
        %v3345 = vld [vmem:[%s1700 + $0x24] sm:$0xf]
        %v3346 = vld [vmem:[%s1700 + $0x28] sm:$0xf]
        %v3347 = vld [vmem:[%s1700 + $0x2c] sm:$0xf]
        %v3348 = vld [vmem:[%s1700 + $0x30] sm:$0xf]
        %v3349 = vld [vmem:[%s1700 + $0x34] sm:$0xf]
        %v3350 = vld [vmem:[%s1700 + $0x38] sm:$0xf]
        %v3351 = vld [vmem:[%s1700 + $0x3c] sm:$0xf]
        %v3368 = vunpack.c.l.b16 %v3336
        %v3369 = vunpack.c.l.b16 %v3337
        %v3370 = vunpack.c.l.b16 %v3338
        %v3371 = vunpack.c.l.b16 %v3339
        %v3372 = vunpack.c.l.b16 %v3340
        %v3373 = vunpack.c.l.b16 %v3341
        %v3374 = vunpack.c.l.b16 %v3342
        %v3375 = vunpack.c.l.b16 %v3343
        %v3376 = vunpack.c.l.b16 %v3344
        %v3377 = vunpack.c.l.b16 %v3345
        %v3378 = vunpack.c.l.b16 %v3346
        %v3379 = vunpack.c.l.b16 %v3347
        %v3380 = vunpack.c.l.b16 %v3348
        %v3381 = vunpack.c.l.b16 %v3349
        %v3382 = vunpack.c.l.b16 %v3350
        %v3383 = vunpack.c.l.b16 %v3351
        %v3384 = vpack.c.b16 %v3369, %v3368
        %v3385 = vpack.c.b16 %v3371, %v3370
        %v3386 = vpack.c.b16 %v3373, %v3372
        %v3387 = vpack.c.b16 %v3375, %v3374
        %v3388 = vpack.c.b16 %v3377, %v3376
        %v3389 = vpack.c.b16 %v3379, %v3378
        %v3390 = vpack.c.b16 %v3381, %v3380
        %v3391 = vpack.c.b16 %v3383, %v3382
        %3400 = vmatprep.subr.bf16.mxu0 0
        %3401 = vmatpush1.bf16.msra.mxu0 %v3384
        %3402 = vmatprep.subr.bf16.mxu0 0
        %3403 = vmatpush1.bf16.msra.mxu0 %v3385
        %3404 = vmatprep.subr.bf16.mxu0 0
        %3405 = vmatpush1.bf16.msra.mxu0 %v3386
        %3406 = vmatprep.subr.bf16.mxu0 0
        %3407 = vmatpush1.bf16.msra.mxu0 %v3387
        %3408 = vmatprep.subr.bf16.mxu0 0
        %3409 = vmatpush1.bf16.msra.mxu0 %v3388
        %3410 = vmatprep.subr.bf16.mxu0 0
        %3411 = vmatpush1.bf16.msra.mxu0 %v3389
        %3412 = vmatprep.subr.bf16.mxu0 0
        %3413 = vmatpush1.bf16.msra.mxu0 %v3390
        %3414 = vmatprep.subr.bf16.mxu0 0
        %3415 = vmatpush1.bf16.msra.mxu0 %v3391
        %3416 = vmatprep.subr.bf16.mxu0 0
        %3417 = vmatpush1.bf16.msra.mxu0 0
        %3418 = vmatprep.subr.bf16.mxu0 0
        %3419 = vmatpush1.bf16.msra.mxu0 0
        %3420 = vmatprep.subr.bf16.mxu0 0
        %3421 = vmatpush1.bf16.msra.mxu0 0
        %3422 = vmatprep.subr.bf16.mxu0 0
        %3423 = vmatpush1.bf16.msra.mxu0 0
        %3424 = vmatprep.subr.bf16.mxu0 0
        %3425 = vmatpush1.bf16.msra.mxu0 0
        %3426 = vmatprep.subr.bf16.mxu0 0
        %3427 = vmatpush1.bf16.msra.mxu0 0
        %3428 = vmatprep.subr.bf16.mxu0 0
        %3429 = vmatpush1.bf16.msra.mxu0 0
        %3430 = vmatprep.subr.bf16.mxu0 0
        %3431 = vmatpush1.bf16.msra.mxu0 0
        %3432 = vmatprep.mubr.bf16.mxu0 0
        %3433 = vmatmul.mubr.bf16.gmra.mrb[0].mxu0 %v3332
        %v3434 = vpop.f32.mrb[0].mxu0
        %v3435 = vadd.f32 0.0, %v3434
        %v3436 = vpop.f32.mrb[0].mxu0
        %v3437 = vpop.f32.mrb[0].mxu0
        %v3438 = vadd.f32 0.0, %v3437
        %v3439 = vpop.f32.mrb[0].mxu0
        %3440 = vmatprep.mubr.bf16.mxu0 0
        %3441 = vmatmul.mubr.bf16.gmra.mrb[0].mxu0 %v3333
        %v3442 = vpop.f32.mrb[0].mxu0
        %v3443 = vadd.f32 0.0, %v3442
        %v3444 = vpop.f32.mrb[0].mxu0
        %v3445 = vpop.f32.mrb[0].mxu0
        %v3446 = vadd.f32 0.0, %v3445
        %v3447 = vpop.f32.mrb[0].mxu0
        %3448 = vmatprep.mubr.bf16.mxu0 0
        %3449 = vmatmul.mubr.bf16.gmra.mrb[0].mxu0 %v3334
        %v3450 = vpop.f32.mrb[0].mxu0
        %v3451 = vadd.f32 0.0, %v3450
        %v3452 = vpop.f32.mrb[0].mxu0
        %v3453 = vpop.f32.mrb[0].mxu0
        %v3454 = vadd.f32 0.0, %v3453
        %v3455 = vpop.f32.mrb[0].mxu0
        %3456 = vmatprep.mubr.bf16.mxu0 0
        %3457 = vmatmul.mubr.bf16.gmra.mrb[0].mxu0 %v3335
        %v3458 = vpop.f32.mrb[0].mxu0
        %v3459 = vadd.f32 0.0, %v3458
        %v3460 = vpop.f32.mrb[0].mxu0
        %v3461 = vpop.f32.mrb[0].mxu0
        %v3462 = vadd.f32 0.0, %v3461
        %v3463 = vpop.f32.mrb[0].mxu0
        %3464 = vdwg.mxu0
        %v3465 = vpack.c.bf16 %v3305, %v3302
        %v3466 = vpack.c.bf16 %v3438, %v3435
        %v3467 = vpack.c.bf16 %v3313, %v3310
        %v3468 = vpack.c.bf16 %v3446, %v3443
        %v3469 = vpack.c.bf16 %v3321, %v3318
        %v3470 = vpack.c.bf16 %v3454, %v3451
        %v3471 = vpack.c.bf16 %v3329, %v3326
        %v3472 = vpack.c.bf16 %v3462, %v3459
        %3473 = vst [vmem:[#allocation3 + $0x20] sm:$0xff] %v3465
        %3474 = vst [vmem:[#allocation3 + $0x28] sm:$0xff] %v3466
        %3475 = vst [vmem:[#allocation3 + $0x30] sm:$0xff] %v3467
        %3476 = vst [vmem:[#allocation3 + $0x38] sm:$0xff] %v3468
        %3477 = vst [vmem:[#allocation3 + $0x40] sm:$0xff] %v3469
        %3478 = vst [vmem:[#allocation3 + $0x48] sm:$0xff] %v3470
        %3479 = vst [vmem:[#allocation3 + $0x50] sm:$0xff] %v3471
        %3480 = vst [vmem:[#allocation3 + $0x58] sm:$0xff] %v3472
        %3481 = vmatprep.subr.bf16.mxu0 %v3466
        %3482 = vmatpush1.bf16.msra.mxu0 %v3465
        %3483 = vmatprep.subr.bf16.mxu0 %v3468
        %3484 = vmatpush1.bf16.msra.mxu0 %v3467
        %3485 = vmatprep.subr.bf16.mxu0 %v3470
        %3486 = vmatpush1.bf16.msra.mxu0 %v3469
        %3487 = vmatprep.subr.bf16.mxu0 %v3472
        %3488 = vmatpush1.bf16.msra.mxu0 %v3471
        %3489 = vmatprep.subr.bf16.mxu0 0
        %3490 = vmatpush1.bf16.msra.mxu0 0
        %3491 = vmatprep.subr.bf16.mxu0 0
        %3492 = vmatpush1.bf16.msra.mxu0 0
        %3493 = vmatprep.subr.bf16.mxu0 0
        %3494 = vmatpush1.bf16.msra.mxu0 0
        %3495 = vmatprep.subr.bf16.mxu0 0
        %3496 = vmatpush1.bf16.msra.mxu0 0
        %3497 = vmatprep.subr.bf16.mxu0 0
        %3498 = vmatpush1.bf16.msra.mxu0 0
        %3499 = vmatprep.subr.bf16.mxu0 0
        %3500 = vmatpush1.bf16.msra.mxu0 0
        %3501 = vmatprep.subr.bf16.mxu0 0
        %3502 = vmatpush1.bf16.msra.mxu0 0
        %3503 = vmatprep.subr.bf16.mxu0 0
        %3504 = vmatpush1.bf16.msra.mxu0 0
        %3505 = vmatprep.subr.bf16.mxu0 0
        %3506 = vmatpush1.bf16.msra.mxu0 0
        %3507 = vmatprep.subr.bf16.mxu0 0
        %3508 = vmatpush1.bf16.msra.mxu0 0
        %3509 = vmatprep.subr.bf16.mxu0 0
        %3510 = vmatpush1.bf16.msra.mxu0 0
        %3511 = vmatprep.subr.bf16.mxu0 0
        %3512 = vmatpush1.bf16.msra.mxu0 0
        %3513 = vmatprep.mubr.bf16.mxu0 0
        %3514 = vmatmul.mubr.bf16.gmra.mrb[0].mxu0 %v2599
        %v3515 = vpop.f32.mrb[0].mxu0
        %v3516 = vadd.f32 0.0, %v3515
        %v3517 = vpop.f32.mrb[0].mxu0
        %v3518 = vadd.f32 0.0, %v3517
        %v3519 = vpop.f32.mrb[0].mxu0
        %v3520 = vadd.f32 0.0, %v3519
        %v3521 = vpop.f32.mrb[0].mxu0
        %v3522 = vadd.f32 0.0, %v3521
        %3523 = vmatprep.mubr.bf16.mxu0 0
        %3524 = vmatmul.mubr.bf16.gmra.mrb[0].mxu0 %v2602
        %v3525 = vpop.f32.mrb[0].mxu0
        %v3526 = vadd.f32 0.0, %v3525
        %v3527 = vpop.f32.mrb[0].mxu0
        %v3528 = vadd.f32 0.0, %v3527
        %v3529 = vpop.f32.mrb[0].mxu0
        %v3530 = vadd.f32 0.0, %v3529
        %v3531 = vpop.f32.mrb[0].mxu0
        %v3532 = vadd.f32 0.0, %v3531
        %3533 = vdwg.mxu0
        %3534 = vmatprep.subr.bf16.mxu0 %v3196
        %3535 = vmatpush1.bf16.msra.mxu0 %v3195
        %3536 = vmatprep.subr.bf16.mxu0 %v3198
        %3537 = vmatpush1.bf16.msra.mxu0 %v3197
        %3538 = vmatprep.subr.bf16.mxu0 0
        %3539 = vmatpush1.bf16.msra.mxu0 0
        %3540 = vmatprep.subr.bf16.mxu0 0
        %3541 = vmatpush1.bf16.msra.mxu0 0
        %3542 = vmatprep.subr.bf16.mxu0 0
        %3543 = vmatpush1.bf16.msra.mxu0 0
        %3544 = vmatprep.subr.bf16.mxu0 0
        %3545 = vmatpush1.bf16.msra.mxu0 0
        %3546 = vmatprep.subr.bf16.mxu0 0
        %3547 = vmatpush1.bf16.msra.mxu0 0
        %3548 = vmatprep.subr.bf16.mxu0 0
        %3549 = vmatpush1.bf16.msra.mxu0 0
        %3550 = vmatprep.subr.bf16.mxu0 0
        %3551 = vmatpush1.bf16.msra.mxu0 0
        %3552 = vmatprep.subr.bf16.mxu0 0
        %3553 = vmatpush1.bf16.msra.mxu0 0
        %3554 = vmatprep.subr.bf16.mxu0 0
        %3555 = vmatpush1.bf16.msra.mxu0 0
        %3556 = vmatprep.subr.bf16.mxu0 0
        %3557 = vmatpush1.bf16.msra.mxu0 0
        %3558 = vmatprep.subr.bf16.mxu0 0
        %3559 = vmatpush1.bf16.msra.mxu0 0
        %3560 = vmatprep.subr.bf16.mxu0 0
        %3561 = vmatpush1.bf16.msra.mxu0 0
        %3562 = vmatprep.subr.bf16.mxu0 0
        %3563 = vmatpush1.bf16.msra.mxu0 0
        %3564 = vmatprep.subr.bf16.mxu0 0
        %3565 = vmatpush1.bf16.msra.mxu0 0
        %3566 = vmatprep.mubr.bf16.mxu0 0
        %3567 = vmatmul.mubr.bf16.gmra.mrb[0].mxu0 %v2669
        %v3568 = vpop.f32.mrb[0].mxu0
        %v3569 = vadd.f32 %v3516, %v3568
        %v3570 = vpop.f32.mrb[0].mxu0
        %v3571 = vadd.f32 %v3518, %v3570
        %v3572 = vpop.f32.mrb[0].mxu0
        %v3573 = vadd.f32 %v3520, %v3572
        %v3574 = vpop.f32.mrb[0].mxu0
        %v3575 = vadd.f32 %v3522, %v3574
        %3576 = vmatprep.mubr.bf16.mxu0 0
        %3577 = vmatmul.mubr.bf16.gmra.mrb[0].mxu0 %v2672
        %v3578 = vpop.f32.mrb[0].mxu0
        %v3579 = vadd.f32 %v3526, %v3578
        %v3580 = vpop.f32.mrb[0].mxu0
        %v3581 = vadd.f32 %v3528, %v3580
        %v3582 = vpop.f32.mrb[0].mxu0
        %v3583 = vadd.f32 %v3530, %v3582
        %v3584 = vpop.f32.mrb[0].mxu0
        %v3585 = vadd.f32 %v3532, %v3584
        %3586 = vdwg.mxu0
        %3587 = vst [vmem:[#allocation3] sm:$0xff] %v3195
        %3588 = vst [vmem:[#allocation3 + $0x8] sm:$0xff] %v3196
        %3589 = vst [vmem:[#allocation3 + $0x10] sm:$0xff] %v3197
        %3590 = vst [vmem:[#allocation3 + $0x18] sm:$0xff] %v3198
        %v3591 = vld [vmem:[%s1883] sm:$0xff]
        %v3592 = vld [vmem:[%s1883 + $0x8] sm:$0xff]
        %v3593 = vld [vmem:[%s1883 + $0x10] sm:$0xff]
        %v3594 = vld [vmem:[%s1883 + $0x18] sm:$0xff]
        %v3595 = vld [vmem:[%s1883 + $0x20] sm:$0xff]
        %v3596 = vld [vmem:[%s1883 + $0x28] sm:$0xff]
        %v3597 = vld [vmem:[%s1883 + $0x30] sm:$0xff]
        %v3598 = vld [vmem:[%s1883 + $0x38] sm:$0xff]
        %v3599 = vadd.f32 %v3569, %v3591
        %v3600 = vadd.f32 %v3571, %v3592
        %v3601 = vadd.f32 %v3573, %v3593
        %v3602 = vadd.f32 %v3575, %v3594
        %v3603 = vadd.f32 %v3579, %v3595
        %v3604 = vadd.f32 %v3581, %v3596
        %v3605 = vadd.f32 %v3583, %v3597
        %v3606 = vadd.f32 %v3585, %v3598
        %v3607 = vtanh.pop %v3599
        %v3608 = vtanh.pop %v3600
        %v3609 = vtanh.pop %v3601
        %v3610 = vtanh.pop %v3602
        %v3611 = vtanh.pop %v3603
        %v3612 = vtanh.pop %v3604
        %v3613 = vtanh.pop %v3605
        %v3614 = vtanh.pop %v3606
        %s3615 = scalar_lea.vmem %s530, 96 [#allocation16]
        %3616 = vst [vmem:[%s3615] sm:$0xff] %v3607
        %3617 = vst [vmem:[%s3615 + $0x8] sm:$0xff] %v3609
        %3618 = vst [vmem:[%s3615 + $0x10] sm:$0xff] %v3611
        %3619 = vst [vmem:[%s3615 + $0x18] sm:$0xff] %v3613
        %s3620 = scalar_lea.vmem %s530, 224 [#allocation16]
        %3621 = vst [vmem:[%s3620] sm:$0xff] %v3608
        %3622 = vst [vmem:[%s3620 + $0x8] sm:$0xff] %v3610
        %3623 = vst [vmem:[%s3620 + $0x10] sm:$0xff] %v3612
        %3624 = vst [vmem:[%s3620 + $0x18] sm:$0xff] %v3614
        %3625 = vst [vmem:[#allocation5] sm:$0xff] %v3607
        %3626 = vst [vmem:[#allocation5 + $0x8] sm:$0xff] %v3608
        %3627 = vst [vmem:[#allocation5 + $0x10] sm:$0xff] %v3609
        %3628 = vst [vmem:[#allocation5 + $0x18] sm:$0xff] %v3610
        %3629 = vst [vmem:[#allocation5 + $0x20] sm:$0xff] %v3611
        %3630 = vst [vmem:[#allocation5 + $0x28] sm:$0xff] %v3612
        %3631 = vst [vmem:[#allocation5 + $0x30] sm:$0xff] %v3613
        %3632 = vst [vmem:[#allocation5 + $0x38] sm:$0xff] %v3614
        %s3633 = sand.u32 %s236, 1
        %s3634 = scalar_lea.sflag [#allocation8], %s3633
        %s3635 = sand.u32 %s236, 1
        %s3636 = smul.addr %s3635, 256
        %s3637 = scalar_lea.vmem [#allocation16], %s3636
        // Predicated region
        $region126: #{tpu_custom_call.1} parent=88 // pred_check
          %p3638 = pneg %p246
        $region127: #{tpu_custom_call.1} parent=88 // pred_check_branch
          %3640 = sbr.rel (%p3638) target = $region129
        $region128: #{tpu_custom_call.1} parent=88 // pred_region
          #allocation20 [shape = 'u32[6]{0}', space=smem, size = 0x18, scoped, tag = 'DMA stride descriptor']
          %s3641 = smul.u32 2, %s31
          %s3642 = smul.u32 4, %s32
          %s3644 = ssub.s32 4096, 4096
          %3645 = vsyncadd %s3634, %s3644
          %s3646 = smul.addr %s3642, 4
          %s3647 = smul.addr %s3641, 32
          %s3648 = sadd.s32 %s3646, %s3647
          %s3649 = smul.addr %s3648, 128
          %s3650 = scalar_lea.hbm %s8, %s3649
          %s3652 = sshll.u32 1, 14
          %s3653 = sxor.u32 4294967295, %s3652
          %s3656 = sshll.u32 7, 18
          %s3657 = sxor.u32 4294967295, %s3656
          %s3658 = sand.u32 0, %s3657
          %s3660 = sor.u32 %s3658, 0
          %s3662 = sshll.u32 3, 24
          %s3663 = sxor.u32 4294967295, %s3662
          %s3664 = sand.u32 %s3660, %s3663
          %s3666 = sor.u32 %s3664, 0
          %s3667 = sshll.u32 %s3637, 4
          %s3668 = int_to_ptr.vmem [resolvable:$true] %s3667
          %3674 = sst [smem:[#allocation20]] 2048
          %s3675 = scalar_lea.smem [#allocation20], 1
          %3676 = sst [smem:[%s3675]] 4096
          %s3677 = scalar_lea.smem [#allocation20], 2
          %3678 = sst [smem:[%s3677]] 16
          %s3679 = scalar_lea.smem [#allocation20], 3
          %3680 = sst [smem:[%s3679]] 128
          %s3681 = scalar_lea.smem [#allocation20], 4
          %3682 = sst [smem:[%s3681]] 128
          %s3683 = scalar_lea.smem [#allocation20], 5
          %3684 = sst [smem:[%s3683]] 8
          %3686 = dma.general %s3668, 4096, %s3650, %s3634, [#allocation19], [#allocation20], %s3666, 0
        $region129: #{tpu_custom_call.1} parent=88 // pred_fallthru
          _
      $region89: #{tpu_custom_call.1} parent=5 // pred_fallthru
        _
      %p3687 = scmp.le.s32.totalorder 2, %s22
      // Predicated region
      $region130: #{tpu_custom_call.1} parent=5 // pred_check
        %p3688 = pneg %p3687
      $region131: #{tpu_custom_call.1} parent=5 // pred_check_branch
        %3690 = sbr.rel (%p3688) target = $region133
      $region132: #{tpu_custom_call.1} parent=5 // pred_region
        %s3691 = ssub.s32 %s22, 2
        // Predicated region
        $region134: #{tpu_custom_call.1} parent=132 // pred_check
          %p3692 = pneg %p252
        $region135: #{tpu_custom_call.1} parent=132 // pred_check_branch
          %3694 = sbr.rel (%p3692) target = $region137
        $region136: #{tpu_custom_call.1} parent=132 // pred_region
          %s3695 = sand.u32 %s237, 1
          %s3696 = scalar_lea.sflag [#allocation8], %s3695
          %s3697 = sand.u32 %s237, 1
          %s3698 = smul.addr %s3697, 256
          %s3699 = scalar_lea.vmem [#allocation16], %s3698
          %3700 = dma.done %s3696, 4096
        $region137: #{tpu_custom_call.1} parent=132 // pred_fallthru
          _
      $region133: #{tpu_custom_call.1} parent=5 // pred_fallthru
        _
    $region6: #{tpu_custom_call.1} parent=1 // loop_footer
      %s26 = sadd.s32 1, %s22
    $region7: #{tpu_custom_call.1} parent=1 // loop_footer_branch
      %21 = sbr.rel target = $region3
    $region8: #{tpu_custom_call.1} parent=1 // loop_exit
      _
    %3701 = vsyncpa [#allocation7], 1
    %s3702 = scalar_lea.sflag [#allocation7], 1
    %3703 = vsyncpa %s3702, 1
    %3704 = vsyncpa [#allocation11], 1
    %3705 = vsyncpa [#allocation14], 1
    %3706 = vsyncpa [#allocation8], 1
    %s3707 = scalar_lea.sflag [#allocation8], 1
    %3708 = vsyncpa %s3707, 1

</llo_original>
